<compile_context>
chip_gen: v5e
topology: v5e:2x2
jax: 0.10.0
libtpu: 0.0.40
codegen_flags: <defaults>
</compile_context>

<pallas_src>
import jax
import jax.numpy as jnp
from jax.experimental import pallas as pl
from jax.experimental.pallas import tpu as pltpu

# Fixed by the torch module's __init__
CIN, COUT = 138, 57
KH, KW = 7, 12
SH, SW = 3, 4
TH = -(-KH // SH)                 # 3 h-taps (t) max per output row phase
TW = -(-KW // SW)                 # 3 w-taps (s) per output col phase (KW == SW*TW)
CIN3 = TW * CIN                   # 414: kw-phases folded into contraction dim
CPHASE = 128 * (-(-(SW * COUT) // 128))   # 256: rw-packed, lane-padded width per rh

# Valid rh's per h-tap t (kh = rh + SH*t < KH): t=0,1 -> [0,1,2]; t=2 -> [0].
VALID_RH = [[rh for rh in range(SH) if rh + SH * t < KH] for t in range(TH)]
assert TH == 3 and sum(len(v) for v in VALID_RH) == KH


def _round_up(v, m):
    return (v + m - 1) // m * m


def _build_kernel(QWp, M):
    def kernel(x_ref, w0_ref, w1_ref, w2_ref, o_ref):
        # x_ref : (1, (QH+2)*QWp, 414) bf16 -- flattened (h, qw) rows, kw-phases in K
        # w*_ref: (414, len(VALID_RH[t])*256) bf16 -- per-t weights, rh & rw in columns
        # o_ref : (1, SH, M, 256) bf16
        w_refs = (w0_ref, w1_ref, w2_ref)

        # One matmul per h-tap t.  Each LHS is a contiguous, sublane-aligned row
        # range of the flattened input block, consumed exactly once.
        d = []
        for t in range(TH):
            r0 = (TH - 1 - t) * QWp
            lhs = x_ref[0, r0:r0 + M, :]
            d.append(jnp.dot(lhs, w_refs[t][...],
                             preferred_element_type=jnp.float32))

        # Per output row-phase rh: sum the (lane-aligned) column slices over
        # the valid taps, fuse relu, store one dense bf16 slab.
        for rh in range(SH):
            acc = None
            for t in range(TH):
                if rh + SH * t >= KH:          # static skip of invalid taps
                    continue
                c0 = VALID_RH[t].index(rh) * CPHASE
                part = d[t][:, c0:c0 + CPHASE]
                acc = part if acc is None else acc + part
            # where(y>0, y, 8.1*y) followed by relu(.) == relu(y) (exact, incl. NaN)
            o_ref[0, rh, :, :] = jnp.maximum(acc, 0.0).astype(o_ref.dtype)

    return kernel


def model_forward(x_nchw, w_torch):
    """x_nchw: (N, 138, H, W) f32.  w_torch: (138, 57, 7, 12) f32 (PyTorch layout)."""
    N, Cin, H, W = x_nchw.shape
    Cin_, Cout, kH, kW = w_torch.shape
    assert (Cin, Cin_, Cout, kH, kW) == (CIN, CIN, COUT, KH, KW)

    OH = (H - 1) * SH + KH
    OW = (W - 1) * SW + KW
    QH = -(-OH // SH)                 # == H + 2   (polyphase rows)
    QW = -(-OW // SW)                 # == W + 2
    QWp = _round_up(QW, 8)            # sublane-aligned so row-flattening is layout-free
    Hq = QH + 2                       # == H + 4   (2-row halo each side)
    M = QH * QWp                      # matmul M per (n, rh); multiple of 8

    # ---------------- input prep (plain JAX glue) ----------------
    # NCHW -> NHWC, bf16, zero-pad a 2-wide halo, fold the TW kw-phase shifts
    # into the channel dim (partial im2col), flatten (h, qw) into matmul rows.
    xh = jnp.transpose(x_nchw, (0, 2, 3, 1)).astype(jnp.bfloat16)        # (N,H,W,Cin)
    xp = jnp.pad(xh, ((0, 0), (2, Hq - H - 2), (2, QWp - W), (0, 0)))    # (N,Hq,QWp+2,Cin)
    xs = jnp.concatenate(
        [xp[:, :, (TW - 1 - s):(TW - 1 - s) + QWp, :] for s in range(TW)], axis=-1)
    xs = xs.reshape(N, Hq * QWp, CIN3)                                   # (N, Hq*QWp, 414)

    # ---------------- weight prep: pack (rh, rw, cout) into RHS columns ----
    w = w_torch.astype(jnp.float32)
    w_ts = []
    for t in range(TH):
        rh_blocks = []
        for rh in VALID_RH[t]:
            kh = rh + SH * t
            rw_blocks = []
            for rw in range(SW):
                ws = jnp.stack([w[:, :, kh, rw + SW * s] for s in range(TW)], axis=0)
                rw_blocks.append(ws.reshape(TW * CIN, COUT))             # (414, 57)
            blk = jnp.concatenate(rw_blocks, axis=1)                     # (414, 228)
            blk = jnp.pad(blk, ((0, 0), (0, CPHASE - SW * COUT)))        # (414, 256)
            rh_blocks.append(blk)
        w_ts.append(jnp.concatenate(rh_blocks, axis=1).astype(jnp.bfloat16))
    # shapes: (414, 768), (414, 768), (414, 256)

    # ---------------- VMEM budget (per-generation cap) ----------------
    x_vm = Hq * QWp * _round_up(CIN3, 128) * 2                # bf16, per buffer
    w_vm = sum(_round_up(CIN3, 16) * wt.shape[1] * 2 for wt in w_ts)
    o_vm = SH * M * CPHASE * 2                                # bf16, per buffer
    tot_cols = sum(wt.shape[1] for wt in w_ts)
    tmp = (M * tot_cols * 4                                   # f32 per-tap matmul results
           + TH * M * _round_up(CIN3, 128) * 2                # lhs operand loads
           + 2 * M * CPHASE * 4)                              # accumulator adds
    need = 2 * (x_vm + o_vm) + 2 * w_vm + tmp
    try:
        cap = int(getattr(pltpu.get_tpu_info(), "vmem_capacity_bytes",
                          64 * 2**20)) * 3 // 4
    except Exception:
        cap = 44 * 2**20                                      # safe on v7x (64 MiB/TC)
    vmem_limit = int(min(max(need * 3 // 2, 32 * 2**20), cap))

    # ---------------- pallas call ----------------
    in_specs = [pl.BlockSpec((1, Hq * QWp, CIN3), lambda n: (n, 0, 0))]
    for wt in w_ts:
        # constant index_map -> weights DMA'd to VMEM once, resident across grid
        in_specs.append(pl.BlockSpec(wt.shape, lambda n: (0, 0)))
    out_spec = pl.BlockSpec((1, SH, M, CPHASE), lambda n: (n, 0, 0, 0))

    out = pl.pallas_call(
        _build_kernel(QWp, M),
        out_shape=jax.ShapeDtypeStruct((N, SH, M, CPHASE), jnp.bfloat16),
        grid=(N,),
        in_specs=in_specs,
        out_specs=out_spec,
        compiler_params=pltpu.CompilerParams(
            dimension_semantics=("parallel",),
            vmem_limit_bytes=vmem_limit),
    )(xs, *w_ts)

    # ---------------- phase re-interleave (plain JAX glue, bf16) ----------------
    out = out.reshape(N, SH, QH, QWp, CPHASE)[..., :SW * COUT]
    out = out.reshape(N, SH, QH, QWp, SW, COUT)
    out = jnp.transpose(out, (0, 5, 2, 1, 3, 4))          # (N, C, qh, rh, qw, rw)
    out = out.reshape(N, COUT, QH * SH, QWp * SW).astype(jnp.float32)
    return out[:, :, :OH, :OW]                            # oh = qh*3+rh, ow = qw*4+rw


def reference_forward(x, w):
    """Pure-JAX f32 reference: scatter-form transposed conv + where + relu."""
    N, Cin, H, W = x.shape
    OH = (H - 1) * SH + KH
    OW = (W - 1) * SW + KW
    y = jnp.zeros((N, w.shape[1], OH, OW), jnp.float32)
    for kh in range(KH):
        for kw in range(KW):
            contrib = jnp.einsum('nchw,cf->nfhw', x, w[:, :, kh, kw])
            y = y.at[:, :, kh:kh + (H - 1) * SH + 1:SH,
                     kw:kw + (W - 1) * SW + 1:SW].add(contrib)
    y = jnp.where(y > 0, y, y * 8.1)
    return jnp.maximum(y, 0.0)


if __name__ == "__main__":
    key = jax.random.PRNGKey(0)
    kx, kw_ = jax.random.split(key)

    # Channels fixed by the module (138 -> 57); batch/spatial reduced from
    # (19, 138, 29, 30) to a small test shape.
    N, H, W = 2, 8, 8
    x = jax.random.normal(kx, (N, CIN, H, W), dtype=jnp.float32)

    # PyTorch ConvTranspose2d weight layout (in_ch, out_ch, kH, kW),
    # uniform(-1/sqrt(fan), 1/sqrt(fan)) init.
    fan = CIN * KH * KW
    bound = 1.0 / (fan ** 0.5)
    w = jax.random.uniform(kw_, (CIN, COUT, KH, KW), jnp.float32, -bound, bound)

    fwd = jax.jit(model_forward)
    y = jax.block_until_ready(fwd(x, w))

    y_ref = reference_forward(x, w)
    assert y.shape == (N, COUT, (H - 1) * SH + KH, (W - 1) * SW + KW), y.shape
    err = float(jnp.max(jnp.abs(y - y_ref)))
    # bf16 matmul operands + bf16 stored accumulator vs f32 reference:
    # expected max abs error a few 1e-3 at these magnitudes.
    assert err < 3e-2, f"max abs error vs f32 reference: {err}"

    print("KERNEL_OK")
</pallas_src>

<mosaic_0001>
module attributes {stable_mosaic.version = 11 : i64} {
  func.func @kernel(%arg0: i32, %arg1: memref<1x192x414xbf16, #tpu.memory_space<vmem>>, %arg2: memref<414x768xbf16, #tpu.memory_space<vmem>>, %arg3: memref<414x768xbf16, #tpu.memory_space<vmem>>, %arg4: memref<414x256xbf16, #tpu.memory_space<vmem>>, %arg5: memref<1x3x160x256xbf16, #tpu.memory_space<vmem>>) attributes {dimension_semantics = [#tpu.dimension_semantics<parallel>], iteration_bounds = array<i64: 2>, scalar_prefetch = 0 : i64, scratch_operands = 0 : i64, tpu.core_type = #tpu.core_type<tc>, window_params = [{transform_indices = @transform_0, window_bounds = array<i64: 1, 192, 414>}, {pipeline_mode = #tpu.pipeline_mode<synchronous>, transform_indices = @transform_1, window_bounds = array<i64: 414, 768>}, {pipeline_mode = #tpu.pipeline_mode<synchronous>, transform_indices = @transform_2, window_bounds = array<i64: 414, 768>}, {pipeline_mode = #tpu.pipeline_mode<synchronous>, transform_indices = @transform_3, window_bounds = array<i64: 414, 256>}, {transform_indices = @transform_4, window_bounds = array<i64: 1, 3, 160, 256>}]} {
    %c0 = arith.constant 0 : index
    %c32 = arith.constant 32 : index
    %c0_0 = arith.constant 0 : index
    %0 = vector.load %arg1[%c0, %c32, %c0_0] : memref<1x192x414xbf16, #tpu.memory_space<vmem>>, vector<1x160x414xbf16>
    %1 = vector.shape_cast %0 : vector<1x160x414xbf16> to vector<160x414xbf16>
    %c0_1 = arith.constant 0 : index
    %c0_2 = arith.constant 0 : index
    %2 = vector.load %arg2[%c0_1, %c0_2] : memref<414x768xbf16, #tpu.memory_space<vmem>>, vector<414x768xbf16>
    %cst = arith.constant dense<0.000000e+00> : vector<160x768xf32>
    %3 = tpu.matmul %1, %2, %cst {dimension_numbers = #tpu.dot_dimension_numbers<[1], [0], [0], [1], [0, 0, 1, 1], [], []>} : vector<160x414xbf16>, vector<414x768xbf16>, vector<160x768xf32> -> vector<160x768xf32>
    %c0_3 = arith.constant 0 : index
    %c16 = arith.constant 16 : index
    %c0_4 = arith.constant 0 : index
    %4 = vector.load %arg1[%c0_3, %c16, %c0_4] : memref<1x192x414xbf16, #tpu.memory_space<vmem>>, vector<1x160x414xbf16>
    %5 = vector.shape_cast %4 : vector<1x160x414xbf16> to vector<160x414xbf16>
    %c0_5 = arith.constant 0 : index
    %c0_6 = arith.constant 0 : index
    %6 = vector.load %arg3[%c0_5, %c0_6] : memref<414x768xbf16, #tpu.memory_space<vmem>>, vector<414x768xbf16>
    %cst_7 = arith.constant dense<0.000000e+00> : vector<160x768xf32>
    %7 = tpu.matmul %5, %6, %cst_7 {dimension_numbers = #tpu.dot_dimension_numbers<[1], [0], [0], [1], [0, 0, 1, 1], [], []>} : vector<160x414xbf16>, vector<414x768xbf16>, vector<160x768xf32> -> vector<160x768xf32>
    %c0_8 = arith.constant 0 : index
    %c0_9 = arith.constant 0 : index
    %c0_10 = arith.constant 0 : index
    %8 = vector.load %arg1[%c0_8, %c0_9, %c0_10] : memref<1x192x414xbf16, #tpu.memory_space<vmem>>, vector<1x160x414xbf16>
    %9 = vector.shape_cast %8 : vector<1x160x414xbf16> to vector<160x414xbf16>
    %c0_11 = arith.constant 0 : index
    %c0_12 = arith.constant 0 : index
    %10 = vector.load %arg4[%c0_11, %c0_12] : memref<414x256xbf16, #tpu.memory_space<vmem>>, vector<414x256xbf16>
    %cst_13 = arith.constant dense<0.000000e+00> : vector<160x256xf32>
    %11 = tpu.matmul %9, %10, %cst_13 {dimension_numbers = #tpu.dot_dimension_numbers<[1], [0], [0], [1], [0, 0, 1, 1], [], []>} : vector<160x414xbf16>, vector<414x256xbf16>, vector<160x256xf32> -> vector<160x256xf32>
    %12 = vector.extract_strided_slice %3 {offsets = [0, 0], sizes = [160, 256], strides = [1, 1]} : vector<160x768xf32> to vector<160x256xf32>
    %13 = vector.extract_strided_slice %7 {offsets = [0, 0], sizes = [160, 256], strides = [1, 1]} : vector<160x768xf32> to vector<160x256xf32>
    %14 = arith.addf %12, %13 : vector<160x256xf32>
    %15 = arith.addf %14, %11 : vector<160x256xf32>
    %cst_14 = arith.constant 0.000000e+00 : f32
    %16 = vector.broadcast %cst_14 : f32 to vector<160x256xf32>
    %17 = arith.maximumf %15, %16 : vector<160x256xf32>
    %18 = arith.truncf %17 : vector<160x256xf32> to vector<160x256xbf16>
    %c0_15 = arith.constant 0 : index
    %c0_16 = arith.constant 0 : index
    %c0_17 = arith.constant 0 : index
    %c0_18 = arith.constant 0 : index
    %19 = vector.load %arg5[%c0_15, %c0_16, %c0_17, %c0_18] : memref<1x3x160x256xbf16, #tpu.memory_space<vmem>>, vector<1x1x160x256xbf16>
    %20 = vector.shape_cast %19 : vector<1x1x160x256xbf16> to vector<160x256xbf16>
    %21 = vector.shape_cast %18 : vector<160x256xbf16> to vector<1x1x160x256xbf16>
    tpu.vector_store %arg5[%c0_15, %c0_16, %c0_17, %c0_18], %21 {strides = array<i32>} : memref<1x3x160x256xbf16, #tpu.memory_space<vmem>>, vector<1x1x160x256xbf16>,
    %22 = vector.extract_strided_slice %3 {offsets = [0, 256], sizes = [160, 256], strides = [1, 1]} : vector<160x768xf32> to vector<160x256xf32>
    %23 = vector.extract_strided_slice %7 {offsets = [0, 256], sizes = [160, 256], strides = [1, 1]} : vector<160x768xf32> to vector<160x256xf32>
    %24 = arith.addf %22, %23 : vector<160x256xf32>
    %cst_19 = arith.constant 0.000000e+00 : f32
    %25 = vector.broadcast %cst_19 : f32 to vector<160x256xf32>
    %26 = arith.maximumf %24, %25 : vector<160x256xf32>
    %27 = arith.truncf %26 : vector<160x256xf32> to vector<160x256xbf16>
    %c0_20 = arith.constant 0 : index
    %c1 = arith.constant 1 : index
    %c0_21 = arith.constant 0 : index
    %c0_22 = arith.constant 0 : index
    %28 = vector.load %arg5[%c0_20, %c1, %c0_21, %c0_22] : memref<1x3x160x256xbf16, #tpu.memory_space<vmem>>, vector<1x1x160x256xbf16>
    %29 = vector.shape_cast %28 : vector<1x1x160x256xbf16> to vector<160x256xbf16>
    %30 = vector.shape_cast %27 : vector<160x256xbf16> to vector<1x1x160x256xbf16>
    tpu.vector_store %arg5[%c0_20, %c1, %c0_21, %c0_22], %30 {strides = array<i32>} : memref<1x3x160x256xbf16, #tpu.memory_space<vmem>>, vector<1x1x160x256xbf16>,
    %31 = vector.extract_strided_slice %3 {offsets = [0, 512], sizes = [160, 256], strides = [1, 1]} : vector<160x768xf32> to vector<160x256xf32>
    %32 = vector.extract_strided_slice %7 {offsets = [0, 512], sizes = [160, 256], strides = [1, 1]} : vector<160x768xf32> to vector<160x256xf32>
    %33 = arith.addf %31, %32 : vector<160x256xf32>
    %cst_23 = arith.constant 0.000000e+00 : f32
    %34 = vector.broadcast %cst_23 : f32 to vector<160x256xf32>
    %35 = arith.maximumf %33, %34 : vector<160x256xf32>
    %36 = arith.truncf %35 : vector<160x256xf32> to vector<160x256xbf16>
    %c0_24 = arith.constant 0 : index
    %c2 = arith.constant 2 : index
    %c0_25 = arith.constant 0 : index
    %c0_26 = arith.constant 0 : index
    %37 = vector.load %arg5[%c0_24, %c2, %c0_25, %c0_26] : memref<1x3x160x256xbf16, #tpu.memory_space<vmem>>, vector<1x1x160x256xbf16>
    %38 = vector.shape_cast %37 : vector<1x1x160x256xbf16> to vector<160x256xbf16>
    %39 = vector.shape_cast %36 : vector<160x256xbf16> to vector<1x1x160x256xbf16>
    tpu.vector_store %arg5[%c0_24, %c2, %c0_25, %c0_26], %39 {strides = array<i32>} : memref<1x3x160x256xbf16, #tpu.memory_space<vmem>>, vector<1x1x160x256xbf16>,
    return
  }
  func.func @transform_0(%arg0: i32) -> (i32, i32, i32) {
    %c0_i32 = arith.constant 0 : i32
    %c0_i32_0 = arith.constant 0 : i32
    %c0_i32_1 = arith.constant 0 : i32
    return %arg0, %c0_i32, %c0_i32_0 : i32, i32, i32
  }
  func.func @transform_1(%arg0: i32) -> (i32, i32) {
    %c0_i32 = arith.constant 0 : i32
    %c0_i32_0 = arith.constant 0 : i32
    %c0_i32_1 = arith.constant 0 : i32
    return %c0_i32, %c0_i32_0 : i32, i32
  }
  func.func @transform_2(%arg0: i32) -> (i32, i32) {
    %c0_i32 = arith.constant 0 : i32
    %c0_i32_0 = arith.constant 0 : i32
    %c0_i32_1 = arith.constant 0 : i32
    return %c0_i32, %c0_i32_0 : i32, i32
  }
  func.func @transform_3(%arg0: i32) -> (i32, i32) {
    %c0_i32 = arith.constant 0 : i32
    %c0_i32_0 = arith.constant 0 : i32
    %c0_i32_1 = arith.constant 0 : i32
    return %c0_i32, %c0_i32_0 : i32, i32
  }
  func.func @transform_4(%arg0: i32) -> (i32, i32, i32, i32) {
    %c0_i32 = arith.constant 0 : i32
    %c0_i32_0 = arith.constant 0 : i32
    %c0_i32_1 = arith.constant 0 : i32
    %c0_i32_2 = arith.constant 0 : i32
    return %arg0, %c0_i32, %c0_i32_0, %c0_i32_1 : i32, i32, i32, i32
  }
}

</mosaic_0001>

<llo_original>
// kernel: model_forward.1
$region0: #{model_forward.1}
  #allocation0 [shape = 'u32[]', space=smem, size = 0x4, offset = 0x4, fixed_abs, tag = 'smem constant byte address 0x4 - core index']
  #allocation1 [shape = 'u32[72,128]{1,0:T(1,128)}', space=vmem, size = 0x9000, scoped, tag = 'internal scratch']
  %s0 = inlined_call_operand.vmem [shape: bf16[2,192,414], index: 0, kind: input, shape index: {}]
  %s1 = inlined_call_operand.vmem [shape: bf16[414,768], index: 1, kind: input, shape index: {}]
  %s2 = inlined_call_operand.vmem [shape: bf16[414,768], index: 2, kind: input, shape index: {}]
  %s3 = inlined_call_operand.vmem [shape: bf16[414,256], index: 3, kind: input, shape index: {}]
  %s4 = inlined_call_operand.vmem [shape: bf16[2,3,160,256], index: 4, kind: output, shape index: {}]
  %s5 = sld [smem:[#allocation0]]
  $region49: #{model_forward.1} parent=0
    _
  %s7 = ssub.s32 1, %s5
  %s8 = scalar_select 0, %s7, %s5
  loop: start=0, step=1, limit=4
  $region2: #{model_forward.1} parent=0 // loop_pre_header
    _
  $region3: #{model_forward.1} parent=0 // loop_header
    %s10 = sphi 0, %s14
    %p11 = scmp.ge.s32.totalorder %s10, 4
    %s20 = sphi 0, %s22
    %s23 = sphi 0, %s20
    %s24 = sphi 0, %s23
    %s40 = sphi 0, %s24
    %s44 = sphi 0, %s44
    %s46 = sphi 0, %s44
    %s47 = sphi 0, %s46
    %s61 = sphi 0, %s47
    %s65 = sphi 0, %s65
    %s67 = sphi 0, %s65
    %s68 = sphi 0, %s67
    %s82 = sphi 0, %s68
    %s86 = sphi 0, %s86
    %s88 = sphi 0, %s86
    %s89 = sphi 0, %s88
    %s103 = sphi 0, %s89
    %s109 = sphi 0, %s111
    %s112 = sphi 0, %s109
    %s113 = sphi 0, %s112
    %s129 = sphi 0, %s113
  $region4: #{model_forward.1} parent=0 // loop_header_branch
    %13 = sbr.rel (%p11) target = $region8
  $region5: #{model_forward.1} parent=0 // loop_body
    %s15 = ssub.s32 %s10, 1
    %s16 = ssub.s32 %s10, 2
    %s17 = sadd.s32 %s10, 1
    %s18 = ssub.s32 %s10, %s17
    %p19 = scmp.eq.s32.totalorder %s18, 0
    %s21 = sadd.s32 %s20, 1
    %s22 = scalar_select %p19, %s20, %s21
    %p25 = pneg %p19
    %p26 = scmp.eq.s32.totalorder %s10, 1
    %p27 = por %p25, %p26
    %p28 = scmp.ne.s32.totalorder %s20, %s23
    %p29 = scmp.eq.s32.totalorder %s10, 0
    %p30 = por %p28, %p29
    %p31 = scmp.ne.s32.totalorder %s20, %s23
    %p32 = scmp.eq.s32.totalorder %s15, 1
    %p33 = por %p31, %p32
    %p34 = scmp.ne.s32.totalorder %s23, %s24
    %p35 = scmp.eq.s32.totalorder %s15, 0
    %p36 = por %p34, %p35
    %p37 = scmp.ne.s32.totalorder %s23, %s24
    %p38 = scmp.eq.s32.totalorder %s16, 1
    %p39 = por %p37, %p38
    %p41 = scmp.ne.s32.totalorder %s24, %s40
    %p42 = scmp.eq.s32.totalorder %s16, 0
    %p43 = por %p41, %p42
    %s45 = sadd.s32 %s44, 1
    %p48 = scmp.eq.s32.totalorder %s10, 1
    %p49 = scmp.ne.s32.totalorder %s44, %s46
    %p50 = scmp.eq.s32.totalorder %s10, 0
    %p51 = por %p49, %p50
    %p52 = scmp.ne.s32.totalorder %s44, %s46
    %p53 = scmp.eq.s32.totalorder %s15, 1
    %p54 = por %p52, %p53
    %p55 = scmp.ne.s32.totalorder %s46, %s47
    %p56 = scmp.eq.s32.totalorder %s15, 0
    %p57 = por %p55, %p56
    %p58 = scmp.ne.s32.totalorder %s46, %s47
    %p59 = scmp.eq.s32.totalorder %s16, 1
    %p60 = por %p58, %p59
    %p62 = scmp.ne.s32.totalorder %s47, %s61
    %p63 = scmp.eq.s32.totalorder %s16, 0
    %p64 = por %p62, %p63
    %s66 = sadd.s32 %s65, 1
    %p69 = scmp.eq.s32.totalorder %s10, 1
    %p70 = scmp.ne.s32.totalorder %s65, %s67
    %p71 = scmp.eq.s32.totalorder %s10, 0
    %p72 = por %p70, %p71
    %p73 = scmp.ne.s32.totalorder %s65, %s67
    %p74 = scmp.eq.s32.totalorder %s15, 1
    %p75 = por %p73, %p74
    %p76 = scmp.ne.s32.totalorder %s67, %s68
    %p77 = scmp.eq.s32.totalorder %s15, 0
    %p78 = por %p76, %p77
    %p79 = scmp.ne.s32.totalorder %s67, %s68
    %p80 = scmp.eq.s32.totalorder %s16, 1
    %p81 = por %p79, %p80
    %p83 = scmp.ne.s32.totalorder %s68, %s82
    %p84 = scmp.eq.s32.totalorder %s16, 0
    %p85 = por %p83, %p84
    %s87 = sadd.s32 %s86, 1
    %p90 = scmp.eq.s32.totalorder %s10, 1
    %p91 = scmp.ne.s32.totalorder %s86, %s88
    %p92 = scmp.eq.s32.totalorder %s10, 0
    %p93 = por %p91, %p92
    %p94 = scmp.ne.s32.totalorder %s86, %s88
    %p95 = scmp.eq.s32.totalorder %s15, 1
    %p96 = por %p94, %p95
    %p97 = scmp.ne.s32.totalorder %s88, %s89
    %p98 = scmp.eq.s32.totalorder %s15, 0
    %p99 = por %p97, %p98
    %p100 = scmp.ne.s32.totalorder %s88, %s89
    %p101 = scmp.eq.s32.totalorder %s16, 1
    %p102 = por %p100, %p101
    %p104 = scmp.ne.s32.totalorder %s89, %s103
    %p105 = scmp.eq.s32.totalorder %s16, 0
    %p106 = por %p104, %p105
    %s107 = ssub.s32 %s10, %s17
    %p108 = scmp.eq.s32.totalorder %s107, 0
    %s110 = sadd.s32 %s109, 1
    %s111 = scalar_select %p108, %s109, %s110
    %p114 = pneg %p108
    %p115 = scmp.eq.s32.totalorder %s10, 1
    %p116 = por %p114, %p115
    %p117 = scmp.ne.s32.totalorder %s109, %s112
    %p118 = scmp.eq.s32.totalorder %s10, 0
    %p119 = por %p117, %p118
    %p120 = scmp.ne.s32.totalorder %s109, %s112
    %p121 = scmp.eq.s32.totalorder %s15, 1
    %p122 = por %p120, %p121
    %p123 = scmp.ne.s32.totalorder %s112, %s113
    %p124 = scmp.eq.s32.totalorder %s15, 0
    %p125 = por %p123, %p124
    %p126 = scmp.ne.s32.totalorder %s112, %s113
    %p127 = scmp.eq.s32.totalorder %s16, 1
    %p128 = por %p126, %p127
    %p130 = scmp.ne.s32.totalorder %s113, %s129
    %p131 = scmp.eq.s32.totalorder %s16, 0
    %p132 = por %p130, %p131
    %p133 = scmp.le.s32.totalorder 1, %s10
    %p134 = scmp.lt.s32.totalorder %s10, 3
    %p135 = pnand %p133, %p134
    %p136 = pneg %p135
    // Predicated region
    $region9: #{model_forward.1} parent=5 // pred_check
      _
    $region10: #{model_forward.1} parent=5 // pred_check_branch
      %138 = sbr.rel (%p135) target = $region12
    $region11: #{model_forward.1} parent=5 // pred_region
      %s139 = ssub.s32 %s10, 1
      // Predicated region
      $region13: #{model_forward.1} parent=11 // pred_check
        %p140 = pneg %p57
      $region14: #{model_forward.1} parent=11 // pred_check_branch
        %142 = sbr.rel (%p140) target = $region16
      $region15: #{model_forward.1} parent=11 // pred_region
        _
      $region16: #{model_forward.1} parent=11 // pred_fallthru
        _
      // Predicated region
      $region17: #{model_forward.1} parent=11 // pred_check
        %p143 = pneg %p78
      $region18: #{model_forward.1} parent=11 // pred_check_branch
        %145 = sbr.rel (%p143) target = $region20
      $region19: #{model_forward.1} parent=11 // pred_region
        _
      $region20: #{model_forward.1} parent=11 // pred_fallthru
        _
      // Predicated region
      $region21: #{model_forward.1} parent=11 // pred_check
        %p146 = pneg %p99
      $region22: #{model_forward.1} parent=11 // pred_check_branch
        %148 = sbr.rel (%p146) target = $region24
      $region23: #{model_forward.1} parent=11 // pred_region
        _
      $region24: #{model_forward.1} parent=11 // pred_fallthru
        _
    $region12: #{model_forward.1} parent=5 // pred_fallthru
      _
    %p149 = scmp.lt.s32.totalorder %s10, 2
    // Predicated region
    $region25: #{model_forward.1} parent=5 // pred_check
      %p150 = pneg %p149
    $region26: #{model_forward.1} parent=5 // pred_check_branch
      %152 = sbr.rel (%p150) target = $region28
    $region27: #{model_forward.1} parent=5 // pred_region
      // Predicated region
      $region29: #{model_forward.1} parent=27 // pred_check
        %p153 = pneg %p30
      $region30: #{model_forward.1} parent=27 // pred_check_branch
        %155 = sbr.rel (%p153) target = $region32
      $region31: #{model_forward.1} parent=27 // pred_region
        %p156 = scmp.lt.s32.totalorder %s10, 1
        %s157 = scalar_select %p156, %s10, 1
        %s158 = smul.addr %s157, 96
        %s159 = smul.addr %s158, 4
        %s160 = scalar_lea.vmem %s0, %s159
      $region32: #{model_forward.1} parent=27 // pred_fallthru
        _
    $region28: #{model_forward.1} parent=5 // pred_fallthru
      _
    %p161 = scmp.le.s32.totalorder 1, %s10
    %p162 = scmp.lt.s32.totalorder %s10, 3
    %p163 = pnand %p161, %p162
    %p164 = pneg %p163
    // Predicated region
    $region33: #{model_forward.1} parent=5 // pred_check
      _
    $region34: #{model_forward.1} parent=5 // pred_check_branch
      %166 = sbr.rel (%p163) target = $region36
    $region35: #{model_forward.1} parent=5 // pred_region
      %s167 = ssub.s32 %s10, 1
      %p168 = scmp.lt.s32.totalorder %s15, 1
      %s169 = scalar_select %p168, %s15, 1
      %s170 = smul.addr %s169, 96
      %s171 = smul.addr %s170, 4
      %s172 = scalar_lea.vmem %s0, %s171
      %p173 = pneg %p36
      %p174 = pneg %p33
      %p175 = pneg %p57
      %p176 = pneg %p54
      %p177 = pneg %p78
      %p178 = pneg %p75
      %p179 = pneg %p99
      %p180 = pneg %p96
      %p181 = pneg %p125
      %p182 = pneg %p122
      %p183 = scmp.lt.s32.totalorder %s15, 1
      %s184 = scalar_select %p183, %s15, 1
      %s185 = smul.addr %s184, 120
      %s186 = smul.addr %s185, 4
      %s187 = scalar_lea.vmem %s4, %s186
      %p188 = scmp.lt.s32.totalorder %s15, 1
      %s189 = scalar_select %p188, %s15, 1
      %s190 = smul.addr %s189, 96
      %s191 = smul.addr %s190, 4
      %s192 = scalar_lea.vmem %s0, %s191
      %p193 = scmp.lt.s32.totalorder %s15, 1
      %s194 = scalar_select %p193, %s15, 1
      %s195 = smul.addr %s194, 120
      %s196 = smul.addr %s195, 4
      %s197 = scalar_lea.vmem %s4, %s196
      %v199 = vld [vmem:[%s192 + $0x40] sm:$0xff]
      %v200 = vld [vmem:[%s192 + $0x48] sm:$0xff]
      %v201 = vld [vmem:[%s192 + $0x50] sm:$0xff]
      %v202 = vld [vmem:[%s192 + $0x58] sm:$0xff]
      %v203 = vld [vmem:[%s192 + $0x60] sm:$0xff]
      %v204 = vld [vmem:[%s192 + $0x68] sm:$0xff]
      %v205 = vld [vmem:[%s192 + $0x70] sm:$0xff]
      %v206 = vld [vmem:[%s192 + $0x78] sm:$0xff]
      %v207 = vld [vmem:[%s192 + $0x80] sm:$0xff]
      %v208 = vld [vmem:[%s192 + $0x88] sm:$0xff]
      %v209 = vld [vmem:[%s192 + $0x90] sm:$0xff]
      %v210 = vld [vmem:[%s192 + $0x98] sm:$0xff]
      %v211 = vld [vmem:[%s192 + $0xa0] sm:$0xff]
      %v212 = vld [vmem:[%s192 + $0xa8] sm:$0xff]
      %v213 = vld [vmem:[%s192 + $0xb0] sm:$0xff]
      %v214 = vld [vmem:[%s192 + $0xb8] sm:$0xff]
      %v215 = vld [vmem:[%s192 + $0xc0] sm:$0xff]
      %v216 = vld [vmem:[%s192 + $0xc8] sm:$0xff]
      %v217 = vld [vmem:[%s192 + $0xd0] sm:$0xff]
      %v218 = vld [vmem:[%s192 + $0xd8] sm:$0xff]
      %v219 = vld [vmem:[%s192 + $0xe0] sm:$0xff]
      %v220 = vld [vmem:[%s192 + $0xe8] sm:$0xff]
      %v221 = vld [vmem:[%s192 + $0xf0] sm:$0xff]
      %v222 = vld [vmem:[%s192 + $0xf8] sm:$0xff]
      %v223 = vld [vmem:[%s192 + $0x100] sm:$0xff]
      %v224 = vld [vmem:[%s192 + $0x108] sm:$0xff]
      %v225 = vld [vmem:[%s192 + $0x110] sm:$0xff]
      %v226 = vld [vmem:[%s192 + $0x118] sm:$0xff]
      %v227 = vld [vmem:[%s192 + $0x120] sm:$0xff]
      %v228 = vld [vmem:[%s192 + $0x128] sm:$0xff]
      %v229 = vld [vmem:[%s192 + $0x130] sm:$0xff]
      %v230 = vld [vmem:[%s192 + $0x138] sm:$0xff]
      %v231 = vld [vmem:[%s192 + $0x140] sm:$0xff]
      %v232 = vld [vmem:[%s192 + $0x148] sm:$0xff]
      %v233 = vld [vmem:[%s192 + $0x150] sm:$0xff]
      %v234 = vld [vmem:[%s192 + $0x158] sm:$0xff]
      %v235 = vld [vmem:[%s192 + $0x160] sm:$0xff]
      %v236 = vld [vmem:[%s192 + $0x168] sm:$0xff]
      %v237 = vld [vmem:[%s192 + $0x170] sm:$0xff]
      %v238 = vld [vmem:[%s192 + $0x178] sm:$0xff]
      %v239 = vld [vmem:[%s1] sm:$0xff]
      %v240 = vld [vmem:[%s1 + $0x8] sm:$0xff]
      %v241 = vld [vmem:[%s1 + $0x10] sm:$0xff]
      %v242 = vld [vmem:[%s1 + $0x18] sm:$0xff]
      %v243 = vld [vmem:[%s1 + $0x20] sm:$0xff]
      %v244 = vld [vmem:[%s1 + $0x28] sm:$0xff]
      %v245 = vld [vmem:[%s1 + $0x30] sm:$0xff]
      %v246 = vld [vmem:[%s1 + $0x38] sm:$0xff]
      %v247 = vld [vmem:[%s1 + $0x40] sm:$0xff]
      %v248 = vld [vmem:[%s1 + $0x48] sm:$0xff]
      %v249 = vld [vmem:[%s1 + $0x50] sm:$0xff]
      %v250 = vld [vmem:[%s1 + $0x58] sm:$0xff]
      %v251 = vld [vmem:[%s1 + $0x60] sm:$0xff]
      %v252 = vld [vmem:[%s1 + $0x68] sm:$0xff]
      %v253 = vld [vmem:[%s1 + $0x70] sm:$0xff]
      %v254 = vld [vmem:[%s1 + $0x78] sm:$0xff]
      %v255 = vld [vmem:[%s1 + $0x80] sm:$0xff]
      %v256 = vld [vmem:[%s1 + $0x88] sm:$0xff]
      %v257 = vld [vmem:[%s1 + $0x90] sm:$0xff]
      %v258 = vld [vmem:[%s1 + $0x98] sm:$0xff]
      %v259 = vld [vmem:[%s1 + $0xa0] sm:$0xff]
      %v260 = vld [vmem:[%s1 + $0xa8] sm:$0xff]
      %v261 = vld [vmem:[%s1 + $0xb0] sm:$0xff]
      %v262 = vld [vmem:[%s1 + $0xb8] sm:$0xff]
      %v263 = vld [vmem:[%s1 + $0xc0] sm:$0xff]
      %v264 = vld [vmem:[%s1 + $0xc8] sm:$0xff]
      %v265 = vld [vmem:[%s1 + $0xd0] sm:$0xff]
      %v266 = vld [vmem:[%s1 + $0xd8] sm:$0xff]
      %v267 = vld [vmem:[%s1 + $0xe0] sm:$0xff]
      %v268 = vld [vmem:[%s1 + $0xe8] sm:$0xff]
      %v269 = vld [vmem:[%s1 + $0xf0] sm:$0xff]
      %v270 = vld [vmem:[%s1 + $0xf8] sm:$0xff]
      %v271 = vld [vmem:[%s1 + $0x100] sm:$0xff]
      %v272 = vld [vmem:[%s1 + $0x108] sm:$0xff]
      %v273 = vld [vmem:[%s1 + $0x110] sm:$0xff]
      %v274 = vld [vmem:[%s1 + $0x118] sm:$0xff]
      %v275 = vld [vmem:[%s1 + $0x120] sm:$0xff]
      %v276 = vld [vmem:[%s1 + $0x128] sm:$0xff]
      %v277 = vld [vmem:[%s1 + $0x130] sm:$0xff]
      %v278 = vld [vmem:[%s1 + $0x138] sm:$0xff]
      %v279 = vld [vmem:[%s1 + $0x140] sm:$0xff]
      %v280 = vld [vmem:[%s1 + $0x148] sm:$0xff]
      %v281 = vld [vmem:[%s1 + $0x150] sm:$0xff]
      %v282 = vld [vmem:[%s1 + $0x158] sm:$0xff]
      %v283 = vld [vmem:[%s1 + $0x160] sm:$0xff]
      %v284 = vld [vmem:[%s1 + $0x168] sm:$0xff]
      %v285 = vld [vmem:[%s1 + $0x170] sm:$0xff]
      %v286 = vld [vmem:[%s1 + $0x178] sm:$0xff]
      %v287 = vld [vmem:[%s1 + $0x180] sm:$0xff]
      %v288 = vld [vmem:[%s1 + $0x188] sm:$0xff]
      %v289 = vld [vmem:[%s1 + $0x190] sm:$0xff]
      %v290 = vld [vmem:[%s1 + $0x198] sm:$0xff]
      %v291 = vld [vmem:[%s1 + $0x1a0] sm:$0xff]
      %v292 = vld [vmem:[%s1 + $0x1a8] sm:$0xff]
      %v293 = vld [vmem:[%s1 + $0x1b0] sm:$0xff]
      %v294 = vld [vmem:[%s1 + $0x1b8] sm:$0xff]
      %v295 = vld [vmem:[%s1 + $0x1c0] sm:$0xff]
      %v296 = vld [vmem:[%s1 + $0x1c8] sm:$0xff]
      %v297 = vld [vmem:[%s1 + $0x1d0] sm:$0xff]
      %v298 = vld [vmem:[%s1 + $0x1d8] sm:$0xff]
      %v299 = vld [vmem:[%s1 + $0x1e0] sm:$0xff]
      %v300 = vld [vmem:[%s1 + $0x1e8] sm:$0xff]
      %v301 = vld [vmem:[%s1 + $0x1f0] sm:$0xff]
      %v302 = vld [vmem:[%s1 + $0x1f8] sm:$0xff]
      %v303 = vld [vmem:[%s1 + $0x200] sm:$0xff]
      %v304 = vld [vmem:[%s1 + $0x208] sm:$0xff]
      %v305 = vld [vmem:[%s1 + $0x210] sm:$0xff]
      %v306 = vld [vmem:[%s1 + $0x218] sm:$0xff]
      %v307 = vld [vmem:[%s1 + $0x220] sm:$0xff]
      %v308 = vld [vmem:[%s1 + $0x228] sm:$0xff]
      %v309 = vld [vmem:[%s1 + $0x230] sm:$0xff]
      %v310 = vld [vmem:[%s1 + $0x238] sm:$0xff]
      %v311 = vld [vmem:[%s1 + $0x240] sm:$0xff]
      %v312 = vld [vmem:[%s1 + $0x248] sm:$0xff]
      %v313 = vld [vmem:[%s1 + $0x250] sm:$0xff]
      %v314 = vld [vmem:[%s1 + $0x258] sm:$0xff]
      %v315 = vld [vmem:[%s1 + $0x260] sm:$0xff]
      %v316 = vld [vmem:[%s1 + $0x268] sm:$0xff]
      %v317 = vld [vmem:[%s1 + $0x270] sm:$0xff]
      %v318 = vld [vmem:[%s1 + $0x278] sm:$0xff]
      %v319 = vld [vmem:[%s1 + $0x280] sm:$0xff]
      %v320 = vld [vmem:[%s1 + $0x288] sm:$0xff]
      %v321 = vld [vmem:[%s1 + $0x290] sm:$0xff]
      %v322 = vld [vmem:[%s1 + $0x298] sm:$0xff]
      %v323 = vld [vmem:[%s1 + $0x2a0] sm:$0xff]
      %v324 = vld [vmem:[%s1 + $0x2a8] sm:$0xff]
      %v325 = vld [vmem:[%s1 + $0x2b0] sm:$0xff]
      %v326 = vld [vmem:[%s1 + $0x2b8] sm:$0xff]
      %v327 = vld [vmem:[%s1 + $0x2c0] sm:$0xff]
      %v328 = vld [vmem:[%s1 + $0x2c8] sm:$0xff]
      %v329 = vld [vmem:[%s1 + $0x2d0] sm:$0xff]
      %v330 = vld [vmem:[%s1 + $0x2d8] sm:$0xff]
      %v331 = vld [vmem:[%s1 + $0x2e0] sm:$0xff]
      %v332 = vld [vmem:[%s1 + $0x2e8] sm:$0xff]
      %v333 = vld [vmem:[%s1 + $0x2f0] sm:$0xff]
      %v334 = vld [vmem:[%s1 + $0x2f8] sm:$0xff]
      %v335 = vld [vmem:[%s1 + $0x300] sm:$0xff]
      %v336 = vld [vmem:[%s1 + $0x308] sm:$0xff]
      %v337 = vld [vmem:[%s1 + $0x310] sm:$0xff]
      %v338 = vld [vmem:[%s1 + $0x318] sm:$0xff]
      %v339 = vld [vmem:[%s1 + $0x320] sm:$0xff]
      %v340 = vld [vmem:[%s1 + $0x328] sm:$0xff]
      %v341 = vld [vmem:[%s1 + $0x330] sm:$0xff]
      %v342 = vld [vmem:[%s1 + $0x338] sm:$0xff]
      %v343 = vld [vmem:[%s1 + $0x340] sm:$0xff]
      %v344 = vld [vmem:[%s1 + $0x348] sm:$0xff]
      %v345 = vld [vmem:[%s1 + $0x350] sm:$0xff]
      %v346 = vld [vmem:[%s1 + $0x358] sm:$0xff]
      %v347 = vld [vmem:[%s1 + $0x360] sm:$0xff]
      %v348 = vld [vmem:[%s1 + $0x368] sm:$0xff]
      %v349 = vld [vmem:[%s1 + $0x370] sm:$0xff]
      %v350 = vld [vmem:[%s1 + $0x378] sm:$0xff]
      %v351 = vld [vmem:[%s1 + $0x380] sm:$0xff]
      %v352 = vld [vmem:[%s1 + $0x388] sm:$0xff]
      %v353 = vld [vmem:[%s1 + $0x390] sm:$0xff]
      %v354 = vld [vmem:[%s1 + $0x398] sm:$0xff]
      %v355 = vld [vmem:[%s1 + $0x3a0] sm:$0xff]
      %v356 = vld [vmem:[%s1 + $0x3a8] sm:$0xff]
      %v357 = vld [vmem:[%s1 + $0x3b0] sm:$0xff]
      %v358 = vld [vmem:[%s1 + $0x3b8] sm:$0xff]
      %v359 = vld [vmem:[%s1 + $0x3c0] sm:$0xff]
      %v360 = vld [vmem:[%s1 + $0x3c8] sm:$0xff]
      %v361 = vld [vmem:[%s1 + $0x3d0] sm:$0xff]
      %v362 = vld [vmem:[%s1 + $0x3d8] sm:$0xff]
      %v363 = vld [vmem:[%s1 + $0x3e0] sm:$0xff]
      %v364 = vld [vmem:[%s1 + $0x3e8] sm:$0xff]
      %v365 = vld [vmem:[%s1 + $0x3f0] sm:$0xff]
      %v366 = vld [vmem:[%s1 + $0x3f8] sm:$0xff]
      %v367 = vld [vmem:[%s1 + $0x400] sm:$0xff]
      %v368 = vld [vmem:[%s1 + $0x408] sm:$0xff]
      %v369 = vld [vmem:[%s1 + $0x410] sm:$0xff]
      %v370 = vld [vmem:[%s1 + $0x418] sm:$0xff]
      %v371 = vld [vmem:[%s1 + $0x420] sm:$0xff]
      %v372 = vld [vmem:[%s1 + $0x428] sm:$0xff]
      %v373 = vld [vmem:[%s1 + $0x430] sm:$0xff]
      %v374 = vld [vmem:[%s1 + $0x438] sm:$0xff]
      %v375 = vld [vmem:[%s1 + $0x440] sm:$0xff]
      %v376 = vld [vmem:[%s1 + $0x448] sm:$0xff]
      %v377 = vld [vmem:[%s1 + $0x450] sm:$0xff]
      %v378 = vld [vmem:[%s1 + $0x458] sm:$0xff]
      %v379 = vld [vmem:[%s1 + $0x460] sm:$0xff]
      %v380 = vld [vmem:[%s1 + $0x468] sm:$0xff]
      %v381 = vld [vmem:[%s1 + $0x470] sm:$0xff]
      %v382 = vld [vmem:[%s1 + $0x478] sm:$0xff]
      %v383 = vld [vmem:[%s1 + $0x480] sm:$0xff]
      %v384 = vld [vmem:[%s1 + $0x488] sm:$0xff]
      %v385 = vld [vmem:[%s1 + $0x490] sm:$0xff]
      %v386 = vld [vmem:[%s1 + $0x498] sm:$0xff]
      %v387 = vld [vmem:[%s1 + $0x4a0] sm:$0xff]
      %v388 = vld [vmem:[%s1 + $0x4a8] sm:$0xff]
      %v389 = vld [vmem:[%s1 + $0x4b0] sm:$0xff]
      %v390 = vld [vmem:[%s1 + $0x4b8] sm:$0xff]
      %v391 = vld [vmem:[%s1 + $0x4c0] sm:$0xff]
      %v392 = vld [vmem:[%s1 + $0x4c8] sm:$0x77]
      %v393 = vld [vmem:[%s1 + $0x4d0] sm:$0x77]
      %v394 = vld [vmem:[%s1 + $0x4d8] sm:$0x77]
      %v435 = vunpack.c.l.b16 %v199
      %v436 = vunpack.c.h.b16 %v199
      %v437 = vunpack.c.l.b16 %v200
      %v438 = vunpack.c.h.b16 %v200
      %v439 = vunpack.c.l.b16 %v201
      %v440 = vunpack.c.h.b16 %v201
      %v441 = vunpack.c.l.b16 %v202
      %v442 = vunpack.c.h.b16 %v202
      %v443 = vunpack.c.l.b16 %v203
      %v444 = vunpack.c.h.b16 %v203
      %v445 = vunpack.c.l.b16 %v204
      %v446 = vunpack.c.h.b16 %v204
      %v447 = vunpack.c.l.b16 %v205
      %v448 = vunpack.c.h.b16 %v205
      %v449 = vunpack.c.l.b16 %v206
      %v450 = vunpack.c.h.b16 %v206
      %v451 = vunpack.c.l.b16 %v207
      %v452 = vunpack.c.h.b16 %v207
      %v453 = vunpack.c.l.b16 %v208
      %v454 = vunpack.c.h.b16 %v208
      %v455 = vunpack.c.l.b16 %v209
      %v456 = vunpack.c.h.b16 %v209
      %v457 = vunpack.c.l.b16 %v210
      %v458 = vunpack.c.h.b16 %v210
      %v459 = vunpack.c.l.b16 %v211
      %v460 = vunpack.c.h.b16 %v211
      %v461 = vunpack.c.l.b16 %v212
      %v462 = vunpack.c.h.b16 %v212
      %v463 = vunpack.c.l.b16 %v213
      %v464 = vunpack.c.h.b16 %v213
      %v465 = vunpack.c.l.b16 %v214
      %v466 = vunpack.c.h.b16 %v214
      %v467 = vunpack.c.l.b16 %v215
      %v468 = vunpack.c.h.b16 %v215
      %v469 = vunpack.c.l.b16 %v216
      %v470 = vunpack.c.h.b16 %v216
      %v471 = vunpack.c.l.b16 %v217
      %v472 = vunpack.c.h.b16 %v217
      %v473 = vunpack.c.l.b16 %v218
      %v474 = vunpack.c.h.b16 %v218
      %v475 = vunpack.c.l.b16 %v219
      %v476 = vunpack.c.h.b16 %v219
      %v477 = vunpack.c.l.b16 %v220
      %v478 = vunpack.c.h.b16 %v220
      %v479 = vunpack.c.l.b16 %v221
      %v480 = vunpack.c.h.b16 %v221
      %v481 = vunpack.c.l.b16 %v222
      %v482 = vunpack.c.h.b16 %v222
      %v483 = vunpack.c.l.b16 %v223
      %v484 = vunpack.c.h.b16 %v223
      %v485 = vunpack.c.l.b16 %v224
      %v486 = vunpack.c.h.b16 %v224
      %v487 = vunpack.c.l.b16 %v225
      %v488 = vunpack.c.h.b16 %v225
      %v489 = vunpack.c.l.b16 %v226
      %v490 = vunpack.c.h.b16 %v226
      %v491 = vunpack.c.l.b16 %v227
      %v492 = vunpack.c.h.b16 %v227
      %v493 = vunpack.c.l.b16 %v228
      %v494 = vunpack.c.h.b16 %v228
      %v495 = vunpack.c.l.b16 %v229
      %v496 = vunpack.c.h.b16 %v229
      %v497 = vunpack.c.l.b16 %v230
      %v498 = vunpack.c.h.b16 %v230
      %v499 = vunpack.c.l.b16 %v231
      %v500 = vunpack.c.h.b16 %v231
      %v501 = vunpack.c.l.b16 %v232
      %v502 = vunpack.c.h.b16 %v232
      %v503 = vunpack.c.l.b16 %v233
      %v504 = vunpack.c.h.b16 %v233
      %v505 = vunpack.c.l.b16 %v234
      %v506 = vunpack.c.h.b16 %v234
      %v507 = vunpack.c.l.b16 %v235
      %v508 = vunpack.c.h.b16 %v235
      %v509 = vunpack.c.l.b16 %v236
      %v510 = vunpack.c.h.b16 %v236
      %v511 = vunpack.c.l.b16 %v237
      %v512 = vunpack.c.h.b16 %v237
      %v513 = vunpack.c.l.b16 %v238
      %v514 = vunpack.c.h.b16 %v238
      %v515 = vpack.c.b16 %v439, %v435
      %v516 = vpack.c.b16 %v440, %v436
      %v517 = vpack.c.b16 %v441, %v437
      %v518 = vpack.c.b16 %v442, %v438
      %v519 = vpack.c.b16 %v447, %v443
      %v520 = vpack.c.b16 %v448, %v444
      %v521 = vpack.c.b16 %v449, %v445
      %v522 = vpack.c.b16 %v450, %v446
      %v523 = vpack.c.b16 %v455, %v451
      %v524 = vpack.c.b16 %v456, %v452
      %v525 = vpack.c.b16 %v457, %v453
      %v526 = vpack.c.b16 %v458, %v454
      %v527 = vpack.c.b16 %v463, %v459
      %v528 = vpack.c.b16 %v464, %v460
      %v529 = vpack.c.b16 %v465, %v461
      %v530 = vpack.c.b16 %v466, %v462
      %v531 = vpack.c.b16 %v471, %v467
      %v532 = vpack.c.b16 %v472, %v468
      %v533 = vpack.c.b16 %v473, %v469
      %v534 = vpack.c.b16 %v474, %v470
      %v535 = vpack.c.b16 %v479, %v475
      %v536 = vpack.c.b16 %v480, %v476
      %v537 = vpack.c.b16 %v481, %v477
      %v538 = vpack.c.b16 %v482, %v478
      %v539 = vpack.c.b16 %v487, %v483
      %v540 = vpack.c.b16 %v488, %v484
      %v541 = vpack.c.b16 %v489, %v485
      %v542 = vpack.c.b16 %v490, %v486
      %v543 = vpack.c.b16 %v495, %v491
      %v544 = vpack.c.b16 %v496, %v492
      %v545 = vpack.c.b16 %v497, %v493
      %v546 = vpack.c.b16 %v498, %v494
      %v547 = vpack.c.b16 %v503, %v499
      %v548 = vpack.c.b16 %v504, %v500
      %v549 = vpack.c.b16 %v505, %v501
      %v550 = vpack.c.b16 %v506, %v502
      %v551 = vpack.c.b16 %v511, %v507
      %v552 = vpack.c.b16 %v512, %v508
      %v553 = vpack.c.b16 %v513, %v509
      %v554 = vpack.c.b16 %v514, %v510
      %v741 = vunpack.c.l.b16 %v239
      %v742 = vunpack.c.h.b16 %v239
      %v743 = vunpack.c.l.b16 %v240
      %v744 = vunpack.c.h.b16 %v240
      %v745 = vunpack.c.l.b16 %v241
      %v746 = vunpack.c.h.b16 %v241
      %v747 = vunpack.c.l.b16 %v242
      %v748 = vunpack.c.h.b16 %v242
      %v749 = vunpack.c.l.b16 %v243
      %v750 = vunpack.c.h.b16 %v243
      %v751 = vunpack.c.l.b16 %v244
      %v752 = vunpack.c.h.b16 %v244
      %v753 = vunpack.c.l.b16 %v245
      %v754 = vunpack.c.h.b16 %v245
      %v755 = vunpack.c.l.b16 %v246
      %v756 = vunpack.c.h.b16 %v246
      %v757 = vunpack.c.l.b16 %v247
      %v758 = vunpack.c.h.b16 %v247
      %v759 = vunpack.c.l.b16 %v248
      %v760 = vunpack.c.h.b16 %v248
      %v761 = vunpack.c.l.b16 %v249
      %v762 = vunpack.c.h.b16 %v249
      %v763 = vunpack.c.l.b16 %v250
      %v764 = vunpack.c.h.b16 %v250
      %v765 = vunpack.c.l.b16 %v251
      %v766 = vunpack.c.h.b16 %v251
      %v767 = vunpack.c.l.b16 %v252
      %v768 = vunpack.c.h.b16 %v252
      %v769 = vunpack.c.l.b16 %v253
      %v770 = vunpack.c.h.b16 %v253
      %v771 = vunpack.c.l.b16 %v254
      %v772 = vunpack.c.h.b16 %v254
      %v773 = vunpack.c.l.b16 %v255
      %v774 = vunpack.c.h.b16 %v255
      %v775 = vunpack.c.l.b16 %v256
      %v776 = vunpack.c.h.b16 %v256
      %v777 = vunpack.c.l.b16 %v257
      %v778 = vunpack.c.h.b16 %v257
      %v779 = vunpack.c.l.b16 %v258
      %v780 = vunpack.c.h.b16 %v258
      %v781 = vunpack.c.l.b16 %v259
      %v782 = vunpack.c.h.b16 %v259
      %v783 = vunpack.c.l.b16 %v260
      %v784 = vunpack.c.h.b16 %v260
      %v785 = vunpack.c.l.b16 %v261
      %v786 = vunpack.c.h.b16 %v261
      %v787 = vunpack.c.l.b16 %v262
      %v788 = vunpack.c.h.b16 %v262
      %v789 = vunpack.c.l.b16 %v263
      %v790 = vunpack.c.h.b16 %v263
      %v791 = vunpack.c.l.b16 %v264
      %v792 = vunpack.c.h.b16 %v264
      %v793 = vunpack.c.l.b16 %v265
      %v794 = vunpack.c.h.b16 %v265
      %v795 = vunpack.c.l.b16 %v266
      %v796 = vunpack.c.h.b16 %v266
      %v797 = vunpack.c.l.b16 %v267
      %v798 = vunpack.c.h.b16 %v267
      %v799 = vunpack.c.l.b16 %v268
      %v800 = vunpack.c.h.b16 %v268
      %v801 = vunpack.c.l.b16 %v269
      %v802 = vunpack.c.h.b16 %v269
      %v803 = vunpack.c.l.b16 %v270
      %v804 = vunpack.c.h.b16 %v270
      %v805 = vunpack.c.l.b16 %v271
      %v806 = vunpack.c.h.b16 %v271
      %v807 = vunpack.c.l.b16 %v272
      %v808 = vunpack.c.h.b16 %v272
      %v809 = vunpack.c.l.b16 %v273
      %v810 = vunpack.c.h.b16 %v273
      %v811 = vunpack.c.l.b16 %v274
      %v812 = vunpack.c.h.b16 %v274
      %v813 = vunpack.c.l.b16 %v275
      %v814 = vunpack.c.h.b16 %v275
      %v815 = vunpack.c.l.b16 %v276
      %v816 = vunpack.c.h.b16 %v276
      %v817 = vunpack.c.l.b16 %v277
      %v818 = vunpack.c.h.b16 %v277
      %v819 = vunpack.c.l.b16 %v278
      %v820 = vunpack.c.h.b16 %v278
      %v821 = vunpack.c.l.b16 %v279
      %v822 = vunpack.c.h.b16 %v279
      %v823 = vunpack.c.l.b16 %v280
      %v824 = vunpack.c.h.b16 %v280
      %v825 = vunpack.c.l.b16 %v281
      %v826 = vunpack.c.h.b16 %v281
      %v827 = vunpack.c.l.b16 %v282
      %v828 = vunpack.c.h.b16 %v282
      %v829 = vunpack.c.l.b16 %v283
      %v830 = vunpack.c.h.b16 %v283
      %v831 = vunpack.c.l.b16 %v284
      %v832 = vunpack.c.h.b16 %v284
      %v833 = vunpack.c.l.b16 %v285
      %v834 = vunpack.c.h.b16 %v285
      %v835 = vunpack.c.l.b16 %v286
      %v836 = vunpack.c.h.b16 %v286
      %v837 = vunpack.c.l.b16 %v287
      %v838 = vunpack.c.h.b16 %v287
      %v839 = vunpack.c.l.b16 %v288
      %v840 = vunpack.c.h.b16 %v288
      %v841 = vunpack.c.l.b16 %v289
      %v842 = vunpack.c.h.b16 %v289
      %v843 = vunpack.c.l.b16 %v290
      %v844 = vunpack.c.h.b16 %v290
      %v845 = vunpack.c.l.b16 %v291
      %v846 = vunpack.c.h.b16 %v291
      %v847 = vunpack.c.l.b16 %v292
      %v848 = vunpack.c.h.b16 %v292
      %v849 = vunpack.c.l.b16 %v293
      %v850 = vunpack.c.h.b16 %v293
      %v851 = vunpack.c.l.b16 %v294
      %v852 = vunpack.c.h.b16 %v294
      %v853 = vunpack.c.l.b16 %v295
      %v854 = vunpack.c.h.b16 %v295
      %v855 = vunpack.c.l.b16 %v296
      %v856 = vunpack.c.h.b16 %v296
      %v857 = vunpack.c.l.b16 %v297
      %v858 = vunpack.c.h.b16 %v297
      %v859 = vunpack.c.l.b16 %v298
      %v860 = vunpack.c.h.b16 %v298
      %v861 = vunpack.c.l.b16 %v299
      %v862 = vunpack.c.h.b16 %v299
      %v863 = vunpack.c.l.b16 %v300
      %v864 = vunpack.c.h.b16 %v300
      %v865 = vunpack.c.l.b16 %v301
      %v866 = vunpack.c.h.b16 %v301
      %v867 = vunpack.c.l.b16 %v302
      %v868 = vunpack.c.h.b16 %v302
      %v869 = vunpack.c.l.b16 %v303
      %v870 = vunpack.c.h.b16 %v303
      %v871 = vunpack.c.l.b16 %v304
      %v872 = vunpack.c.h.b16 %v304
      %v873 = vunpack.c.l.b16 %v305
      %v874 = vunpack.c.h.b16 %v305
      %v875 = vunpack.c.l.b16 %v306
      %v876 = vunpack.c.h.b16 %v306
      %v877 = vunpack.c.l.b16 %v307
      %v878 = vunpack.c.h.b16 %v307
      %v879 = vunpack.c.l.b16 %v308
      %v880 = vunpack.c.h.b16 %v308
      %v881 = vunpack.c.l.b16 %v309
      %v882 = vunpack.c.h.b16 %v309
      %v883 = vunpack.c.l.b16 %v310
      %v884 = vunpack.c.h.b16 %v310
      %v885 = vunpack.c.l.b16 %v311
      %v886 = vunpack.c.h.b16 %v311
      %v887 = vunpack.c.l.b16 %v312
      %v888 = vunpack.c.h.b16 %v312
      %v889 = vunpack.c.l.b16 %v313
      %v890 = vunpack.c.h.b16 %v313
      %v891 = vunpack.c.l.b16 %v314
      %v892 = vunpack.c.h.b16 %v314
      %v893 = vunpack.c.l.b16 %v315
      %v894 = vunpack.c.h.b16 %v315
      %v895 = vunpack.c.l.b16 %v316
      %v896 = vunpack.c.h.b16 %v316
      %v897 = vunpack.c.l.b16 %v317
      %v898 = vunpack.c.h.b16 %v317
      %v899 = vunpack.c.l.b16 %v318
      %v900 = vunpack.c.h.b16 %v318
      %v901 = vunpack.c.l.b16 %v319
      %v902 = vunpack.c.h.b16 %v319
      %v903 = vunpack.c.l.b16 %v320
      %v904 = vunpack.c.h.b16 %v320
      %v905 = vunpack.c.l.b16 %v321
      %v906 = vunpack.c.h.b16 %v321
      %v907 = vunpack.c.l.b16 %v322
      %v908 = vunpack.c.h.b16 %v322
      %v909 = vunpack.c.l.b16 %v323
      %v910 = vunpack.c.h.b16 %v323
      %v911 = vunpack.c.l.b16 %v324
      %v912 = vunpack.c.h.b16 %v324
      %v913 = vunpack.c.l.b16 %v325
      %v914 = vunpack.c.h.b16 %v325
      %v915 = vunpack.c.l.b16 %v326
      %v916 = vunpack.c.h.b16 %v326
      %v917 = vunpack.c.l.b16 %v327
      %v918 = vunpack.c.h.b16 %v327
      %v919 = vunpack.c.l.b16 %v328
      %v920 = vunpack.c.h.b16 %v328
      %v921 = vunpack.c.l.b16 %v329
      %v922 = vunpack.c.h.b16 %v329
      %v923 = vunpack.c.l.b16 %v330
      %v924 = vunpack.c.h.b16 %v330
      %v925 = vunpack.c.l.b16 %v331
      %v926 = vunpack.c.h.b16 %v331
      %v927 = vunpack.c.l.b16 %v332
      %v928 = vunpack.c.h.b16 %v332
      %v929 = vunpack.c.l.b16 %v333
      %v930 = vunpack.c.h.b16 %v333
      %v931 = vunpack.c.l.b16 %v334
      %v932 = vunpack.c.h.b16 %v334
      %v933 = vunpack.c.l.b16 %v335
      %v934 = vunpack.c.h.b16 %v335
      %v935 = vunpack.c.l.b16 %v336
      %v936 = vunpack.c.h.b16 %v336
      %v937 = vunpack.c.l.b16 %v337
      %v938 = vunpack.c.h.b16 %v337
      %v939 = vunpack.c.l.b16 %v338
      %v940 = vunpack.c.h.b16 %v338
      %v941 = vunpack.c.l.b16 %v339
      %v942 = vunpack.c.h.b16 %v339
      %v943 = vunpack.c.l.b16 %v340
      %v944 = vunpack.c.h.b16 %v340
      %v945 = vunpack.c.l.b16 %v341
      %v946 = vunpack.c.h.b16 %v341
      %v947 = vunpack.c.l.b16 %v342
      %v948 = vunpack.c.h.b16 %v342
      %v949 = vunpack.c.l.b16 %v343
      %v950 = vunpack.c.h.b16 %v343
      %v951 = vunpack.c.l.b16 %v344
      %v952 = vunpack.c.h.b16 %v344
      %v953 = vunpack.c.l.b16 %v345
      %v954 = vunpack.c.h.b16 %v345
      %v955 = vunpack.c.l.b16 %v346
      %v956 = vunpack.c.h.b16 %v346
      %v957 = vunpack.c.l.b16 %v347
      %v958 = vunpack.c.h.b16 %v347
      %v959 = vunpack.c.l.b16 %v348
      %v960 = vunpack.c.h.b16 %v348
      %v961 = vunpack.c.l.b16 %v349
      %v962 = vunpack.c.h.b16 %v349
      %v963 = vunpack.c.l.b16 %v350
      %v964 = vunpack.c.h.b16 %v350
      %v965 = vunpack.c.l.b16 %v351
      %v966 = vunpack.c.h.b16 %v351
      %v967 = vunpack.c.l.b16 %v352
      %v968 = vunpack.c.h.b16 %v352
      %v969 = vunpack.c.l.b16 %v353
      %v970 = vunpack.c.h.b16 %v353
      %v971 = vunpack.c.l.b16 %v354
      %v972 = vunpack.c.h.b16 %v354
      %v973 = vunpack.c.l.b16 %v355
      %v974 = vunpack.c.h.b16 %v355
      %v975 = vunpack.c.l.b16 %v356
      %v976 = vunpack.c.h.b16 %v356
      %v977 = vunpack.c.l.b16 %v357
      %v978 = vunpack.c.h.b16 %v357
      %v979 = vunpack.c.l.b16 %v358
      %v980 = vunpack.c.h.b16 %v358
      %v981 = vunpack.c.l.b16 %v359
      %v982 = vunpack.c.h.b16 %v359
      %v983 = vunpack.c.l.b16 %v360
      %v984 = vunpack.c.h.b16 %v360
      %v985 = vunpack.c.l.b16 %v361
      %v986 = vunpack.c.h.b16 %v361
      %v987 = vunpack.c.l.b16 %v362
      %v988 = vunpack.c.h.b16 %v362
      %v989 = vunpack.c.l.b16 %v363
      %v990 = vunpack.c.h.b16 %v363
      %v991 = vunpack.c.l.b16 %v364
      %v992 = vunpack.c.h.b16 %v364
      %v993 = vunpack.c.l.b16 %v365
      %v994 = vunpack.c.h.b16 %v365
      %v995 = vunpack.c.l.b16 %v366
      %v996 = vunpack.c.h.b16 %v366
      %v997 = vunpack.c.l.b16 %v367
      %v998 = vunpack.c.h.b16 %v367
      %v999 = vunpack.c.l.b16 %v368
      %v1000 = vunpack.c.h.b16 %v368
      %v1001 = vunpack.c.l.b16 %v369
      %v1002 = vunpack.c.h.b16 %v369
      %v1003 = vunpack.c.l.b16 %v370
      %v1004 = vunpack.c.h.b16 %v370
      %v1005 = vunpack.c.l.b16 %v371
      %v1006 = vunpack.c.h.b16 %v371
      %v1007 = vunpack.c.l.b16 %v372
      %v1008 = vunpack.c.h.b16 %v372
      %v1009 = vunpack.c.l.b16 %v373
      %v1010 = vunpack.c.h.b16 %v373
      %v1011 = vunpack.c.l.b16 %v374
      %v1012 = vunpack.c.h.b16 %v374
      %v1013 = vunpack.c.l.b16 %v375
      %v1014 = vunpack.c.h.b16 %v375
      %v1015 = vunpack.c.l.b16 %v376
      %v1016 = vunpack.c.h.b16 %v376
      %v1017 = vunpack.c.l.b16 %v377
      %v1018 = vunpack.c.h.b16 %v377
      %v1019 = vunpack.c.l.b16 %v378
      %v1020 = vunpack.c.h.b16 %v378
      %v1021 = vunpack.c.l.b16 %v379
      %v1022 = vunpack.c.h.b16 %v379
      %v1023 = vunpack.c.l.b16 %v380
      %v1024 = vunpack.c.h.b16 %v380
      %v1025 = vunpack.c.l.b16 %v381
      %v1026 = vunpack.c.h.b16 %v381
      %v1027 = vunpack.c.l.b16 %v382
      %v1028 = vunpack.c.h.b16 %v382
      %v1029 = vunpack.c.l.b16 %v383
      %v1030 = vunpack.c.h.b16 %v383
      %v1031 = vunpack.c.l.b16 %v384
      %v1032 = vunpack.c.h.b16 %v384
      %v1033 = vunpack.c.l.b16 %v385
      %v1034 = vunpack.c.h.b16 %v385
      %v1035 = vunpack.c.l.b16 %v386
      %v1036 = vunpack.c.h.b16 %v386
      %v1037 = vunpack.c.l.b16 %v387
      %v1038 = vunpack.c.h.b16 %v387
      %v1039 = vunpack.c.l.b16 %v388
      %v1040 = vunpack.c.h.b16 %v388
      %v1041 = vunpack.c.l.b16 %v389
      %v1042 = vunpack.c.h.b16 %v389
      %v1043 = vunpack.c.l.b16 %v390
      %v1044 = vunpack.c.h.b16 %v390
      %v1045 = vunpack.c.l.b16 %v391
      %v1046 = vunpack.c.h.b16 %v391
      %v1047 = vunpack.c.l.b16 %v392
      %v1048 = vunpack.c.h.b16 %v392
      %v1049 = vunpack.c.l.b16 %v393
      %v1050 = vunpack.c.h.b16 %v393
      %v1051 = vunpack.c.l.b16 %v394
      %v1052 = vunpack.c.h.b16 %v394
      %v1053 = vpack.c.b16 %v747, %v741
      %v1054 = vpack.c.b16 %v748, %v742
      %v1055 = vpack.c.b16 %v749, %v743
      %v1056 = vpack.c.b16 %v750, %v744
      %v1057 = vpack.c.b16 %v751, %v745
      %v1058 = vpack.c.b16 %v752, %v746
      %v1059 = vpack.c.b16 %v759, %v753
      %v1060 = vpack.c.b16 %v760, %v754
      %v1061 = vpack.c.b16 %v761, %v755
      %v1062 = vpack.c.b16 %v762, %v756
      %v1063 = vpack.c.b16 %v763, %v757
      %v1064 = vpack.c.b16 %v764, %v758
      %v1065 = vpack.c.b16 %v771, %v765
      %v1066 = vpack.c.b16 %v772, %v766
      %v1067 = vpack.c.b16 %v773, %v767
      %v1068 = vpack.c.b16 %v774, %v768
      %v1069 = vpack.c.b16 %v775, %v769
      %v1070 = vpack.c.b16 %v776, %v770
      %v1071 = vpack.c.b16 %v783, %v777
      %v1072 = vpack.c.b16 %v784, %v778
      %v1073 = vpack.c.b16 %v785, %v779
      %v1074 = vpack.c.b16 %v786, %v780
      %v1075 = vpack.c.b16 %v787, %v781
      %v1076 = vpack.c.b16 %v788, %v782
      %v1077 = vpack.c.b16 %v795, %v789
      %v1078 = vpack.c.b16 %v796, %v790
      %v1079 = vpack.c.b16 %v797, %v791
      %v1080 = vpack.c.b16 %v798, %v792
      %v1081 = vpack.c.b16 %v799, %v793
      %v1082 = vpack.c.b16 %v800, %v794
      %v1083 = vpack.c.b16 %v807, %v801
      %v1084 = vpack.c.b16 %v808, %v802
      %v1085 = vpack.c.b16 %v809, %v803
      %v1086 = vpack.c.b16 %v810, %v804
      %v1087 = vpack.c.b16 %v811, %v805
      %v1088 = vpack.c.b16 %v812, %v806
      %v1089 = vpack.c.b16 %v819, %v813
      %v1090 = vpack.c.b16 %v820, %v814
      %v1091 = vpack.c.b16 %v821, %v815
      %v1092 = vpack.c.b16 %v822, %v816
      %v1093 = vpack.c.b16 %v823, %v817
      %v1094 = vpack.c.b16 %v824, %v818
      %v1095 = vpack.c.b16 %v831, %v825
      %v1096 = vpack.c.b16 %v832, %v826
      %v1097 = vpack.c.b16 %v833, %v827
      %v1098 = vpack.c.b16 %v834, %v828
      %v1099 = vpack.c.b16 %v835, %v829
      %v1100 = vpack.c.b16 %v836, %v830
      %v1101 = vpack.c.b16 %v843, %v837
      %v1102 = vpack.c.b16 %v844, %v838
      %v1103 = vpack.c.b16 %v845, %v839
      %v1104 = vpack.c.b16 %v846, %v840
      %v1105 = vpack.c.b16 %v847, %v841
      %v1106 = vpack.c.b16 %v848, %v842
      %v1107 = vpack.c.b16 %v855, %v849
      %v1108 = vpack.c.b16 %v856, %v850
      %v1109 = vpack.c.b16 %v857, %v851
      %v1110 = vpack.c.b16 %v858, %v852
      %v1111 = vpack.c.b16 %v859, %v853
      %v1112 = vpack.c.b16 %v860, %v854
      %v1113 = vpack.c.b16 %v867, %v861
      %v1114 = vpack.c.b16 %v868, %v862
      %v1115 = vpack.c.b16 %v869, %v863
      %v1116 = vpack.c.b16 %v870, %v864
      %v1117 = vpack.c.b16 %v871, %v865
      %v1118 = vpack.c.b16 %v872, %v866
      %v1119 = vpack.c.b16 %v879, %v873
      %v1120 = vpack.c.b16 %v880, %v874
      %v1121 = vpack.c.b16 %v881, %v875
      %v1122 = vpack.c.b16 %v882, %v876
      %v1123 = vpack.c.b16 %v883, %v877
      %v1124 = vpack.c.b16 %v884, %v878
      %v1125 = vpack.c.b16 %v891, %v885
      %v1126 = vpack.c.b16 %v892, %v886
      %v1127 = vpack.c.b16 %v893, %v887
      %v1128 = vpack.c.b16 %v894, %v888
      %v1129 = vpack.c.b16 %v895, %v889
      %v1130 = vpack.c.b16 %v896, %v890
      %v1131 = vpack.c.b16 %v903, %v897
      %v1132 = vpack.c.b16 %v904, %v898
      %v1133 = vpack.c.b16 %v905, %v899
      %v1134 = vpack.c.b16 %v906, %v900
      %v1135 = vpack.c.b16 %v907, %v901
      %v1136 = vpack.c.b16 %v908, %v902
      %v1137 = vpack.c.b16 %v915, %v909
      %v1138 = vpack.c.b16 %v916, %v910
      %v1139 = vpack.c.b16 %v917, %v911
      %v1140 = vpack.c.b16 %v918, %v912
      %v1141 = vpack.c.b16 %v919, %v913
      %v1142 = vpack.c.b16 %v920, %v914
      %v1143 = vpack.c.b16 %v927, %v921
      %v1144 = vpack.c.b16 %v928, %v922
      %v1145 = vpack.c.b16 %v929, %v923
      %v1146 = vpack.c.b16 %v930, %v924
      %v1147 = vpack.c.b16 %v931, %v925
      %v1148 = vpack.c.b16 %v932, %v926
      %v1149 = vpack.c.b16 %v939, %v933
      %v1150 = vpack.c.b16 %v940, %v934
      %v1151 = vpack.c.b16 %v941, %v935
      %v1152 = vpack.c.b16 %v942, %v936
      %v1153 = vpack.c.b16 %v943, %v937
      %v1154 = vpack.c.b16 %v944, %v938
      %v1155 = vpack.c.b16 %v951, %v945
      %v1156 = vpack.c.b16 %v952, %v946
      %v1157 = vpack.c.b16 %v953, %v947
      %v1158 = vpack.c.b16 %v954, %v948
      %v1159 = vpack.c.b16 %v955, %v949
      %v1160 = vpack.c.b16 %v956, %v950
      %v1161 = vpack.c.b16 %v963, %v957
      %v1162 = vpack.c.b16 %v964, %v958
      %v1163 = vpack.c.b16 %v965, %v959
      %v1164 = vpack.c.b16 %v966, %v960
      %v1165 = vpack.c.b16 %v967, %v961
      %v1166 = vpack.c.b16 %v968, %v962
      %v1167 = vpack.c.b16 %v975, %v969
      %v1168 = vpack.c.b16 %v976, %v970
      %v1169 = vpack.c.b16 %v977, %v971
      %v1170 = vpack.c.b16 %v978, %v972
      %v1171 = vpack.c.b16 %v979, %v973
      %v1172 = vpack.c.b16 %v980, %v974
      %v1173 = vpack.c.b16 %v987, %v981
      %v1174 = vpack.c.b16 %v988, %v982
      %v1175 = vpack.c.b16 %v989, %v983
      %v1176 = vpack.c.b16 %v990, %v984
      %v1177 = vpack.c.b16 %v991, %v985
      %v1178 = vpack.c.b16 %v992, %v986
      %v1179 = vpack.c.b16 %v999, %v993
      %v1180 = vpack.c.b16 %v1000, %v994
      %v1181 = vpack.c.b16 %v1001, %v995
      %v1182 = vpack.c.b16 %v1002, %v996
      %v1183 = vpack.c.b16 %v1003, %v997
      %v1184 = vpack.c.b16 %v1004, %v998
      %v1185 = vpack.c.b16 %v1011, %v1005
      %v1186 = vpack.c.b16 %v1012, %v1006
      %v1187 = vpack.c.b16 %v1013, %v1007
      %v1188 = vpack.c.b16 %v1014, %v1008
      %v1189 = vpack.c.b16 %v1015, %v1009
      %v1190 = vpack.c.b16 %v1016, %v1010
      %v1191 = vpack.c.b16 %v1023, %v1017
      %v1192 = vpack.c.b16 %v1024, %v1018
      %v1193 = vpack.c.b16 %v1025, %v1019
      %v1194 = vpack.c.b16 %v1026, %v1020
      %v1195 = vpack.c.b16 %v1027, %v1021
      %v1196 = vpack.c.b16 %v1028, %v1022
      %v1197 = vpack.c.b16 %v1035, %v1029
      %v1198 = vpack.c.b16 %v1036, %v1030
      %v1199 = vpack.c.b16 %v1037, %v1031
      %v1200 = vpack.c.b16 %v1038, %v1032
      %v1201 = vpack.c.b16 %v1039, %v1033
      %v1202 = vpack.c.b16 %v1040, %v1034
      %v1203 = vpack.c.b16 %v1047, %v1041
      %v1204 = vpack.c.b16 %v1048, %v1042
      %v1205 = vpack.c.b16 %v1049, %v1043
      %v1206 = vpack.c.b16 %v1050, %v1044
      %v1207 = vpack.c.b16 %v1051, %v1045
      %v1208 = vpack.c.b16 %v1052, %v1046
      %vm1359 = vcmask 244736
      %v1361 = vsel %vm1359, %v518, 0
      %v1364 = vsel %vm1359, %v522, 0
      %v1367 = vsel %vm1359, %v526, 0
      %v1370 = vsel %vm1359, %v530, 0
      %v1373 = vsel %vm1359, %v534, 0
      %v1376 = vsel %vm1359, %v538, 0
      %v1379 = vsel %vm1359, %v542, 0
      %v1382 = vsel %vm1359, %v546, 0
      %v1385 = vsel %vm1359, %v550, 0
      %v1388 = vsel %vm1359, %v554, 0
      %vm1390 = vcmask 1046528
      %v1392 = vsel %vm1390, %v1203, 0
      %v1395 = vsel %vm1390, %v1204, 0
      %v1398 = vsel %vm1390, %v1205, 0
      %v1401 = vsel %vm1390, %v1206, 0
      %v1404 = vsel %vm1390, %v1207, 0
      %v1407 = vsel %vm1390, %v1208, 0
      %1409 = vmatpush.bf16.msra.mxu0 %v1095
      %1410 = vmatpush.bf16.msra.mxu0 %v1089
      %1411 = vmatpush.bf16.msra.mxu0 %v1083
      %1412 = vmatpush.bf16.msra.mxu0 %v1077
      %1413 = vmatpush.bf16.msra.mxu0 %v1071
      %1414 = vmatpush.bf16.msra.mxu0 %v1065
      %1415 = vmatpush.bf16.msra.mxu0 %v1059
      %1416 = vmatpush.bf16.msra.mxu0 %v1053
      %1417 = vmatmul.bf16.gmra.mxu0 %v515
      %v1418 = vpop.f32.mrf.mxu0
      %v1419 = vadd.f32 0.0, %v1418
      %v1420 = vpop.f32.mrf.mxu0
      %v1421 = vadd.f32 0.0, %v1420
      %1422 = vmatmul.bf16.gmra.mxu0 %v519
      %v1423 = vpop.f32.mrf.mxu0
      %v1424 = vadd.f32 0.0, %v1423
      %v1425 = vpop.f32.mrf.mxu0
      %v1426 = vadd.f32 0.0, %v1425
      %1427 = vmatmul.bf16.gmra.mxu0 %v523
      %v1428 = vpop.f32.mrf.mxu0
      %v1429 = vadd.f32 0.0, %v1428
      %v1430 = vpop.f32.mrf.mxu0
      %v1431 = vadd.f32 0.0, %v1430
      %1432 = vmatmul.bf16.gmra.mxu0 %v527
      %v1433 = vpop.f32.mrf.mxu0
      %v1434 = vadd.f32 0.0, %v1433
      %v1435 = vpop.f32.mrf.mxu0
      %v1436 = vadd.f32 0.0, %v1435
      %1437 = vmatmul.bf16.gmra.mxu0 %v531
      %v1438 = vpop.f32.mrf.mxu0
      %v1439 = vadd.f32 0.0, %v1438
      %v1440 = vpop.f32.mrf.mxu0
      %v1441 = vadd.f32 0.0, %v1440
      %1442 = vmatmul.bf16.gmra.mxu0 %v535
      %v1443 = vpop.f32.mrf.mxu0
      %v1444 = vadd.f32 0.0, %v1443
      %v1445 = vpop.f32.mrf.mxu0
      %v1446 = vadd.f32 0.0, %v1445
      %1447 = vmatmul.bf16.gmra.mxu0 %v539
      %v1448 = vpop.f32.mrf.mxu0
      %v1449 = vadd.f32 0.0, %v1448
      %v1450 = vpop.f32.mrf.mxu0
      %v1451 = vadd.f32 0.0, %v1450
      %1452 = vmatmul.bf16.gmra.mxu0 %v543
      %v1453 = vpop.f32.mrf.mxu0
      %v1454 = vadd.f32 0.0, %v1453
      %v1455 = vpop.f32.mrf.mxu0
      %v1456 = vadd.f32 0.0, %v1455
      %1457 = vmatmul.bf16.gmra.mxu0 %v547
      %v1458 = vpop.f32.mrf.mxu0
      %v1459 = vadd.f32 0.0, %v1458
      %v1460 = vpop.f32.mrf.mxu0
      %v1461 = vadd.f32 0.0, %v1460
      %1462 = vmatmul.bf16.gmra.mxu0 %v551
      %v1463 = vpop.f32.mrf.mxu0
      %v1464 = vadd.f32 0.0, %v1463
      %v1465 = vpop.f32.mrf.mxu0
      %v1466 = vadd.f32 0.0, %v1465
      %1467 = vdwg.mxu0
      %1468 = vmatpush.bf16.msra.mxu0 %v1143
      %1469 = vmatpush.bf16.msra.mxu0 %v1137
      %1470 = vmatpush.bf16.msra.mxu0 %v1131
      %1471 = vmatpush.bf16.msra.mxu0 %v1125
      %1472 = vmatpush.bf16.msra.mxu0 %v1119
      %1473 = vmatpush.bf16.msra.mxu0 %v1113
      %1474 = vmatpush.bf16.msra.mxu0 %v1107
      %1475 = vmatpush.bf16.msra.mxu0 %v1101
      %1476 = vmatmul.bf16.gmra.mxu0 %v516
      %v1477 = vpop.f32.mrf.mxu0
      %v1478 = vadd.f32 %v1419, %v1477
      %v1479 = vpop.f32.mrf.mxu0
      %v1480 = vadd.f32 %v1421, %v1479
      %1481 = vmatmul.bf16.gmra.mxu0 %v520
      %v1482 = vpop.f32.mrf.mxu0
      %v1483 = vadd.f32 %v1424, %v1482
      %v1484 = vpop.f32.mrf.mxu0
      %v1485 = vadd.f32 %v1426, %v1484
      %1486 = vmatmul.bf16.gmra.mxu0 %v524
      %v1487 = vpop.f32.mrf.mxu0
      %v1488 = vadd.f32 %v1429, %v1487
      %v1489 = vpop.f32.mrf.mxu0
      %v1490 = vadd.f32 %v1431, %v1489
      %1491 = vmatmul.bf16.gmra.mxu0 %v528
      %v1492 = vpop.f32.mrf.mxu0
      %v1493 = vadd.f32 %v1434, %v1492
      %v1494 = vpop.f32.mrf.mxu0
      %v1495 = vadd.f32 %v1436, %v1494
      %1496 = vmatmul.bf16.gmra.mxu0 %v532
      %v1497 = vpop.f32.mrf.mxu0
      %v1498 = vadd.f32 %v1439, %v1497
      %v1499 = vpop.f32.mrf.mxu0
      %v1500 = vadd.f32 %v1441, %v1499
      %1501 = vmatmul.bf16.gmra.mxu0 %v536
      %v1502 = vpop.f32.mrf.mxu0
      %v1503 = vadd.f32 %v1444, %v1502
      %v1504 = vpop.f32.mrf.mxu0
      %v1505 = vadd.f32 %v1446, %v1504
      %1506 = vmatmul.bf16.gmra.mxu0 %v540
      %v1507 = vpop.f32.mrf.mxu0
      %v1508 = vadd.f32 %v1449, %v1507
      %v1509 = vpop.f32.mrf.mxu0
      %v1510 = vadd.f32 %v1451, %v1509
      %1511 = vmatmul.bf16.gmra.mxu0 %v544
      %v1512 = vpop.f32.mrf.mxu0
      %v1513 = vadd.f32 %v1454, %v1512
      %v1514 = vpop.f32.mrf.mxu0
      %v1515 = vadd.f32 %v1456, %v1514
      %1516 = vmatmul.bf16.gmra.mxu0 %v548
      %v1517 = vpop.f32.mrf.mxu0
      %v1518 = vadd.f32 %v1459, %v1517
      %v1519 = vpop.f32.mrf.mxu0
      %v1520 = vadd.f32 %v1461, %v1519
      %1521 = vmatmul.bf16.gmra.mxu0 %v552
      %v1522 = vpop.f32.mrf.mxu0
      %v1523 = vadd.f32 %v1464, %v1522
      %v1524 = vpop.f32.mrf.mxu0
      %v1525 = vadd.f32 %v1466, %v1524
      %1526 = vdwg.mxu0
      %1527 = vmatpush.bf16.msra.mxu0 %v1191
      %1528 = vmatpush.bf16.msra.mxu0 %v1185
      %1529 = vmatpush.bf16.msra.mxu0 %v1179
      %1530 = vmatpush.bf16.msra.mxu0 %v1173
      %1531 = vmatpush.bf16.msra.mxu0 %v1167
      %1532 = vmatpush.bf16.msra.mxu0 %v1161
      %1533 = vmatpush.bf16.msra.mxu0 %v1155
      %1534 = vmatpush.bf16.msra.mxu0 %v1149
      %1535 = vmatmul.bf16.gmra.mxu0 %v517
      %v1536 = vpop.f32.mrf.mxu0
      %v1537 = vadd.f32 %v1478, %v1536
      %v1538 = vpop.f32.mrf.mxu0
      %v1539 = vadd.f32 %v1480, %v1538
      %1540 = vmatmul.bf16.gmra.mxu0 %v521
      %v1541 = vpop.f32.mrf.mxu0
      %v1542 = vadd.f32 %v1483, %v1541
      %v1543 = vpop.f32.mrf.mxu0
      %v1544 = vadd.f32 %v1485, %v1543
      %1545 = vmatmul.bf16.gmra.mxu0 %v525
      %v1546 = vpop.f32.mrf.mxu0
      %v1547 = vadd.f32 %v1488, %v1546
      %v1548 = vpop.f32.mrf.mxu0
      %v1549 = vadd.f32 %v1490, %v1548
      %1550 = vmatmul.bf16.gmra.mxu0 %v529
      %v1551 = vpop.f32.mrf.mxu0
      %v1552 = vadd.f32 %v1493, %v1551
      %v1553 = vpop.f32.mrf.mxu0
      %v1554 = vadd.f32 %v1495, %v1553
      %1555 = vmatmul.bf16.gmra.mxu0 %v533
      %v1556 = vpop.f32.mrf.mxu0
      %v1557 = vadd.f32 %v1498, %v1556
      %v1558 = vpop.f32.mrf.mxu0
      %v1559 = vadd.f32 %v1500, %v1558
      %1560 = vmatmul.bf16.gmra.mxu0 %v537
      %v1561 = vpop.f32.mrf.mxu0
      %v1562 = vadd.f32 %v1503, %v1561
      %v1563 = vpop.f32.mrf.mxu0
      %v1564 = vadd.f32 %v1505, %v1563
      %1565 = vmatmul.bf16.gmra.mxu0 %v541
      %v1566 = vpop.f32.mrf.mxu0
      %v1567 = vadd.f32 %v1508, %v1566
      %v1568 = vpop.f32.mrf.mxu0
      %v1569 = vadd.f32 %v1510, %v1568
      %1570 = vmatmul.bf16.gmra.mxu0 %v545
      %v1571 = vpop.f32.mrf.mxu0
      %v1572 = vadd.f32 %v1513, %v1571
      %v1573 = vpop.f32.mrf.mxu0
      %v1574 = vadd.f32 %v1515, %v1573
      %1575 = vmatmul.bf16.gmra.mxu0 %v549
      %v1576 = vpop.f32.mrf.mxu0
      %v1577 = vadd.f32 %v1518, %v1576
      %v1578 = vpop.f32.mrf.mxu0
      %v1579 = vadd.f32 %v1520, %v1578
      %1580 = vmatmul.bf16.gmra.mxu0 %v553
      %v1581 = vpop.f32.mrf.mxu0
      %v1582 = vadd.f32 %v1523, %v1581
      %v1583 = vpop.f32.mrf.mxu0
      %v1584 = vadd.f32 %v1525, %v1583
      %1585 = vdwg.mxu0
      %1586 = vmatpush.bf16.msra.mxu0 0
      %1587 = vmatpush.bf16.msra.mxu0 0
      %1588 = vmatpush.bf16.msra.mxu0 0
      %1589 = vmatpush.bf16.msra.mxu0 0
      %1590 = vmatpush.bf16.msra.mxu0 0
      %1591 = vmatpush.bf16.msra.mxu0 0
      %1592 = vmatpush.bf16.msra.mxu0 %v1392
      %1593 = vmatpush.bf16.msra.mxu0 %v1197
      %1594 = vmatmul.bf16.gmra.mxu0 %v1361
      %v1595 = vpop.f32.mrf.mxu0
      %v1596 = vadd.f32 %v1537, %v1595
      %v1597 = vpop.f32.mrf.mxu0
      %v1598 = vadd.f32 %v1539, %v1597
      %1599 = vmatmul.bf16.gmra.mxu0 %v1364
      %v1600 = vpop.f32.mrf.mxu0
      %v1601 = vadd.f32 %v1542, %v1600
      %v1602 = vpop.f32.mrf.mxu0
      %v1603 = vadd.f32 %v1544, %v1602
      %1604 = vmatmul.bf16.gmra.mxu0 %v1367
      %v1605 = vpop.f32.mrf.mxu0
      %v1606 = vadd.f32 %v1547, %v1605
      %v1607 = vpop.f32.mrf.mxu0
      %v1608 = vadd.f32 %v1549, %v1607
      %1609 = vmatmul.bf16.gmra.mxu0 %v1370
      %v1610 = vpop.f32.mrf.mxu0
      %v1611 = vadd.f32 %v1552, %v1610
      %v1612 = vpop.f32.mrf.mxu0
      %v1613 = vadd.f32 %v1554, %v1612
      %1614 = vmatmul.bf16.gmra.mxu0 %v1373
      %v1615 = vpop.f32.mrf.mxu0
      %v1616 = vadd.f32 %v1557, %v1615
      %v1617 = vpop.f32.mrf.mxu0
      %v1618 = vadd.f32 %v1559, %v1617
      %1619 = vmatmul.bf16.gmra.mxu0 %v1376
      %v1620 = vpop.f32.mrf.mxu0
      %v1621 = vadd.f32 %v1562, %v1620
      %v1622 = vpop.f32.mrf.mxu0
      %v1623 = vadd.f32 %v1564, %v1622
      %1624 = vmatmul.bf16.gmra.mxu0 %v1379
      %v1625 = vpop.f32.mrf.mxu0
      %v1626 = vadd.f32 %v1567, %v1625
      %v1627 = vpop.f32.mrf.mxu0
      %v1628 = vadd.f32 %v1569, %v1627
      %1629 = vmatmul.bf16.gmra.mxu0 %v1382
      %v1630 = vpop.f32.mrf.mxu0
      %v1631 = vadd.f32 %v1572, %v1630
      %v1632 = vpop.f32.mrf.mxu0
      %v1633 = vadd.f32 %v1574, %v1632
      %1634 = vmatmul.bf16.gmra.mxu0 %v1385
      %v1635 = vpop.f32.mrf.mxu0
      %v1636 = vadd.f32 %v1577, %v1635
      %v1637 = vpop.f32.mrf.mxu0
      %v1638 = vadd.f32 %v1579, %v1637
      %1639 = vmatmul.bf16.gmra.mxu0 %v1388
      %v1640 = vpop.f32.mrf.mxu0
      %v1641 = vadd.f32 %v1582, %v1640
      %v1642 = vpop.f32.mrf.mxu0
      %v1643 = vadd.f32 %v1584, %v1642
      %1644 = vdwg.mxu0
      %1645 = vmatpush.bf16.msra.mxu0 %v1096
      %1646 = vmatpush.bf16.msra.mxu0 %v1090
      %1647 = vmatpush.bf16.msra.mxu0 %v1084
      %1648 = vmatpush.bf16.msra.mxu0 %v1078
      %1649 = vmatpush.bf16.msra.mxu0 %v1072
      %1650 = vmatpush.bf16.msra.mxu0 %v1066
      %1651 = vmatpush.bf16.msra.mxu0 %v1060
      %1652 = vmatpush.bf16.msra.mxu0 %v1054
      %1653 = vmatmul.bf16.gmra.mxu0 %v515
      %v1654 = vpop.f32.mrf.mxu0
      %v1655 = vadd.f32 0.0, %v1654
      %v1656 = vpop.f32.mrf.mxu0
      %v1657 = vadd.f32 0.0, %v1656
      %1658 = vmatmul.bf16.gmra.mxu0 %v519
      %v1659 = vpop.f32.mrf.mxu0
      %v1660 = vadd.f32 0.0, %v1659
      %v1661 = vpop.f32.mrf.mxu0
      %v1662 = vadd.f32 0.0, %v1661
      %1663 = vmatmul.bf16.gmra.mxu0 %v523
      %v1664 = vpop.f32.mrf.mxu0
      %v1665 = vadd.f32 0.0, %v1664
      %v1666 = vpop.f32.mrf.mxu0
      %v1667 = vadd.f32 0.0, %v1666
      %1668 = vmatmul.bf16.gmra.mxu0 %v527
      %v1669 = vpop.f32.mrf.mxu0
      %v1670 = vadd.f32 0.0, %v1669
      %v1671 = vpop.f32.mrf.mxu0
      %v1672 = vadd.f32 0.0, %v1671
      %1673 = vmatmul.bf16.gmra.mxu0 %v531
      %v1674 = vpop.f32.mrf.mxu0
      %v1675 = vadd.f32 0.0, %v1674
      %v1676 = vpop.f32.mrf.mxu0
      %v1677 = vadd.f32 0.0, %v1676
      %1678 = vmatmul.bf16.gmra.mxu0 %v535
      %v1679 = vpop.f32.mrf.mxu0
      %v1680 = vadd.f32 0.0, %v1679
      %v1681 = vpop.f32.mrf.mxu0
      %v1682 = vadd.f32 0.0, %v1681
      %1683 = vmatmul.bf16.gmra.mxu0 %v539
      %v1684 = vpop.f32.mrf.mxu0
      %v1685 = vadd.f32 0.0, %v1684
      %v1686 = vpop.f32.mrf.mxu0
      %v1687 = vadd.f32 0.0, %v1686
      %1688 = vmatmul.bf16.gmra.mxu0 %v543
      %v1689 = vpop.f32.mrf.mxu0
      %v1690 = vadd.f32 0.0, %v1689
      %v1691 = vpop.f32.mrf.mxu0
      %v1692 = vadd.f32 0.0, %v1691
      %1693 = vmatmul.bf16.gmra.mxu0 %v547
      %v1694 = vpop.f32.mrf.mxu0
      %v1695 = vadd.f32 0.0, %v1694
      %v1696 = vpop.f32.mrf.mxu0
      %v1697 = vadd.f32 0.0, %v1696
      %1698 = vmatmul.bf16.gmra.mxu0 %v551
      %v1699 = vpop.f32.mrf.mxu0
      %v1700 = vadd.f32 0.0, %v1699
      %v1701 = vpop.f32.mrf.mxu0
      %v1702 = vadd.f32 0.0, %v1701
      %1703 = vdwg.mxu0
      %1704 = vmatpush.bf16.msra.mxu0 %v1144
      %1705 = vmatpush.bf16.msra.mxu0 %v1138
      %1706 = vmatpush.bf16.msra.mxu0 %v1132
      %1707 = vmatpush.bf16.msra.mxu0 %v1126
      %1708 = vmatpush.bf16.msra.mxu0 %v1120
      %1709 = vmatpush.bf16.msra.mxu0 %v1114
      %1710 = vmatpush.bf16.msra.mxu0 %v1108
      %1711 = vmatpush.bf16.msra.mxu0 %v1102
      %1712 = vmatmul.bf16.gmra.mxu0 %v516
      %v1713 = vpop.f32.mrf.mxu0
      %v1714 = vadd.f32 %v1655, %v1713
      %v1715 = vpop.f32.mrf.mxu0
      %v1716 = vadd.f32 %v1657, %v1715
      %1717 = vmatmul.bf16.gmra.mxu0 %v520
      %v1718 = vpop.f32.mrf.mxu0
      %v1719 = vadd.f32 %v1660, %v1718
      %v1720 = vpop.f32.mrf.mxu0
      %v1721 = vadd.f32 %v1662, %v1720
      %1722 = vmatmul.bf16.gmra.mxu0 %v524
      %v1723 = vpop.f32.mrf.mxu0
      %v1724 = vadd.f32 %v1665, %v1723
      %v1725 = vpop.f32.mrf.mxu0
      %v1726 = vadd.f32 %v1667, %v1725
      %1727 = vmatmul.bf16.gmra.mxu0 %v528
      %v1728 = vpop.f32.mrf.mxu0
      %v1729 = vadd.f32 %v1670, %v1728
      %v1730 = vpop.f32.mrf.mxu0
      %v1731 = vadd.f32 %v1672, %v1730
      %1732 = vmatmul.bf16.gmra.mxu0 %v532
      %v1733 = vpop.f32.mrf.mxu0
      %v1734 = vadd.f32 %v1675, %v1733
      %v1735 = vpop.f32.mrf.mxu0
      %v1736 = vadd.f32 %v1677, %v1735
      %1737 = vmatmul.bf16.gmra.mxu0 %v536
      %v1738 = vpop.f32.mrf.mxu0
      %v1739 = vadd.f32 %v1680, %v1738
      %v1740 = vpop.f32.mrf.mxu0
      %v1741 = vadd.f32 %v1682, %v1740
      %1742 = vmatmul.bf16.gmra.mxu0 %v540
      %v1743 = vpop.f32.mrf.mxu0
      %v1744 = vadd.f32 %v1685, %v1743
      %v1745 = vpop.f32.mrf.mxu0
      %v1746 = vadd.f32 %v1687, %v1745
      %1747 = vmatmul.bf16.gmra.mxu0 %v544
      %v1748 = vpop.f32.mrf.mxu0
      %v1749 = vadd.f32 %v1690, %v1748
      %v1750 = vpop.f32.mrf.mxu0
      %v1751 = vadd.f32 %v1692, %v1750
      %1752 = vmatmul.bf16.gmra.mxu0 %v548
      %v1753 = vpop.f32.mrf.mxu0
      %v1754 = vadd.f32 %v1695, %v1753
      %v1755 = vpop.f32.mrf.mxu0
      %v1756 = vadd.f32 %v1697, %v1755
      %1757 = vmatmul.bf16.gmra.mxu0 %v552
      %v1758 = vpop.f32.mrf.mxu0
      %v1759 = vadd.f32 %v1700, %v1758
      %v1760 = vpop.f32.mrf.mxu0
      %v1761 = vadd.f32 %v1702, %v1760
      %1762 = vdwg.mxu0
      %1763 = vmatpush.bf16.msra.mxu0 %v1192
      %1764 = vmatpush.bf16.msra.mxu0 %v1186
      %1765 = vmatpush.bf16.msra.mxu0 %v1180
      %1766 = vmatpush.bf16.msra.mxu0 %v1174
      %1767 = vmatpush.bf16.msra.mxu0 %v1168
      %1768 = vmatpush.bf16.msra.mxu0 %v1162
      %1769 = vmatpush.bf16.msra.mxu0 %v1156
      %1770 = vmatpush.bf16.msra.mxu0 %v1150
      %1771 = vmatmul.bf16.gmra.mxu0 %v517
      %v1772 = vpop.f32.mrf.mxu0
      %v1773 = vadd.f32 %v1714, %v1772
      %v1774 = vpop.f32.mrf.mxu0
      %v1775 = vadd.f32 %v1716, %v1774
      %1776 = vmatmul.bf16.gmra.mxu0 %v521
      %v1777 = vpop.f32.mrf.mxu0
      %v1778 = vadd.f32 %v1719, %v1777
      %v1779 = vpop.f32.mrf.mxu0
      %v1780 = vadd.f32 %v1721, %v1779
      %1781 = vmatmul.bf16.gmra.mxu0 %v525
      %v1782 = vpop.f32.mrf.mxu0
      %v1783 = vadd.f32 %v1724, %v1782
      %v1784 = vpop.f32.mrf.mxu0
      %v1785 = vadd.f32 %v1726, %v1784
      %1786 = vmatmul.bf16.gmra.mxu0 %v529
      %v1787 = vpop.f32.mrf.mxu0
      %v1788 = vadd.f32 %v1729, %v1787
      %v1789 = vpop.f32.mrf.mxu0
      %v1790 = vadd.f32 %v1731, %v1789
      %1791 = vmatmul.bf16.gmra.mxu0 %v533
      %v1792 = vpop.f32.mrf.mxu0
      %v1793 = vadd.f32 %v1734, %v1792
      %v1794 = vpop.f32.mrf.mxu0
      %v1795 = vadd.f32 %v1736, %v1794
      %1796 = vmatmul.bf16.gmra.mxu0 %v537
      %v1797 = vpop.f32.mrf.mxu0
      %v1798 = vadd.f32 %v1739, %v1797
      %v1799 = vpop.f32.mrf.mxu0
      %v1800 = vadd.f32 %v1741, %v1799
      %1801 = vmatmul.bf16.gmra.mxu0 %v541
      %v1802 = vpop.f32.mrf.mxu0
      %v1803 = vadd.f32 %v1744, %v1802
      %v1804 = vpop.f32.mrf.mxu0
      %v1805 = vadd.f32 %v1746, %v1804
      %1806 = vmatmul.bf16.gmra.mxu0 %v545
      %v1807 = vpop.f32.mrf.mxu0
      %v1808 = vadd.f32 %v1749, %v1807
      %v1809 = vpop.f32.mrf.mxu0
      %v1810 = vadd.f32 %v1751, %v1809
      %1811 = vmatmul.bf16.gmra.mxu0 %v549
      %v1812 = vpop.f32.mrf.mxu0
      %v1813 = vadd.f32 %v1754, %v1812
      %v1814 = vpop.f32.mrf.mxu0
      %v1815 = vadd.f32 %v1756, %v1814
      %1816 = vmatmul.bf16.gmra.mxu0 %v553
      %v1817 = vpop.f32.mrf.mxu0
      %v1818 = vadd.f32 %v1759, %v1817
      %v1819 = vpop.f32.mrf.mxu0
      %v1820 = vadd.f32 %v1761, %v1819
      %1821 = vdwg.mxu0
      %1822 = vmatpush.bf16.msra.mxu0 0
      %1823 = vmatpush.bf16.msra.mxu0 0
      %1824 = vmatpush.bf16.msra.mxu0 0
      %1825 = vmatpush.bf16.msra.mxu0 0
      %1826 = vmatpush.bf16.msra.mxu0 0
      %1827 = vmatpush.bf16.msra.mxu0 0
      %1828 = vmatpush.bf16.msra.mxu0 %v1395
      %1829 = vmatpush.bf16.msra.mxu0 %v1198
      %1830 = vmatmul.bf16.gmra.mxu0 %v1361
      %v1831 = vpop.f32.mrf.mxu0
      %v1832 = vadd.f32 %v1773, %v1831
      %v1833 = vpop.f32.mrf.mxu0
      %v1834 = vadd.f32 %v1775, %v1833
      %1835 = vmatmul.bf16.gmra.mxu0 %v1364
      %v1836 = vpop.f32.mrf.mxu0
      %v1837 = vadd.f32 %v1778, %v1836
      %v1838 = vpop.f32.mrf.mxu0
      %v1839 = vadd.f32 %v1780, %v1838
      %1840 = vmatmul.bf16.gmra.mxu0 %v1367
      %v1841 = vpop.f32.mrf.mxu0
      %v1842 = vadd.f32 %v1783, %v1841
      %v1843 = vpop.f32.mrf.mxu0
      %v1844 = vadd.f32 %v1785, %v1843
      %1845 = vmatmul.bf16.gmra.mxu0 %v1370
      %v1846 = vpop.f32.mrf.mxu0
      %v1847 = vadd.f32 %v1788, %v1846
      %v1848 = vpop.f32.mrf.mxu0
      %v1849 = vadd.f32 %v1790, %v1848
      %1850 = vmatmul.bf16.gmra.mxu0 %v1373
      %v1851 = vpop.f32.mrf.mxu0
      %v1852 = vadd.f32 %v1793, %v1851
      %v1853 = vpop.f32.mrf.mxu0
      %v1854 = vadd.f32 %v1795, %v1853
      %1855 = vmatmul.bf16.gmra.mxu0 %v1376
      %v1856 = vpop.f32.mrf.mxu0
      %v1857 = vadd.f32 %v1798, %v1856
      %v1858 = vpop.f32.mrf.mxu0
      %v1859 = vadd.f32 %v1800, %v1858
      %1860 = vmatmul.bf16.gmra.mxu0 %v1379
      %v1861 = vpop.f32.mrf.mxu0
      %v1862 = vadd.f32 %v1803, %v1861
      %v1863 = vpop.f32.mrf.mxu0
      %v1864 = vadd.f32 %v1805, %v1863
      %1865 = vmatmul.bf16.gmra.mxu0 %v1382
      %v1866 = vpop.f32.mrf.mxu0
      %v1867 = vadd.f32 %v1808, %v1866
      %v1868 = vpop.f32.mrf.mxu0
      %v1869 = vadd.f32 %v1810, %v1868
      %1870 = vmatmul.bf16.gmra.mxu0 %v1385
      %v1871 = vpop.f32.mrf.mxu0
      %v1872 = vadd.f32 %v1813, %v1871
      %v1873 = vpop.f32.mrf.mxu0
      %v1874 = vadd.f32 %v1815, %v1873
      %1875 = vmatmul.bf16.gmra.mxu0 %v1388
      %v1876 = vpop.f32.mrf.mxu0
      %v1877 = vadd.f32 %v1818, %v1876
      %v1878 = vpop.f32.mrf.mxu0
      %v1879 = vadd.f32 %v1820, %v1878
      %1880 = vdwg.mxu0
      %1881 = vmatpush.bf16.msra.mxu0 %v1097
      %1882 = vmatpush.bf16.msra.mxu0 %v1091
      %1883 = vmatpush.bf16.msra.mxu0 %v1085
      %1884 = vmatpush.bf16.msra.mxu0 %v1079
      %1885 = vmatpush.bf16.msra.mxu0 %v1073
      %1886 = vmatpush.bf16.msra.mxu0 %v1067
      %1887 = vmatpush.bf16.msra.mxu0 %v1061
      %1888 = vmatpush.bf16.msra.mxu0 %v1055
      %1889 = vmatmul.bf16.gmra.mxu0 %v515
      %v1890 = vpop.f32.mrf.mxu0
      %v1891 = vadd.f32 0.0, %v1890
      %v1892 = vpop.f32.mrf.mxu0
      %v1893 = vadd.f32 0.0, %v1892
      %1894 = vmatmul.bf16.gmra.mxu0 %v519
      %v1895 = vpop.f32.mrf.mxu0
      %v1896 = vadd.f32 0.0, %v1895
      %v1897 = vpop.f32.mrf.mxu0
      %v1898 = vadd.f32 0.0, %v1897
      %1899 = vmatmul.bf16.gmra.mxu0 %v523
      %v1900 = vpop.f32.mrf.mxu0
      %v1901 = vadd.f32 0.0, %v1900
      %v1902 = vpop.f32.mrf.mxu0
      %v1903 = vadd.f32 0.0, %v1902
      %1904 = vmatmul.bf16.gmra.mxu0 %v527
      %v1905 = vpop.f32.mrf.mxu0
      %v1906 = vadd.f32 0.0, %v1905
      %v1907 = vpop.f32.mrf.mxu0
      %v1908 = vadd.f32 0.0, %v1907
      %1909 = vmatmul.bf16.gmra.mxu0 %v531
      %v1910 = vpop.f32.mrf.mxu0
      %v1911 = vadd.f32 0.0, %v1910
      %v1912 = vpop.f32.mrf.mxu0
      %v1913 = vadd.f32 0.0, %v1912
      %1914 = vmatmul.bf16.gmra.mxu0 %v535
      %v1915 = vpop.f32.mrf.mxu0
      %v1916 = vadd.f32 0.0, %v1915
      %v1917 = vpop.f32.mrf.mxu0
      %v1918 = vadd.f32 0.0, %v1917
      %1919 = vmatmul.bf16.gmra.mxu0 %v539
      %v1920 = vpop.f32.mrf.mxu0
      %v1921 = vadd.f32 0.0, %v1920
      %v1922 = vpop.f32.mrf.mxu0
      %v1923 = vadd.f32 0.0, %v1922
      %1924 = vmatmul.bf16.gmra.mxu0 %v543
      %v1925 = vpop.f32.mrf.mxu0
      %v1926 = vadd.f32 0.0, %v1925
      %v1927 = vpop.f32.mrf.mxu0
      %v1928 = vadd.f32 0.0, %v1927
      %1929 = vmatmul.bf16.gmra.mxu0 %v547
      %v1930 = vpop.f32.mrf.mxu0
      %v1931 = vadd.f32 0.0, %v1930
      %v1932 = vpop.f32.mrf.mxu0
      %v1933 = vadd.f32 0.0, %v1932
      %1934 = vmatmul.bf16.gmra.mxu0 %v551
      %v1935 = vpop.f32.mrf.mxu0
      %v1936 = vadd.f32 0.0, %v1935
      %v1937 = vpop.f32.mrf.mxu0
      %v1938 = vadd.f32 0.0, %v1937
      %1939 = vdwg.mxu0
      %1940 = vmatpush.bf16.msra.mxu0 %v1145
      %1941 = vmatpush.bf16.msra.mxu0 %v1139
      %1942 = vmatpush.bf16.msra.mxu0 %v1133
      %1943 = vmatpush.bf16.msra.mxu0 %v1127
      %1944 = vmatpush.bf16.msra.mxu0 %v1121
      %1945 = vmatpush.bf16.msra.mxu0 %v1115
      %1946 = vmatpush.bf16.msra.mxu0 %v1109
      %1947 = vmatpush.bf16.msra.mxu0 %v1103
      %1948 = vmatmul.bf16.gmra.mxu0 %v516
      %v1949 = vpop.f32.mrf.mxu0
      %v1950 = vadd.f32 %v1891, %v1949
      %v1951 = vpop.f32.mrf.mxu0
      %v1952 = vadd.f32 %v1893, %v1951
      %1953 = vmatmul.bf16.gmra.mxu0 %v520
      %v1954 = vpop.f32.mrf.mxu0
      %v1955 = vadd.f32 %v1896, %v1954
      %v1956 = vpop.f32.mrf.mxu0
      %v1957 = vadd.f32 %v1898, %v1956
      %1958 = vmatmul.bf16.gmra.mxu0 %v524
      %v1959 = vpop.f32.mrf.mxu0
      %v1960 = vadd.f32 %v1901, %v1959
      %v1961 = vpop.f32.mrf.mxu0
      %v1962 = vadd.f32 %v1903, %v1961
      %1963 = vmatmul.bf16.gmra.mxu0 %v528
      %v1964 = vpop.f32.mrf.mxu0
      %v1965 = vadd.f32 %v1906, %v1964
      %v1966 = vpop.f32.mrf.mxu0
      %v1967 = vadd.f32 %v1908, %v1966
      %1968 = vmatmul.bf16.gmra.mxu0 %v532
      %v1969 = vpop.f32.mrf.mxu0
      %v1970 = vadd.f32 %v1911, %v1969
      %v1971 = vpop.f32.mrf.mxu0
      %v1972 = vadd.f32 %v1913, %v1971
      %1973 = vmatmul.bf16.gmra.mxu0 %v536
      %v1974 = vpop.f32.mrf.mxu0
      %v1975 = vadd.f32 %v1916, %v1974
      %v1976 = vpop.f32.mrf.mxu0
      %v1977 = vadd.f32 %v1918, %v1976
      %1978 = vmatmul.bf16.gmra.mxu0 %v540
      %v1979 = vpop.f32.mrf.mxu0
      %v1980 = vadd.f32 %v1921, %v1979
      %v1981 = vpop.f32.mrf.mxu0
      %v1982 = vadd.f32 %v1923, %v1981
      %1983 = vmatmul.bf16.gmra.mxu0 %v544
      %v1984 = vpop.f32.mrf.mxu0
      %v1985 = vadd.f32 %v1926, %v1984
      %v1986 = vpop.f32.mrf.mxu0
      %v1987 = vadd.f32 %v1928, %v1986
      %1988 = vmatmul.bf16.gmra.mxu0 %v548
      %v1989 = vpop.f32.mrf.mxu0
      %v1990 = vadd.f32 %v1931, %v1989
      %v1991 = vpop.f32.mrf.mxu0
      %v1992 = vadd.f32 %v1933, %v1991
      %1993 = vmatmul.bf16.gmra.mxu0 %v552
      %v1994 = vpop.f32.mrf.mxu0
      %v1995 = vadd.f32 %v1936, %v1994
      %v1996 = vpop.f32.mrf.mxu0
      %v1997 = vadd.f32 %v1938, %v1996
      %1998 = vdwg.mxu0
      %1999 = vmatpush.bf16.msra.mxu0 %v1193
      %2000 = vmatpush.bf16.msra.mxu0 %v1187
      %2001 = vmatpush.bf16.msra.mxu0 %v1181
      %2002 = vmatpush.bf16.msra.mxu0 %v1175
      %2003 = vmatpush.bf16.msra.mxu0 %v1169
      %2004 = vmatpush.bf16.msra.mxu0 %v1163
      %2005 = vmatpush.bf16.msra.mxu0 %v1157
      %2006 = vmatpush.bf16.msra.mxu0 %v1151
      %2007 = vmatmul.bf16.gmra.mxu0 %v517
      %v2008 = vpop.f32.mrf.mxu0
      %v2009 = vadd.f32 %v1950, %v2008
      %v2010 = vpop.f32.mrf.mxu0
      %v2011 = vadd.f32 %v1952, %v2010
      %2012 = vmatmul.bf16.gmra.mxu0 %v521
      %v2013 = vpop.f32.mrf.mxu0
      %v2014 = vadd.f32 %v1955, %v2013
      %v2015 = vpop.f32.mrf.mxu0
      %v2016 = vadd.f32 %v1957, %v2015
      %2017 = vmatmul.bf16.gmra.mxu0 %v525
      %v2018 = vpop.f32.mrf.mxu0
      %v2019 = vadd.f32 %v1960, %v2018
      %v2020 = vpop.f32.mrf.mxu0
      %v2021 = vadd.f32 %v1962, %v2020
      %2022 = vmatmul.bf16.gmra.mxu0 %v529
      %v2023 = vpop.f32.mrf.mxu0
      %v2024 = vadd.f32 %v1965, %v2023
      %v2025 = vpop.f32.mrf.mxu0
      %v2026 = vadd.f32 %v1967, %v2025
      %2027 = vmatmul.bf16.gmra.mxu0 %v533
      %v2028 = vpop.f32.mrf.mxu0
      %v2029 = vadd.f32 %v1970, %v2028
      %v2030 = vpop.f32.mrf.mxu0
      %v2031 = vadd.f32 %v1972, %v2030
      %2032 = vmatmul.bf16.gmra.mxu0 %v537
      %v2033 = vpop.f32.mrf.mxu0
      %v2034 = vadd.f32 %v1975, %v2033
      %v2035 = vpop.f32.mrf.mxu0
      %v2036 = vadd.f32 %v1977, %v2035
      %2037 = vmatmul.bf16.gmra.mxu0 %v541
      %v2038 = vpop.f32.mrf.mxu0
      %v2039 = vadd.f32 %v1980, %v2038
      %v2040 = vpop.f32.mrf.mxu0
      %v2041 = vadd.f32 %v1982, %v2040
      %2042 = vmatmul.bf16.gmra.mxu0 %v545
      %v2043 = vpop.f32.mrf.mxu0
      %v2044 = vadd.f32 %v1985, %v2043
      %v2045 = vpop.f32.mrf.mxu0
      %v2046 = vadd.f32 %v1987, %v2045
      %2047 = vmatmul.bf16.gmra.mxu0 %v549
      %v2048 = vpop.f32.mrf.mxu0
      %v2049 = vadd.f32 %v1990, %v2048
      %v2050 = vpop.f32.mrf.mxu0
      %v2051 = vadd.f32 %v1992, %v2050
      %2052 = vmatmul.bf16.gmra.mxu0 %v553
      %v2053 = vpop.f32.mrf.mxu0
      %v2054 = vadd.f32 %v1995, %v2053
      %v2055 = vpop.f32.mrf.mxu0
      %v2056 = vadd.f32 %v1997, %v2055
      %2057 = vdwg.mxu0
      %2058 = vmatpush.bf16.msra.mxu0 0
      %2059 = vmatpush.bf16.msra.mxu0 0
      %2060 = vmatpush.bf16.msra.mxu0 0
      %2061 = vmatpush.bf16.msra.mxu0 0
      %2062 = vmatpush.bf16.msra.mxu0 0
      %2063 = vmatpush.bf16.msra.mxu0 0
      %2064 = vmatpush.bf16.msra.mxu0 %v1398
      %2065 = vmatpush.bf16.msra.mxu0 %v1199
      %2066 = vmatmul.bf16.gmra.mxu0 %v1361
      %v2067 = vpop.f32.mrf.mxu0
      %v2068 = vadd.f32 %v2009, %v2067
      %v2069 = vpop.f32.mrf.mxu0
      %v2070 = vadd.f32 %v2011, %v2069
      %2071 = vmatmul.bf16.gmra.mxu0 %v1364
      %v2072 = vpop.f32.mrf.mxu0
      %v2073 = vadd.f32 %v2014, %v2072
      %v2074 = vpop.f32.mrf.mxu0
      %v2075 = vadd.f32 %v2016, %v2074
      %2076 = vmatmul.bf16.gmra.mxu0 %v1367
      %v2077 = vpop.f32.mrf.mxu0
      %v2078 = vadd.f32 %v2019, %v2077
      %v2079 = vpop.f32.mrf.mxu0
      %v2080 = vadd.f32 %v2021, %v2079
      %2081 = vmatmul.bf16.gmra.mxu0 %v1370
      %v2082 = vpop.f32.mrf.mxu0
      %v2083 = vadd.f32 %v2024, %v2082
      %v2084 = vpop.f32.mrf.mxu0
      %v2085 = vadd.f32 %v2026, %v2084
      %2086 = vmatmul.bf16.gmra.mxu0 %v1373
      %v2087 = vpop.f32.mrf.mxu0
      %v2088 = vadd.f32 %v2029, %v2087
      %v2089 = vpop.f32.mrf.mxu0
      %v2090 = vadd.f32 %v2031, %v2089
      %2091 = vmatmul.bf16.gmra.mxu0 %v1376
      %v2092 = vpop.f32.mrf.mxu0
      %v2093 = vadd.f32 %v2034, %v2092
      %v2094 = vpop.f32.mrf.mxu0
      %v2095 = vadd.f32 %v2036, %v2094
      %2096 = vmatmul.bf16.gmra.mxu0 %v1379
      %v2097 = vpop.f32.mrf.mxu0
      %v2098 = vadd.f32 %v2039, %v2097
      %v2099 = vpop.f32.mrf.mxu0
      %v2100 = vadd.f32 %v2041, %v2099
      %2101 = vmatmul.bf16.gmra.mxu0 %v1382
      %v2102 = vpop.f32.mrf.mxu0
      %v2103 = vadd.f32 %v2044, %v2102
      %v2104 = vpop.f32.mrf.mxu0
      %v2105 = vadd.f32 %v2046, %v2104
      %2106 = vmatmul.bf16.gmra.mxu0 %v1385
      %v2107 = vpop.f32.mrf.mxu0
      %v2108 = vadd.f32 %v2049, %v2107
      %v2109 = vpop.f32.mrf.mxu0
      %v2110 = vadd.f32 %v2051, %v2109
      %2111 = vmatmul.bf16.gmra.mxu0 %v1388
      %v2112 = vpop.f32.mrf.mxu0
      %v2113 = vadd.f32 %v2054, %v2112
      %v2114 = vpop.f32.mrf.mxu0
      %v2115 = vadd.f32 %v2056, %v2114
      %2116 = vdwg.mxu0
      %2117 = vmatpush.bf16.msra.mxu0 %v1098
      %2118 = vmatpush.bf16.msra.mxu0 %v1092
      %2119 = vmatpush.bf16.msra.mxu0 %v1086
      %2120 = vmatpush.bf16.msra.mxu0 %v1080
      %2121 = vmatpush.bf16.msra.mxu0 %v1074
      %2122 = vmatpush.bf16.msra.mxu0 %v1068
      %2123 = vmatpush.bf16.msra.mxu0 %v1062
      %2124 = vmatpush.bf16.msra.mxu0 %v1056
      %2125 = vmatmul.bf16.gmra.mxu0 %v515
      %v2126 = vpop.f32.mrf.mxu0
      %v2127 = vadd.f32 0.0, %v2126
      %v2128 = vpop.f32.mrf.mxu0
      %v2129 = vadd.f32 0.0, %v2128
      %2130 = vmatmul.bf16.gmra.mxu0 %v519
      %v2131 = vpop.f32.mrf.mxu0
      %v2132 = vadd.f32 0.0, %v2131
      %v2133 = vpop.f32.mrf.mxu0
      %v2134 = vadd.f32 0.0, %v2133
      %2135 = vmatmul.bf16.gmra.mxu0 %v523
      %v2136 = vpop.f32.mrf.mxu0
      %v2137 = vadd.f32 0.0, %v2136
      %v2138 = vpop.f32.mrf.mxu0
      %v2139 = vadd.f32 0.0, %v2138
      %2140 = vmatmul.bf16.gmra.mxu0 %v527
      %v2141 = vpop.f32.mrf.mxu0
      %v2142 = vadd.f32 0.0, %v2141
      %v2143 = vpop.f32.mrf.mxu0
      %v2144 = vadd.f32 0.0, %v2143
      %2145 = vmatmul.bf16.gmra.mxu0 %v531
      %v2146 = vpop.f32.mrf.mxu0
      %v2147 = vadd.f32 0.0, %v2146
      %v2148 = vpop.f32.mrf.mxu0
      %v2149 = vadd.f32 0.0, %v2148
      %2150 = vmatmul.bf16.gmra.mxu0 %v535
      %v2151 = vpop.f32.mrf.mxu0
      %v2152 = vadd.f32 0.0, %v2151
      %v2153 = vpop.f32.mrf.mxu0
      %v2154 = vadd.f32 0.0, %v2153
      %2155 = vmatmul.bf16.gmra.mxu0 %v539
      %v2156 = vpop.f32.mrf.mxu0
      %v2157 = vadd.f32 0.0, %v2156
      %v2158 = vpop.f32.mrf.mxu0
      %v2159 = vadd.f32 0.0, %v2158
      %2160 = vmatmul.bf16.gmra.mxu0 %v543
      %v2161 = vpop.f32.mrf.mxu0
      %v2162 = vadd.f32 0.0, %v2161
      %v2163 = vpop.f32.mrf.mxu0
      %v2164 = vadd.f32 0.0, %v2163
      %2165 = vmatmul.bf16.gmra.mxu0 %v547
      %v2166 = vpop.f32.mrf.mxu0
      %v2167 = vadd.f32 0.0, %v2166
      %v2168 = vpop.f32.mrf.mxu0
      %v2169 = vadd.f32 0.0, %v2168
      %2170 = vmatmul.bf16.gmra.mxu0 %v551
      %v2171 = vpop.f32.mrf.mxu0
      %v2172 = vadd.f32 0.0, %v2171
      %v2173 = vpop.f32.mrf.mxu0
      %v2174 = vadd.f32 0.0, %v2173
      %2175 = vdwg.mxu0
      %2176 = vmatpush.bf16.msra.mxu0 %v1146
      %2177 = vmatpush.bf16.msra.mxu0 %v1140
      %2178 = vmatpush.bf16.msra.mxu0 %v1134
      %2179 = vmatpush.bf16.msra.mxu0 %v1128
      %2180 = vmatpush.bf16.msra.mxu0 %v1122
      %2181 = vmatpush.bf16.msra.mxu0 %v1116
      %2182 = vmatpush.bf16.msra.mxu0 %v1110
      %2183 = vmatpush.bf16.msra.mxu0 %v1104
      %2184 = vmatmul.bf16.gmra.mxu0 %v516
      %v2185 = vpop.f32.mrf.mxu0
      %v2186 = vadd.f32 %v2127, %v2185
      %v2187 = vpop.f32.mrf.mxu0
      %v2188 = vadd.f32 %v2129, %v2187
      %2189 = vmatmul.bf16.gmra.mxu0 %v520
      %v2190 = vpop.f32.mrf.mxu0
      %v2191 = vadd.f32 %v2132, %v2190
      %v2192 = vpop.f32.mrf.mxu0
      %v2193 = vadd.f32 %v2134, %v2192
      %2194 = vmatmul.bf16.gmra.mxu0 %v524
      %v2195 = vpop.f32.mrf.mxu0
      %v2196 = vadd.f32 %v2137, %v2195
      %v2197 = vpop.f32.mrf.mxu0
      %v2198 = vadd.f32 %v2139, %v2197
      %2199 = vmatmul.bf16.gmra.mxu0 %v528
      %v2200 = vpop.f32.mrf.mxu0
      %v2201 = vadd.f32 %v2142, %v2200
      %v2202 = vpop.f32.mrf.mxu0
      %v2203 = vadd.f32 %v2144, %v2202
      %2204 = vmatmul.bf16.gmra.mxu0 %v532
      %v2205 = vpop.f32.mrf.mxu0
      %v2206 = vadd.f32 %v2147, %v2205
      %v2207 = vpop.f32.mrf.mxu0
      %v2208 = vadd.f32 %v2149, %v2207
      %2209 = vmatmul.bf16.gmra.mxu0 %v536
      %v2210 = vpop.f32.mrf.mxu0
      %v2211 = vadd.f32 %v2152, %v2210
      %v2212 = vpop.f32.mrf.mxu0
      %v2213 = vadd.f32 %v2154, %v2212
      %2214 = vmatmul.bf16.gmra.mxu0 %v540
      %v2215 = vpop.f32.mrf.mxu0
      %v2216 = vadd.f32 %v2157, %v2215
      %v2217 = vpop.f32.mrf.mxu0
      %v2218 = vadd.f32 %v2159, %v2217
      %2219 = vmatmul.bf16.gmra.mxu0 %v544
      %v2220 = vpop.f32.mrf.mxu0
      %v2221 = vadd.f32 %v2162, %v2220
      %v2222 = vpop.f32.mrf.mxu0
      %v2223 = vadd.f32 %v2164, %v2222
      %2224 = vmatmul.bf16.gmra.mxu0 %v548
      %v2225 = vpop.f32.mrf.mxu0
      %v2226 = vadd.f32 %v2167, %v2225
      %v2227 = vpop.f32.mrf.mxu0
      %v2228 = vadd.f32 %v2169, %v2227
      %2229 = vmatmul.bf16.gmra.mxu0 %v552
      %v2230 = vpop.f32.mrf.mxu0
      %v2231 = vadd.f32 %v2172, %v2230
      %v2232 = vpop.f32.mrf.mxu0
      %v2233 = vadd.f32 %v2174, %v2232
      %2234 = vdwg.mxu0
      %2235 = vmatpush.bf16.msra.mxu0 %v1194
      %2236 = vmatpush.bf16.msra.mxu0 %v1188
      %2237 = vmatpush.bf16.msra.mxu0 %v1182
      %2238 = vmatpush.bf16.msra.mxu0 %v1176
      %2239 = vmatpush.bf16.msra.mxu0 %v1170
      %2240 = vmatpush.bf16.msra.mxu0 %v1164
      %2241 = vmatpush.bf16.msra.mxu0 %v1158
      %2242 = vmatpush.bf16.msra.mxu0 %v1152
      %2243 = vmatmul.bf16.gmra.mxu0 %v517
      %v2244 = vpop.f32.mrf.mxu0
      %v2245 = vadd.f32 %v2186, %v2244
      %v2246 = vpop.f32.mrf.mxu0
      %v2247 = vadd.f32 %v2188, %v2246
      %2248 = vmatmul.bf16.gmra.mxu0 %v521
      %v2249 = vpop.f32.mrf.mxu0
      %v2250 = vadd.f32 %v2191, %v2249
      %v2251 = vpop.f32.mrf.mxu0
      %v2252 = vadd.f32 %v2193, %v2251
      %2253 = vmatmul.bf16.gmra.mxu0 %v525
      %v2254 = vpop.f32.mrf.mxu0
      %v2255 = vadd.f32 %v2196, %v2254
      %v2256 = vpop.f32.mrf.mxu0
      %v2257 = vadd.f32 %v2198, %v2256
      %2258 = vmatmul.bf16.gmra.mxu0 %v529
      %v2259 = vpop.f32.mrf.mxu0
      %v2260 = vadd.f32 %v2201, %v2259
      %v2261 = vpop.f32.mrf.mxu0
      %v2262 = vadd.f32 %v2203, %v2261
      %2263 = vmatmul.bf16.gmra.mxu0 %v533
      %v2264 = vpop.f32.mrf.mxu0
      %v2265 = vadd.f32 %v2206, %v2264
      %v2266 = vpop.f32.mrf.mxu0
      %v2267 = vadd.f32 %v2208, %v2266
      %2268 = vmatmul.bf16.gmra.mxu0 %v537
      %v2269 = vpop.f32.mrf.mxu0
      %v2270 = vadd.f32 %v2211, %v2269
      %v2271 = vpop.f32.mrf.mxu0
      %v2272 = vadd.f32 %v2213, %v2271
      %2273 = vmatmul.bf16.gmra.mxu0 %v541
      %v2274 = vpop.f32.mrf.mxu0
      %v2275 = vadd.f32 %v2216, %v2274
      %v2276 = vpop.f32.mrf.mxu0
      %v2277 = vadd.f32 %v2218, %v2276
      %2278 = vmatmul.bf16.gmra.mxu0 %v545
      %v2279 = vpop.f32.mrf.mxu0
      %v2280 = vadd.f32 %v2221, %v2279
      %v2281 = vpop.f32.mrf.mxu0
      %v2282 = vadd.f32 %v2223, %v2281
      %2283 = vmatmul.bf16.gmra.mxu0 %v549
      %v2284 = vpop.f32.mrf.mxu0
      %v2285 = vadd.f32 %v2226, %v2284
      %v2286 = vpop.f32.mrf.mxu0
      %v2287 = vadd.f32 %v2228, %v2286
      %2288 = vmatmul.bf16.gmra.mxu0 %v553
      %v2289 = vpop.f32.mrf.mxu0
      %v2290 = vadd.f32 %v2231, %v2289
      %v2291 = vpop.f32.mrf.mxu0
      %v2292 = vadd.f32 %v2233, %v2291
      %2293 = vdwg.mxu0
      %2294 = vmatpush.bf16.msra.mxu0 0
      %2295 = vmatpush.bf16.msra.mxu0 0
      %2296 = vmatpush.bf16.msra.mxu0 0
      %2297 = vmatpush.bf16.msra.mxu0 0
      %2298 = vmatpush.bf16.msra.mxu0 0
      %2299 = vmatpush.bf16.msra.mxu0 0
      %2300 = vmatpush.bf16.msra.mxu0 %v1401
      %2301 = vmatpush.bf16.msra.mxu0 %v1200
      %2302 = vmatmul.bf16.gmra.mxu0 %v1361
      %v2303 = vpop.f32.mrf.mxu0
      %v2304 = vadd.f32 %v2245, %v2303
      %v2305 = vpop.f32.mrf.mxu0
      %v2306 = vadd.f32 %v2247, %v2305
      %2307 = vmatmul.bf16.gmra.mxu0 %v1364
      %v2308 = vpop.f32.mrf.mxu0
      %v2309 = vadd.f32 %v2250, %v2308
      %v2310 = vpop.f32.mrf.mxu0
      %v2311 = vadd.f32 %v2252, %v2310
      %2312 = vmatmul.bf16.gmra.mxu0 %v1367
      %v2313 = vpop.f32.mrf.mxu0
      %v2314 = vadd.f32 %v2255, %v2313
      %v2315 = vpop.f32.mrf.mxu0
      %v2316 = vadd.f32 %v2257, %v2315
      %2317 = vmatmul.bf16.gmra.mxu0 %v1370
      %v2318 = vpop.f32.mrf.mxu0
      %v2319 = vadd.f32 %v2260, %v2318
      %v2320 = vpop.f32.mrf.mxu0
      %v2321 = vadd.f32 %v2262, %v2320
      %2322 = vmatmul.bf16.gmra.mxu0 %v1373
      %v2323 = vpop.f32.mrf.mxu0
      %v2324 = vadd.f32 %v2265, %v2323
      %v2325 = vpop.f32.mrf.mxu0
      %v2326 = vadd.f32 %v2267, %v2325
      %2327 = vmatmul.bf16.gmra.mxu0 %v1376
      %v2328 = vpop.f32.mrf.mxu0
      %v2329 = vadd.f32 %v2270, %v2328
      %v2330 = vpop.f32.mrf.mxu0
      %v2331 = vadd.f32 %v2272, %v2330
      %2332 = vmatmul.bf16.gmra.mxu0 %v1379
      %v2333 = vpop.f32.mrf.mxu0
      %v2334 = vadd.f32 %v2275, %v2333
      %v2335 = vpop.f32.mrf.mxu0
      %v2336 = vadd.f32 %v2277, %v2335
      %2337 = vmatmul.bf16.gmra.mxu0 %v1382
      %v2338 = vpop.f32.mrf.mxu0
      %v2339 = vadd.f32 %v2280, %v2338
      %v2340 = vpop.f32.mrf.mxu0
      %v2341 = vadd.f32 %v2282, %v2340
      %2342 = vmatmul.bf16.gmra.mxu0 %v1385
      %v2343 = vpop.f32.mrf.mxu0
      %v2344 = vadd.f32 %v2285, %v2343
      %v2345 = vpop.f32.mrf.mxu0
      %v2346 = vadd.f32 %v2287, %v2345
      %2347 = vmatmul.bf16.gmra.mxu0 %v1388
      %v2348 = vpop.f32.mrf.mxu0
      %v2349 = vadd.f32 %v2290, %v2348
      %v2350 = vpop.f32.mrf.mxu0
      %v2351 = vadd.f32 %v2292, %v2350
      %2352 = vdwg.mxu0
      %2353 = vmatpush.bf16.msra.mxu0 %v1099
      %2354 = vmatpush.bf16.msra.mxu0 %v1093
      %2355 = vmatpush.bf16.msra.mxu0 %v1087
      %2356 = vmatpush.bf16.msra.mxu0 %v1081
      %2357 = vmatpush.bf16.msra.mxu0 %v1075
      %2358 = vmatpush.bf16.msra.mxu0 %v1069
      %2359 = vmatpush.bf16.msra.mxu0 %v1063
      %2360 = vmatpush.bf16.msra.mxu0 %v1057
      %2361 = vmatmul.bf16.gmra.mxu0 %v515
      %v2362 = vpop.f32.mrf.mxu0
      %v2363 = vadd.f32 0.0, %v2362
      %v2364 = vpop.f32.mrf.mxu0
      %v2365 = vadd.f32 0.0, %v2364
      %2366 = vmatmul.bf16.gmra.mxu0 %v519
      %v2367 = vpop.f32.mrf.mxu0
      %v2368 = vadd.f32 0.0, %v2367
      %v2369 = vpop.f32.mrf.mxu0
      %v2370 = vadd.f32 0.0, %v2369
      %2371 = vmatmul.bf16.gmra.mxu0 %v523
      %v2372 = vpop.f32.mrf.mxu0
      %v2373 = vadd.f32 0.0, %v2372
      %v2374 = vpop.f32.mrf.mxu0
      %v2375 = vadd.f32 0.0, %v2374
      %2376 = vmatmul.bf16.gmra.mxu0 %v527
      %v2377 = vpop.f32.mrf.mxu0
      %v2378 = vadd.f32 0.0, %v2377
      %v2379 = vpop.f32.mrf.mxu0
      %v2380 = vadd.f32 0.0, %v2379
      %2381 = vmatmul.bf16.gmra.mxu0 %v531
      %v2382 = vpop.f32.mrf.mxu0
      %v2383 = vadd.f32 0.0, %v2382
      %v2384 = vpop.f32.mrf.mxu0
      %v2385 = vadd.f32 0.0, %v2384
      %2386 = vmatmul.bf16.gmra.mxu0 %v535
      %v2387 = vpop.f32.mrf.mxu0
      %v2388 = vadd.f32 0.0, %v2387
      %v2389 = vpop.f32.mrf.mxu0
      %v2390 = vadd.f32 0.0, %v2389
      %2391 = vmatmul.bf16.gmra.mxu0 %v539
      %v2392 = vpop.f32.mrf.mxu0
      %v2393 = vadd.f32 0.0, %v2392
      %v2394 = vpop.f32.mrf.mxu0
      %v2395 = vadd.f32 0.0, %v2394
      %2396 = vmatmul.bf16.gmra.mxu0 %v543
      %v2397 = vpop.f32.mrf.mxu0
      %v2398 = vadd.f32 0.0, %v2397
      %v2399 = vpop.f32.mrf.mxu0
      %v2400 = vadd.f32 0.0, %v2399
      %2401 = vmatmul.bf16.gmra.mxu0 %v547
      %v2402 = vpop.f32.mrf.mxu0
      %v2403 = vadd.f32 0.0, %v2402
      %v2404 = vpop.f32.mrf.mxu0
      %v2405 = vadd.f32 0.0, %v2404
      %2406 = vmatmul.bf16.gmra.mxu0 %v551
      %v2407 = vpop.f32.mrf.mxu0
      %v2408 = vadd.f32 0.0, %v2407
      %v2409 = vpop.f32.mrf.mxu0
      %v2410 = vadd.f32 0.0, %v2409
      %2411 = vdwg.mxu0
      %2412 = vmatpush.bf16.msra.mxu0 %v1147
      %2413 = vmatpush.bf16.msra.mxu0 %v1141
      %2414 = vmatpush.bf16.msra.mxu0 %v1135
      %2415 = vmatpush.bf16.msra.mxu0 %v1129
      %2416 = vmatpush.bf16.msra.mxu0 %v1123
      %2417 = vmatpush.bf16.msra.mxu0 %v1117
      %2418 = vmatpush.bf16.msra.mxu0 %v1111
      %2419 = vmatpush.bf16.msra.mxu0 %v1105
      %2420 = vmatmul.bf16.gmra.mxu0 %v516
      %v2421 = vpop.f32.mrf.mxu0
      %v2422 = vadd.f32 %v2363, %v2421
      %v2423 = vpop.f32.mrf.mxu0
      %v2424 = vadd.f32 %v2365, %v2423
      %2425 = vmatmul.bf16.gmra.mxu0 %v520
      %v2426 = vpop.f32.mrf.mxu0
      %v2427 = vadd.f32 %v2368, %v2426
      %v2428 = vpop.f32.mrf.mxu0
      %v2429 = vadd.f32 %v2370, %v2428
      %2430 = vmatmul.bf16.gmra.mxu0 %v524
      %v2431 = vpop.f32.mrf.mxu0
      %v2432 = vadd.f32 %v2373, %v2431
      %v2433 = vpop.f32.mrf.mxu0
      %v2434 = vadd.f32 %v2375, %v2433
      %2435 = vmatmul.bf16.gmra.mxu0 %v528
      %v2436 = vpop.f32.mrf.mxu0
      %v2437 = vadd.f32 %v2378, %v2436
      %v2438 = vpop.f32.mrf.mxu0
      %v2439 = vadd.f32 %v2380, %v2438
      %2440 = vmatmul.bf16.gmra.mxu0 %v532
      %v2441 = vpop.f32.mrf.mxu0
      %v2442 = vadd.f32 %v2383, %v2441
      %v2443 = vpop.f32.mrf.mxu0
      %v2444 = vadd.f32 %v2385, %v2443
      %2445 = vmatmul.bf16.gmra.mxu0 %v536
      %v2446 = vpop.f32.mrf.mxu0
      %v2447 = vadd.f32 %v2388, %v2446
      %v2448 = vpop.f32.mrf.mxu0
      %v2449 = vadd.f32 %v2390, %v2448
      %2450 = vmatmul.bf16.gmra.mxu0 %v540
      %v2451 = vpop.f32.mrf.mxu0
      %v2452 = vadd.f32 %v2393, %v2451
      %v2453 = vpop.f32.mrf.mxu0
      %v2454 = vadd.f32 %v2395, %v2453
      %2455 = vmatmul.bf16.gmra.mxu0 %v544
      %v2456 = vpop.f32.mrf.mxu0
      %v2457 = vadd.f32 %v2398, %v2456
      %v2458 = vpop.f32.mrf.mxu0
      %v2459 = vadd.f32 %v2400, %v2458
      %2460 = vmatmul.bf16.gmra.mxu0 %v548
      %v2461 = vpop.f32.mrf.mxu0
      %v2462 = vadd.f32 %v2403, %v2461
      %v2463 = vpop.f32.mrf.mxu0
      %v2464 = vadd.f32 %v2405, %v2463
      %2465 = vmatmul.bf16.gmra.mxu0 %v552
      %v2466 = vpop.f32.mrf.mxu0
      %v2467 = vadd.f32 %v2408, %v2466
      %v2468 = vpop.f32.mrf.mxu0
      %v2469 = vadd.f32 %v2410, %v2468
      %2470 = vdwg.mxu0
      %2471 = vmatpush.bf16.msra.mxu0 %v1195
      %2472 = vmatpush.bf16.msra.mxu0 %v1189
      %2473 = vmatpush.bf16.msra.mxu0 %v1183
      %2474 = vmatpush.bf16.msra.mxu0 %v1177
      %2475 = vmatpush.bf16.msra.mxu0 %v1171
      %2476 = vmatpush.bf16.msra.mxu0 %v1165
      %2477 = vmatpush.bf16.msra.mxu0 %v1159
      %2478 = vmatpush.bf16.msra.mxu0 %v1153
      %2479 = vmatmul.bf16.gmra.mxu0 %v517
      %v2480 = vpop.f32.mrf.mxu0
      %v2481 = vadd.f32 %v2422, %v2480
      %v2482 = vpop.f32.mrf.mxu0
      %v2483 = vadd.f32 %v2424, %v2482
      %2484 = vmatmul.bf16.gmra.mxu0 %v521
      %v2485 = vpop.f32.mrf.mxu0
      %v2486 = vadd.f32 %v2427, %v2485
      %v2487 = vpop.f32.mrf.mxu0
      %v2488 = vadd.f32 %v2429, %v2487
      %2489 = vmatmul.bf16.gmra.mxu0 %v525
      %v2490 = vpop.f32.mrf.mxu0
      %v2491 = vadd.f32 %v2432, %v2490
      %v2492 = vpop.f32.mrf.mxu0
      %v2493 = vadd.f32 %v2434, %v2492
      %2494 = vmatmul.bf16.gmra.mxu0 %v529
      %v2495 = vpop.f32.mrf.mxu0
      %v2496 = vadd.f32 %v2437, %v2495
      %v2497 = vpop.f32.mrf.mxu0
      %v2498 = vadd.f32 %v2439, %v2497
      %2499 = vmatmul.bf16.gmra.mxu0 %v533
      %v2500 = vpop.f32.mrf.mxu0
      %v2501 = vadd.f32 %v2442, %v2500
      %v2502 = vpop.f32.mrf.mxu0
      %v2503 = vadd.f32 %v2444, %v2502
      %2504 = vmatmul.bf16.gmra.mxu0 %v537
      %v2505 = vpop.f32.mrf.mxu0
      %v2506 = vadd.f32 %v2447, %v2505
      %v2507 = vpop.f32.mrf.mxu0
      %v2508 = vadd.f32 %v2449, %v2507
      %2509 = vmatmul.bf16.gmra.mxu0 %v541
      %v2510 = vpop.f32.mrf.mxu0
      %v2511 = vadd.f32 %v2452, %v2510
      %v2512 = vpop.f32.mrf.mxu0
      %v2513 = vadd.f32 %v2454, %v2512
      %2514 = vmatmul.bf16.gmra.mxu0 %v545
      %v2515 = vpop.f32.mrf.mxu0
      %v2516 = vadd.f32 %v2457, %v2515
      %v2517 = vpop.f32.mrf.mxu0
      %v2518 = vadd.f32 %v2459, %v2517
      %2519 = vmatmul.bf16.gmra.mxu0 %v549
      %v2520 = vpop.f32.mrf.mxu0
      %v2521 = vadd.f32 %v2462, %v2520
      %v2522 = vpop.f32.mrf.mxu0
      %v2523 = vadd.f32 %v2464, %v2522
      %2524 = vmatmul.bf16.gmra.mxu0 %v553
      %v2525 = vpop.f32.mrf.mxu0
      %v2526 = vadd.f32 %v2467, %v2525
      %v2527 = vpop.f32.mrf.mxu0
      %v2528 = vadd.f32 %v2469, %v2527
      %2529 = vdwg.mxu0
      %2530 = vmatpush.bf16.msra.mxu0 0
      %2531 = vmatpush.bf16.msra.mxu0 0
      %2532 = vmatpush.bf16.msra.mxu0 0
      %2533 = vmatpush.bf16.msra.mxu0 0
      %2534 = vmatpush.bf16.msra.mxu0 0
      %2535 = vmatpush.bf16.msra.mxu0 0
      %2536 = vmatpush.bf16.msra.mxu0 %v1404
      %2537 = vmatpush.bf16.msra.mxu0 %v1201
      %2538 = vmatmul.bf16.gmra.mxu0 %v1361
      %v2539 = vpop.f32.mrf.mxu0
      %v2540 = vadd.f32 %v2481, %v2539
      %v2541 = vpop.f32.mrf.mxu0
      %v2542 = vadd.f32 %v2483, %v2541
      %2543 = vmatmul.bf16.gmra.mxu0 %v1364
      %v2544 = vpop.f32.mrf.mxu0
      %v2545 = vadd.f32 %v2486, %v2544
      %v2546 = vpop.f32.mrf.mxu0
      %v2547 = vadd.f32 %v2488, %v2546
      %2548 = vmatmul.bf16.gmra.mxu0 %v1367
      %v2549 = vpop.f32.mrf.mxu0
      %v2550 = vadd.f32 %v2491, %v2549
      %v2551 = vpop.f32.mrf.mxu0
      %v2552 = vadd.f32 %v2493, %v2551
      %2553 = vmatmul.bf16.gmra.mxu0 %v1370
      %v2554 = vpop.f32.mrf.mxu0
      %v2555 = vadd.f32 %v2496, %v2554
      %v2556 = vpop.f32.mrf.mxu0
      %v2557 = vadd.f32 %v2498, %v2556
      %2558 = vmatmul.bf16.gmra.mxu0 %v1373
      %v2559 = vpop.f32.mrf.mxu0
      %v2560 = vadd.f32 %v2501, %v2559
      %v2561 = vpop.f32.mrf.mxu0
      %v2562 = vadd.f32 %v2503, %v2561
      %2563 = vmatmul.bf16.gmra.mxu0 %v1376
      %v2564 = vpop.f32.mrf.mxu0
      %v2565 = vadd.f32 %v2506, %v2564
      %v2566 = vpop.f32.mrf.mxu0
      %v2567 = vadd.f32 %v2508, %v2566
      %2568 = vmatmul.bf16.gmra.mxu0 %v1379
      %v2569 = vpop.f32.mrf.mxu0
      %v2570 = vadd.f32 %v2511, %v2569
      %v2571 = vpop.f32.mrf.mxu0
      %v2572 = vadd.f32 %v2513, %v2571
      %2573 = vmatmul.bf16.gmra.mxu0 %v1382
      %v2574 = vpop.f32.mrf.mxu0
      %v2575 = vadd.f32 %v2516, %v2574
      %v2576 = vpop.f32.mrf.mxu0
      %v2577 = vadd.f32 %v2518, %v2576
      %2578 = vmatmul.bf16.gmra.mxu0 %v1385
      %v2579 = vpop.f32.mrf.mxu0
      %v2580 = vadd.f32 %v2521, %v2579
      %v2581 = vpop.f32.mrf.mxu0
      %v2582 = vadd.f32 %v2523, %v2581
      %2583 = vmatmul.bf16.gmra.mxu0 %v1388
      %v2584 = vpop.f32.mrf.mxu0
      %v2585 = vadd.f32 %v2526, %v2584
      %v2586 = vpop.f32.mrf.mxu0
      %v2587 = vadd.f32 %v2528, %v2586
      %2588 = vdwg.mxu0
      %2589 = vmatpush.bf16.msra.mxu0 %v1100
      %2590 = vmatpush.bf16.msra.mxu0 %v1094
      %2591 = vmatpush.bf16.msra.mxu0 %v1088
      %2592 = vmatpush.bf16.msra.mxu0 %v1082
      %2593 = vmatpush.bf16.msra.mxu0 %v1076
      %2594 = vmatpush.bf16.msra.mxu0 %v1070
      %2595 = vmatpush.bf16.msra.mxu0 %v1064
      %2596 = vmatpush.bf16.msra.mxu0 %v1058
      %2597 = vmatmul.bf16.gmra.mxu0 %v515
      %v2598 = vpop.f32.mrf.mxu0
      %v2599 = vadd.f32 0.0, %v2598
      %v2600 = vpop.f32.mrf.mxu0
      %v2601 = vadd.f32 0.0, %v2600
      %2602 = vmatmul.bf16.gmra.mxu0 %v519
      %v2603 = vpop.f32.mrf.mxu0
      %v2604 = vadd.f32 0.0, %v2603
      %v2605 = vpop.f32.mrf.mxu0
      %v2606 = vadd.f32 0.0, %v2605
      %2607 = vmatmul.bf16.gmra.mxu0 %v523
      %v2608 = vpop.f32.mrf.mxu0
      %v2609 = vadd.f32 0.0, %v2608
      %v2610 = vpop.f32.mrf.mxu0
      %v2611 = vadd.f32 0.0, %v2610
      %2612 = vmatmul.bf16.gmra.mxu0 %v527
      %v2613 = vpop.f32.mrf.mxu0
      %v2614 = vadd.f32 0.0, %v2613
      %v2615 = vpop.f32.mrf.mxu0
      %v2616 = vadd.f32 0.0, %v2615
      %2617 = vmatmul.bf16.gmra.mxu0 %v531
      %v2618 = vpop.f32.mrf.mxu0
      %v2619 = vadd.f32 0.0, %v2618
      %v2620 = vpop.f32.mrf.mxu0
      %v2621 = vadd.f32 0.0, %v2620
      %2622 = vmatmul.bf16.gmra.mxu0 %v535
      %v2623 = vpop.f32.mrf.mxu0
      %v2624 = vadd.f32 0.0, %v2623
      %v2625 = vpop.f32.mrf.mxu0
      %v2626 = vadd.f32 0.0, %v2625
      %2627 = vmatmul.bf16.gmra.mxu0 %v539
      %v2628 = vpop.f32.mrf.mxu0
      %v2629 = vadd.f32 0.0, %v2628
      %v2630 = vpop.f32.mrf.mxu0
      %v2631 = vadd.f32 0.0, %v2630
      %2632 = vmatmul.bf16.gmra.mxu0 %v543
      %v2633 = vpop.f32.mrf.mxu0
      %v2634 = vadd.f32 0.0, %v2633
      %v2635 = vpop.f32.mrf.mxu0
      %v2636 = vadd.f32 0.0, %v2635
      %2637 = vmatmul.bf16.gmra.mxu0 %v547
      %v2638 = vpop.f32.mrf.mxu0
      %v2639 = vadd.f32 0.0, %v2638
      %v2640 = vpop.f32.mrf.mxu0
      %v2641 = vadd.f32 0.0, %v2640
      %2642 = vmatmul.bf16.gmra.mxu0 %v551
      %v2643 = vpop.f32.mrf.mxu0
      %v2644 = vadd.f32 0.0, %v2643
      %v2645 = vpop.f32.mrf.mxu0
      %v2646 = vadd.f32 0.0, %v2645
      %2647 = vdwg.mxu0
      %2648 = vmatpush.bf16.msra.mxu0 %v1148
      %2649 = vmatpush.bf16.msra.mxu0 %v1142
      %2650 = vmatpush.bf16.msra.mxu0 %v1136
      %2651 = vmatpush.bf16.msra.mxu0 %v1130
      %2652 = vmatpush.bf16.msra.mxu0 %v1124
      %2653 = vmatpush.bf16.msra.mxu0 %v1118
      %2654 = vmatpush.bf16.msra.mxu0 %v1112
      %2655 = vmatpush.bf16.msra.mxu0 %v1106
      %2656 = vmatmul.bf16.gmra.mxu0 %v516
      %v2657 = vpop.f32.mrf.mxu0
      %v2658 = vadd.f32 %v2599, %v2657
      %v2659 = vpop.f32.mrf.mxu0
      %v2660 = vadd.f32 %v2601, %v2659
      %2661 = vmatmul.bf16.gmra.mxu0 %v520
      %v2662 = vpop.f32.mrf.mxu0
      %v2663 = vadd.f32 %v2604, %v2662
      %v2664 = vpop.f32.mrf.mxu0
      %v2665 = vadd.f32 %v2606, %v2664
      %2666 = vmatmul.bf16.gmra.mxu0 %v524
      %v2667 = vpop.f32.mrf.mxu0
      %v2668 = vadd.f32 %v2609, %v2667
      %v2669 = vpop.f32.mrf.mxu0
      %v2670 = vadd.f32 %v2611, %v2669
      %2671 = vmatmul.bf16.gmra.mxu0 %v528
      %v2672 = vpop.f32.mrf.mxu0
      %v2673 = vadd.f32 %v2614, %v2672
      %v2674 = vpop.f32.mrf.mxu0
      %v2675 = vadd.f32 %v2616, %v2674
      %2676 = vmatmul.bf16.gmra.mxu0 %v532
      %v2677 = vpop.f32.mrf.mxu0
      %v2678 = vadd.f32 %v2619, %v2677
      %v2679 = vpop.f32.mrf.mxu0
      %v2680 = vadd.f32 %v2621, %v2679
      %2681 = vmatmul.bf16.gmra.mxu0 %v536
      %v2682 = vpop.f32.mrf.mxu0
      %v2683 = vadd.f32 %v2624, %v2682
      %v2684 = vpop.f32.mrf.mxu0
      %v2685 = vadd.f32 %v2626, %v2684
      %2686 = vmatmul.bf16.gmra.mxu0 %v540
      %v2687 = vpop.f32.mrf.mxu0
      %v2688 = vadd.f32 %v2629, %v2687
      %v2689 = vpop.f32.mrf.mxu0
      %v2690 = vadd.f32 %v2631, %v2689
      %2691 = vmatmul.bf16.gmra.mxu0 %v544
      %v2692 = vpop.f32.mrf.mxu0
      %v2693 = vadd.f32 %v2634, %v2692
      %v2694 = vpop.f32.mrf.mxu0
      %v2695 = vadd.f32 %v2636, %v2694
      %2696 = vmatmul.bf16.gmra.mxu0 %v548
      %v2697 = vpop.f32.mrf.mxu0
      %v2698 = vadd.f32 %v2639, %v2697
      %v2699 = vpop.f32.mrf.mxu0
      %v2700 = vadd.f32 %v2641, %v2699
      %2701 = vmatmul.bf16.gmra.mxu0 %v552
      %v2702 = vpop.f32.mrf.mxu0
      %v2703 = vadd.f32 %v2644, %v2702
      %v2704 = vpop.f32.mrf.mxu0
      %v2705 = vadd.f32 %v2646, %v2704
      %2706 = vdwg.mxu0
      %2707 = vmatpush.bf16.msra.mxu0 %v1196
      %2708 = vmatpush.bf16.msra.mxu0 %v1190
      %2709 = vmatpush.bf16.msra.mxu0 %v1184
      %2710 = vmatpush.bf16.msra.mxu0 %v1178
      %2711 = vmatpush.bf16.msra.mxu0 %v1172
      %2712 = vmatpush.bf16.msra.mxu0 %v1166
      %2713 = vmatpush.bf16.msra.mxu0 %v1160
      %2714 = vmatpush.bf16.msra.mxu0 %v1154
      %2715 = vmatmul.bf16.gmra.mxu0 %v517
      %v2716 = vpop.f32.mrf.mxu0
      %v2717 = vadd.f32 %v2658, %v2716
      %v2718 = vpop.f32.mrf.mxu0
      %v2719 = vadd.f32 %v2660, %v2718
      %2720 = vmatmul.bf16.gmra.mxu0 %v521
      %v2721 = vpop.f32.mrf.mxu0
      %v2722 = vadd.f32 %v2663, %v2721
      %v2723 = vpop.f32.mrf.mxu0
      %v2724 = vadd.f32 %v2665, %v2723
      %2725 = vmatmul.bf16.gmra.mxu0 %v525
      %v2726 = vpop.f32.mrf.mxu0
      %v2727 = vadd.f32 %v2668, %v2726
      %v2728 = vpop.f32.mrf.mxu0
      %v2729 = vadd.f32 %v2670, %v2728
      %2730 = vmatmul.bf16.gmra.mxu0 %v529
      %v2731 = vpop.f32.mrf.mxu0
      %v2732 = vadd.f32 %v2673, %v2731
      %v2733 = vpop.f32.mrf.mxu0
      %v2734 = vadd.f32 %v2675, %v2733
      %2735 = vmatmul.bf16.gmra.mxu0 %v533
      %v2736 = vpop.f32.mrf.mxu0
      %v2737 = vadd.f32 %v2678, %v2736
      %v2738 = vpop.f32.mrf.mxu0
      %v2739 = vadd.f32 %v2680, %v2738
      %2740 = vmatmul.bf16.gmra.mxu0 %v537
      %v2741 = vpop.f32.mrf.mxu0
      %v2742 = vadd.f32 %v2683, %v2741
      %v2743 = vpop.f32.mrf.mxu0
      %v2744 = vadd.f32 %v2685, %v2743
      %2745 = vmatmul.bf16.gmra.mxu0 %v541
      %v2746 = vpop.f32.mrf.mxu0
      %v2747 = vadd.f32 %v2688, %v2746
      %v2748 = vpop.f32.mrf.mxu0
      %v2749 = vadd.f32 %v2690, %v2748
      %2750 = vmatmul.bf16.gmra.mxu0 %v545
      %v2751 = vpop.f32.mrf.mxu0
      %v2752 = vadd.f32 %v2693, %v2751
      %v2753 = vpop.f32.mrf.mxu0
      %v2754 = vadd.f32 %v2695, %v2753
      %2755 = vmatmul.bf16.gmra.mxu0 %v549
      %v2756 = vpop.f32.mrf.mxu0
      %v2757 = vadd.f32 %v2698, %v2756
      %v2758 = vpop.f32.mrf.mxu0
      %v2759 = vadd.f32 %v2700, %v2758
      %2760 = vmatmul.bf16.gmra.mxu0 %v553
      %v2761 = vpop.f32.mrf.mxu0
      %v2762 = vadd.f32 %v2703, %v2761
      %v2763 = vpop.f32.mrf.mxu0
      %v2764 = vadd.f32 %v2705, %v2763
      %2765 = vdwg.mxu0
      %2766 = vmatpush.bf16.msra.mxu0 0
      %2767 = vmatpush.bf16.msra.mxu0 0
      %2768 = vmatpush.bf16.msra.mxu0 0
      %2769 = vmatpush.bf16.msra.mxu0 0
      %2770 = vmatpush.bf16.msra.mxu0 0
      %2771 = vmatpush.bf16.msra.mxu0 0
      %2772 = vmatpush.bf16.msra.mxu0 %v1407
      %2773 = vmatpush.bf16.msra.mxu0 %v1202
      %2774 = vmatmul.bf16.gmra.mxu0 %v1361
      %v2775 = vpop.f32.mrf.mxu0
      %v2776 = vadd.f32 %v2717, %v2775
      %v2777 = vpop.f32.mrf.mxu0
      %v2778 = vadd.f32 %v2719, %v2777
      %2779 = vmatmul.bf16.gmra.mxu0 %v1364
      %v2780 = vpop.f32.mrf.mxu0
      %v2781 = vadd.f32 %v2722, %v2780
      %v2782 = vpop.f32.mrf.mxu0
      %v2783 = vadd.f32 %v2724, %v2782
      %2784 = vmatmul.bf16.gmra.mxu0 %v1367
      %v2785 = vpop.f32.mrf.mxu0
      %v2786 = vadd.f32 %v2727, %v2785
      %v2787 = vpop.f32.mrf.mxu0
      %v2788 = vadd.f32 %v2729, %v2787
      %2789 = vmatmul.bf16.gmra.mxu0 %v1370
      %v2790 = vpop.f32.mrf.mxu0
      %v2791 = vadd.f32 %v2732, %v2790
      %v2792 = vpop.f32.mrf.mxu0
      %v2793 = vadd.f32 %v2734, %v2792
      %2794 = vmatmul.bf16.gmra.mxu0 %v1373
      %v2795 = vpop.f32.mrf.mxu0
      %v2796 = vadd.f32 %v2737, %v2795
      %v2797 = vpop.f32.mrf.mxu0
      %v2798 = vadd.f32 %v2739, %v2797
      %2799 = vmatmul.bf16.gmra.mxu0 %v1376
      %v2800 = vpop.f32.mrf.mxu0
      %v2801 = vadd.f32 %v2742, %v2800
      %v2802 = vpop.f32.mrf.mxu0
      %v2803 = vadd.f32 %v2744, %v2802
      %2804 = vmatmul.bf16.gmra.mxu0 %v1379
      %v2805 = vpop.f32.mrf.mxu0
      %v2806 = vadd.f32 %v2747, %v2805
      %v2807 = vpop.f32.mrf.mxu0
      %v2808 = vadd.f32 %v2749, %v2807
      %2809 = vmatmul.bf16.gmra.mxu0 %v1382
      %v2810 = vpop.f32.mrf.mxu0
      %v2811 = vadd.f32 %v2752, %v2810
      %v2812 = vpop.f32.mrf.mxu0
      %v2813 = vadd.f32 %v2754, %v2812
      %2814 = vmatmul.bf16.gmra.mxu0 %v1385
      %v2815 = vpop.f32.mrf.mxu0
      %v2816 = vadd.f32 %v2757, %v2815
      %v2817 = vpop.f32.mrf.mxu0
      %v2818 = vadd.f32 %v2759, %v2817
      %2819 = vmatmul.bf16.gmra.mxu0 %v1388
      %v2820 = vpop.f32.mrf.mxu0
      %v2821 = vadd.f32 %v2762, %v2820
      %v2822 = vpop.f32.mrf.mxu0
      %v2823 = vadd.f32 %v2764, %v2822
      %2824 = vdwg.mxu0
      %v2825 = vld [vmem:[%s192 + $0x20] sm:$0xff]
      %v2826 = vld [vmem:[%s192 + $0x28] sm:$0xff]
      %v2827 = vld [vmem:[%s192 + $0x30] sm:$0xff]
      %v2828 = vld [vmem:[%s192 + $0x38] sm:$0xff]
      %v2829 = vld [vmem:[%s192 + $0x40] sm:$0xff]
      %v2830 = vld [vmem:[%s192 + $0x48] sm:$0xff]
      %v2831 = vld [vmem:[%s192 + $0x50] sm:$0xff]
      %v2832 = vld [vmem:[%s192 + $0x58] sm:$0xff]
      %v2833 = vld [vmem:[%s192 + $0x60] sm:$0xff]
      %v2834 = vld [vmem:[%s192 + $0x68] sm:$0xff]
      %v2835 = vld [vmem:[%s192 + $0x70] sm:$0xff]
      %v2836 = vld [vmem:[%s192 + $0x78] sm:$0xff]
      %v2837 = vld [vmem:[%s192 + $0x80] sm:$0xff]
      %v2838 = vld [vmem:[%s192 + $0x88] sm:$0xff]
      %v2839 = vld [vmem:[%s192 + $0x90] sm:$0xff]
      %v2840 = vld [vmem:[%s192 + $0x98] sm:$0xff]
      %v2841 = vld [vmem:[%s192 + $0xa0] sm:$0xff]
      %v2842 = vld [vmem:[%s192 + $0xa8] sm:$0xff]
      %v2843 = vld [vmem:[%s192 + $0xb0] sm:$0xff]
      %v2844 = vld [vmem:[%s192 + $0xb8] sm:$0xff]
      %v2845 = vld [vmem:[%s192 + $0xc0] sm:$0xff]
      %v2846 = vld [vmem:[%s192 + $0xc8] sm:$0xff]
      %v2847 = vld [vmem:[%s192 + $0xd0] sm:$0xff]
      %v2848 = vld [vmem:[%s192 + $0xd8] sm:$0xff]
      %v2849 = vld [vmem:[%s192 + $0xe0] sm:$0xff]
      %v2850 = vld [vmem:[%s192 + $0xe8] sm:$0xff]
      %v2851 = vld [vmem:[%s192 + $0xf0] sm:$0xff]
      %v2852 = vld [vmem:[%s192 + $0xf8] sm:$0xff]
      %v2853 = vld [vmem:[%s192 + $0x100] sm:$0xff]
      %v2854 = vld [vmem:[%s192 + $0x108] sm:$0xff]
      %v2855 = vld [vmem:[%s192 + $0x110] sm:$0xff]
      %v2856 = vld [vmem:[%s192 + $0x118] sm:$0xff]
      %v2857 = vld [vmem:[%s192 + $0x120] sm:$0xff]
      %v2858 = vld [vmem:[%s192 + $0x128] sm:$0xff]
      %v2859 = vld [vmem:[%s192 + $0x130] sm:$0xff]
      %v2860 = vld [vmem:[%s192 + $0x138] sm:$0xff]
      %v2861 = vld [vmem:[%s192 + $0x140] sm:$0xff]
      %v2862 = vld [vmem:[%s192 + $0x148] sm:$0xff]
      %v2863 = vld [vmem:[%s192 + $0x150] sm:$0xff]
      %v2864 = vld [vmem:[%s192 + $0x158] sm:$0xff]
      %v2865 = vld [vmem:[%s2] sm:$0xff]
      %v2866 = vld [vmem:[%s2 + $0x8] sm:$0xff]
      %v2867 = vld [vmem:[%s2 + $0x10] sm:$0xff]
      %v2868 = vld [vmem:[%s2 + $0x18] sm:$0xff]
      %v2869 = vld [vmem:[%s2 + $0x20] sm:$0xff]
      %v2870 = vld [vmem:[%s2 + $0x28] sm:$0xff]
      %v2871 = vld [vmem:[%s2 + $0x30] sm:$0xff]
      %v2872 = vld [vmem:[%s2 + $0x38] sm:$0xff]
      %v2873 = vld [vmem:[%s2 + $0x40] sm:$0xff]
      %v2874 = vld [vmem:[%s2 + $0x48] sm:$0xff]
      %v2875 = vld [vmem:[%s2 + $0x50] sm:$0xff]
      %v2876 = vld [vmem:[%s2 + $0x58] sm:$0xff]
      %v2877 = vld [vmem:[%s2 + $0x60] sm:$0xff]
      %v2878 = vld [vmem:[%s2 + $0x68] sm:$0xff]
      %v2879 = vld [vmem:[%s2 + $0x70] sm:$0xff]
      %v2880 = vld [vmem:[%s2 + $0x78] sm:$0xff]
      %v2881 = vld [vmem:[%s2 + $0x80] sm:$0xff]
      %v2882 = vld [vmem:[%s2 + $0x88] sm:$0xff]
      %v2883 = vld [vmem:[%s2 + $0x90] sm:$0xff]
      %v2884 = vld [vmem:[%s2 + $0x98] sm:$0xff]
      %v2885 = vld [vmem:[%s2 + $0xa0] sm:$0xff]
      %v2886 = vld [vmem:[%s2 + $0xa8] sm:$0xff]
      %v2887 = vld [vmem:[%s2 + $0xb0] sm:$0xff]
      %v2888 = vld [vmem:[%s2 + $0xb8] sm:$0xff]
      %v2889 = vld [vmem:[%s2 + $0xc0] sm:$0xff]
      %v2890 = vld [vmem:[%s2 + $0xc8] sm:$0xff]
      %v2891 = vld [vmem:[%s2 + $0xd0] sm:$0xff]
      %v2892 = vld [vmem:[%s2 + $0xd8] sm:$0xff]
      %v2893 = vld [vmem:[%s2 + $0xe0] sm:$0xff]
      %v2894 = vld [vmem:[%s2 + $0xe8] sm:$0xff]
      %v2895 = vld [vmem:[%s2 + $0xf0] sm:$0xff]
      %v2896 = vld [vmem:[%s2 + $0xf8] sm:$0xff]
      %v2897 = vld [vmem:[%s2 + $0x100] sm:$0xff]
      %v2898 = vld [vmem:[%s2 + $0x108] sm:$0xff]
      %v2899 = vld [vmem:[%s2 + $0x110] sm:$0xff]
      %v2900 = vld [vmem:[%s2 + $0x118] sm:$0xff]
      %v2901 = vld [vmem:[%s2 + $0x120] sm:$0xff]
      %v2902 = vld [vmem:[%s2 + $0x128] sm:$0xff]
      %v2903 = vld [vmem:[%s2 + $0x130] sm:$0xff]
      %v2904 = vld [vmem:[%s2 + $0x138] sm:$0xff]
      %v2905 = vld [vmem:[%s2 + $0x140] sm:$0xff]
      %v2906 = vld [vmem:[%s2 + $0x148] sm:$0xff]
      %v2907 = vld [vmem:[%s2 + $0x150] sm:$0xff]
      %v2908 = vld [vmem:[%s2 + $0x158] sm:$0xff]
      %v2909 = vld [vmem:[%s2 + $0x160] sm:$0xff]
      %v2910 = vld [vmem:[%s2 + $0x168] sm:$0xff]
      %v2911 = vld [vmem:[%s2 + $0x170] sm:$0xff]
      %v2912 = vld [vmem:[%s2 + $0x178] sm:$0xff]
      %v2913 = vld [vmem:[%s2 + $0x180] sm:$0xff]
      %v2914 = vld [vmem:[%s2 + $0x188] sm:$0xff]
      %v2915 = vld [vmem:[%s2 + $0x190] sm:$0xff]
      %v2916 = vld [vmem:[%s2 + $0x198] sm:$0xff]
      %v2917 = vld [vmem:[%s2 + $0x1a0] sm:$0xff]
      %v2918 = vld [vmem:[%s2 + $0x1a8] sm:$0xff]
      %v2919 = vld [vmem:[%s2 + $0x1b0] sm:$0xff]
      %v2920 = vld [vmem:[%s2 + $0x1b8] sm:$0xff]
      %v2921 = vld [vmem:[%s2 + $0x1c0] sm:$0xff]
      %v2922 = vld [vmem:[%s2 + $0x1c8] sm:$0xff]
      %v2923 = vld [vmem:[%s2 + $0x1d0] sm:$0xff]
      %v2924 = vld [vmem:[%s2 + $0x1d8] sm:$0xff]
      %v2925 = vld [vmem:[%s2 + $0x1e0] sm:$0xff]
      %v2926 = vld [vmem:[%s2 + $0x1e8] sm:$0xff]
      %v2927 = vld [vmem:[%s2 + $0x1f0] sm:$0xff]
      %v2928 = vld [vmem:[%s2 + $0x1f8] sm:$0xff]
      %v2929 = vld [vmem:[%s2 + $0x200] sm:$0xff]
      %v2930 = vld [vmem:[%s2 + $0x208] sm:$0xff]
      %v2931 = vld [vmem:[%s2 + $0x210] sm:$0xff]
      %v2932 = vld [vmem:[%s2 + $0x218] sm:$0xff]
      %v2933 = vld [vmem:[%s2 + $0x220] sm:$0xff]
      %v2934 = vld [vmem:[%s2 + $0x228] sm:$0xff]
      %v2935 = vld [vmem:[%s2 + $0x230] sm:$0xff]
      %v2936 = vld [vmem:[%s2 + $0x238] sm:$0xff]
      %v2937 = vld [vmem:[%s2 + $0x240] sm:$0xff]
      %v2938 = vld [vmem:[%s2 + $0x248] sm:$0xff]
      %v2939 = vld [vmem:[%s2 + $0x250] sm:$0xff]
      %v2940 = vld [vmem:[%s2 + $0x258] sm:$0xff]
      %v2941 = vld [vmem:[%s2 + $0x260] sm:$0xff]
      %v2942 = vld [vmem:[%s2 + $0x268] sm:$0xff]
      %v2943 = vld [vmem:[%s2 + $0x270] sm:$0xff]
      %v2944 = vld [vmem:[%s2 + $0x278] sm:$0xff]
      %v2945 = vld [vmem:[%s2 + $0x280] sm:$0xff]
      %v2946 = vld [vmem:[%s2 + $0x288] sm:$0xff]
      %v2947 = vld [vmem:[%s2 + $0x290] sm:$0xff]
      %v2948 = vld [vmem:[%s2 + $0x298] sm:$0xff]
      %v2949 = vld [vmem:[%s2 + $0x2a0] sm:$0xff]
      %v2950 = vld [vmem:[%s2 + $0x2a8] sm:$0xff]
      %v2951 = vld [vmem:[%s2 + $0x2b0] sm:$0xff]
      %v2952 = vld [vmem:[%s2 + $0x2b8] sm:$0xff]
      %v2953 = vld [vmem:[%s2 + $0x2c0] sm:$0xff]
      %v2954 = vld [vmem:[%s2 + $0x2c8] sm:$0xff]
      %v2955 = vld [vmem:[%s2 + $0x2d0] sm:$0xff]
      %v2956 = vld [vmem:[%s2 + $0x2d8] sm:$0xff]
      %v2957 = vld [vmem:[%s2 + $0x2e0] sm:$0xff]
      %v2958 = vld [vmem:[%s2 + $0x2e8] sm:$0xff]
      %v2959 = vld [vmem:[%s2 + $0x2f0] sm:$0xff]
      %v2960 = vld [vmem:[%s2 + $0x2f8] sm:$0xff]
      %v2961 = vld [vmem:[%s2 + $0x300] sm:$0xff]
      %v2962 = vld [vmem:[%s2 + $0x308] sm:$0xff]
      %v2963 = vld [vmem:[%s2 + $0x310] sm:$0xff]
      %v2964 = vld [vmem:[%s2 + $0x318] sm:$0xff]
      %v2965 = vld [vmem:[%s2 + $0x320] sm:$0xff]
      %v2966 = vld [vmem:[%s2 + $0x328] sm:$0xff]
      %v2967 = vld [vmem:[%s2 + $0x330] sm:$0xff]
      %v2968 = vld [vmem:[%s2 + $0x338] sm:$0xff]
      %v2969 = vld [vmem:[%s2 + $0x340] sm:$0xff]
      %v2970 = vld [vmem:[%s2 + $0x348] sm:$0xff]
      %v2971 = vld [vmem:[%s2 + $0x350] sm:$0xff]
      %v2972 = vld [vmem:[%s2 + $0x358] sm:$0xff]
      %v2973 = vld [vmem:[%s2 + $0x360] sm:$0xff]
      %v2974 = vld [vmem:[%s2 + $0x368] sm:$0xff]
      %v2975 = vld [vmem:[%s2 + $0x370] sm:$0xff]
      %v2976 = vld [vmem:[%s2 + $0x378] sm:$0xff]
      %v2977 = vld [vmem:[%s2 + $0x380] sm:$0xff]
      %v2978 = vld [vmem:[%s2 + $0x388] sm:$0xff]
      %v2979 = vld [vmem:[%s2 + $0x390] sm:$0xff]
      %v2980 = vld [vmem:[%s2 + $0x398] sm:$0xff]
      %v2981 = vld [vmem:[%s2 + $0x3a0] sm:$0xff]
      %v2982 = vld [vmem:[%s2 + $0x3a8] sm:$0xff]
      %v2983 = vld [vmem:[%s2 + $0x3b0] sm:$0xff]
      %v2984 = vld [vmem:[%s2 + $0x3b8] sm:$0xff]
      %v2985 = vld [vmem:[%s2 + $0x3c0] sm:$0xff]
      %v2986 = vld [vmem:[%s2 + $0x3c8] sm:$0xff]
      %v2987 = vld [vmem:[%s2 + $0x3d0] sm:$0xff]
      %v2988 = vld [vmem:[%s2 + $0x3d8] sm:$0xff]
      %v2989 = vld [vmem:[%s2 + $0x3e0] sm:$0xff]
      %v2990 = vld [vmem:[%s2 + $0x3e8] sm:$0xff]
      %v2991 = vld [vmem:[%s2 + $0x3f0] sm:$0xff]
      %v2992 = vld [vmem:[%s2 + $0x3f8] sm:$0xff]
      %v2993 = vld [vmem:[%s2 + $0x400] sm:$0xff]
      %v2994 = vld [vmem:[%s2 + $0x408] sm:$0xff]
      %v2995 = vld [vmem:[%s2 + $0x410] sm:$0xff]
      %v2996 = vld [vmem:[%s2 + $0x418] sm:$0xff]
      %v2997 = vld [vmem:[%s2 + $0x420] sm:$0xff]
      %v2998 = vld [vmem:[%s2 + $0x428] sm:$0xff]
      %v2999 = vld [vmem:[%s2 + $0x430] sm:$0xff]
      %v3000 = vld [vmem:[%s2 + $0x438] sm:$0xff]
      %v3001 = vld [vmem:[%s2 + $0x440] sm:$0xff]
      %v3002 = vld [vmem:[%s2 + $0x448] sm:$0xff]
      %v3003 = vld [vmem:[%s2 + $0x450] sm:$0xff]
      %v3004 = vld [vmem:[%s2 + $0x458] sm:$0xff]
      %v3005 = vld [vmem:[%s2 + $0x460] sm:$0xff]
      %v3006 = vld [vmem:[%s2 + $0x468] sm:$0xff]
      %v3007 = vld [vmem:[%s2 + $0x470] sm:$0xff]
      %v3008 = vld [vmem:[%s2 + $0x478] sm:$0xff]
      %v3009 = vld [vmem:[%s2 + $0x480] sm:$0xff]
      %v3010 = vld [vmem:[%s2 + $0x488] sm:$0xff]
      %v3011 = vld [vmem:[%s2 + $0x490] sm:$0xff]
      %v3012 = vld [vmem:[%s2 + $0x498] sm:$0xff]
      %v3013 = vld [vmem:[%s2 + $0x4a0] sm:$0xff]
      %v3014 = vld [vmem:[%s2 + $0x4a8] sm:$0xff]
      %v3015 = vld [vmem:[%s2 + $0x4b0] sm:$0xff]
      %v3016 = vld [vmem:[%s2 + $0x4b8] sm:$0xff]
      %v3017 = vld [vmem:[%s2 + $0x4c0] sm:$0xff]
      %v3018 = vld [vmem:[%s2 + $0x4c8] sm:$0x77]
      %v3019 = vld [vmem:[%s2 + $0x4d0] sm:$0x77]
      %v3020 = vld [vmem:[%s2 + $0x4d8] sm:$0x77]
      %v3061 = vunpack.c.l.b16 %v2825
      %v3062 = vunpack.c.h.b16 %v2825
      %v3063 = vunpack.c.l.b16 %v2826
      %v3064 = vunpack.c.h.b16 %v2826
      %v3065 = vunpack.c.l.b16 %v2827
      %v3066 = vunpack.c.h.b16 %v2827
      %v3067 = vunpack.c.l.b16 %v2828
      %v3068 = vunpack.c.h.b16 %v2828
      %v3069 = vunpack.c.l.b16 %v2829
      %v3070 = vunpack.c.h.b16 %v2829
      %v3071 = vunpack.c.l.b16 %v2830
      %v3072 = vunpack.c.h.b16 %v2830
      %v3073 = vunpack.c.l.b16 %v2831
      %v3074 = vunpack.c.h.b16 %v2831
      %v3075 = vunpack.c.l.b16 %v2832
      %v3076 = vunpack.c.h.b16 %v2832
      %v3077 = vunpack.c.l.b16 %v2833
      %v3078 = vunpack.c.h.b16 %v2833
      %v3079 = vunpack.c.l.b16 %v2834
      %v3080 = vunpack.c.h.b16 %v2834
      %v3081 = vunpack.c.l.b16 %v2835
      %v3082 = vunpack.c.h.b16 %v2835
      %v3083 = vunpack.c.l.b16 %v2836
      %v3084 = vunpack.c.h.b16 %v2836
      %v3085 = vunpack.c.l.b16 %v2837
      %v3086 = vunpack.c.h.b16 %v2837
      %v3087 = vunpack.c.l.b16 %v2838
      %v3088 = vunpack.c.h.b16 %v2838
      %v3089 = vunpack.c.l.b16 %v2839
      %v3090 = vunpack.c.h.b16 %v2839
      %v3091 = vunpack.c.l.b16 %v2840
      %v3092 = vunpack.c.h.b16 %v2840
      %v3093 = vunpack.c.l.b16 %v2841
      %v3094 = vunpack.c.h.b16 %v2841
      %v3095 = vunpack.c.l.b16 %v2842
      %v3096 = vunpack.c.h.b16 %v2842
      %v3097 = vunpack.c.l.b16 %v2843
      %v3098 = vunpack.c.h.b16 %v2843
      %v3099 = vunpack.c.l.b16 %v2844
      %v3100 = vunpack.c.h.b16 %v2844
      %v3101 = vunpack.c.l.b16 %v2845
      %v3102 = vunpack.c.h.b16 %v2845
      %v3103 = vunpack.c.l.b16 %v2846
      %v3104 = vunpack.c.h.b16 %v2846
      %v3105 = vunpack.c.l.b16 %v2847
      %v3106 = vunpack.c.h.b16 %v2847
      %v3107 = vunpack.c.l.b16 %v2848
      %v3108 = vunpack.c.h.b16 %v2848
      %v3109 = vunpack.c.l.b16 %v2849
      %v3110 = vunpack.c.h.b16 %v2849
      %v3111 = vunpack.c.l.b16 %v2850
      %v3112 = vunpack.c.h.b16 %v2850
      %v3113 = vunpack.c.l.b16 %v2851
      %v3114 = vunpack.c.h.b16 %v2851
      %v3115 = vunpack.c.l.b16 %v2852
      %v3116 = vunpack.c.h.b16 %v2852
      %v3117 = vunpack.c.l.b16 %v2853
      %v3118 = vunpack.c.h.b16 %v2853
      %v3119 = vunpack.c.l.b16 %v2854
      %v3120 = vunpack.c.h.b16 %v2854
      %v3121 = vunpack.c.l.b16 %v2855
      %v3122 = vunpack.c.h.b16 %v2855
      %v3123 = vunpack.c.l.b16 %v2856
      %v3124 = vunpack.c.h.b16 %v2856
      %v3125 = vunpack.c.l.b16 %v2857
      %v3126 = vunpack.c.h.b16 %v2857
      %v3127 = vunpack.c.l.b16 %v2858
      %v3128 = vunpack.c.h.b16 %v2858
      %v3129 = vunpack.c.l.b16 %v2859
      %v3130 = vunpack.c.h.b16 %v2859
      %v3131 = vunpack.c.l.b16 %v2860
      %v3132 = vunpack.c.h.b16 %v2860
      %v3133 = vunpack.c.l.b16 %v2861
      %v3134 = vunpack.c.h.b16 %v2861
      %v3135 = vunpack.c.l.b16 %v2862
      %v3136 = vunpack.c.h.b16 %v2862
      %v3137 = vunpack.c.l.b16 %v2863
      %v3138 = vunpack.c.h.b16 %v2863
      %v3139 = vunpack.c.l.b16 %v2864
      %v3140 = vunpack.c.h.b16 %v2864
      %v3141 = vpack.c.b16 %v3065, %v3061
      %v3142 = vpack.c.b16 %v3066, %v3062
      %v3143 = vpack.c.b16 %v3067, %v3063
      %v3144 = vpack.c.b16 %v3068, %v3064
      %v3145 = vpack.c.b16 %v3073, %v3069
      %v3146 = vpack.c.b16 %v3074, %v3070
      %v3147 = vpack.c.b16 %v3075, %v3071
      %v3148 = vpack.c.b16 %v3076, %v3072
      %v3149 = vpack.c.b16 %v3081, %v3077
      %v3150 = vpack.c.b16 %v3082, %v3078
      %v3151 = vpack.c.b16 %v3083, %v3079
      %v3152 = vpack.c.b16 %v3084, %v3080
      %v3153 = vpack.c.b16 %v3089, %v3085
      %v3154 = vpack.c.b16 %v3090, %v3086
      %v3155 = vpack.c.b16 %v3091, %v3087
      %v3156 = vpack.c.b16 %v3092, %v3088
      %v3157 = vpack.c.b16 %v3097, %v3093
      %v3158 = vpack.c.b16 %v3098, %v3094
      %v3159 = vpack.c.b16 %v3099, %v3095
      %v3160 = vpack.c.b16 %v3100, %v3096
      %v3161 = vpack.c.b16 %v3105, %v3101
      %v3162 = vpack.c.b16 %v3106, %v3102
      %v3163 = vpack.c.b16 %v3107, %v3103
      %v3164 = vpack.c.b16 %v3108, %v3104
      %v3165 = vpack.c.b16 %v3113, %v3109
      %v3166 = vpack.c.b16 %v3114, %v3110
      %v3167 = vpack.c.b16 %v3115, %v3111
      %v3168 = vpack.c.b16 %v3116, %v3112
      %v3169 = vpack.c.b16 %v3121, %v3117
      %v3170 = vpack.c.b16 %v3122, %v3118
      %v3171 = vpack.c.b16 %v3123, %v3119
      %v3172 = vpack.c.b16 %v3124, %v3120
      %v3173 = vpack.c.b16 %v3129, %v3125
      %v3174 = vpack.c.b16 %v3130, %v3126
      %v3175 = vpack.c.b16 %v3131, %v3127
      %v3176 = vpack.c.b16 %v3132, %v3128
      %v3177 = vpack.c.b16 %v3137, %v3133
      %v3178 = vpack.c.b16 %v3138, %v3134
      %v3179 = vpack.c.b16 %v3139, %v3135
      %v3180 = vpack.c.b16 %v3140, %v3136
      %v3367 = vunpack.c.l.b16 %v2865
      %v3368 = vunpack.c.h.b16 %v2865
      %v3369 = vunpack.c.l.b16 %v2866
      %v3370 = vunpack.c.h.b16 %v2866
      %v3371 = vunpack.c.l.b16 %v2867
      %v3372 = vunpack.c.h.b16 %v2867
      %v3373 = vunpack.c.l.b16 %v2868
      %v3374 = vunpack.c.h.b16 %v2868
      %v3375 = vunpack.c.l.b16 %v2869
      %v3376 = vunpack.c.h.b16 %v2869
      %v3377 = vunpack.c.l.b16 %v2870
      %v3378 = vunpack.c.h.b16 %v2870
      %v3379 = vunpack.c.l.b16 %v2871
      %v3380 = vunpack.c.h.b16 %v2871
      %v3381 = vunpack.c.l.b16 %v2872
      %v3382 = vunpack.c.h.b16 %v2872
      %v3383 = vunpack.c.l.b16 %v2873
      %v3384 = vunpack.c.h.b16 %v2873
      %v3385 = vunpack.c.l.b16 %v2874
      %v3386 = vunpack.c.h.b16 %v2874
      %v3387 = vunpack.c.l.b16 %v2875
      %v3388 = vunpack.c.h.b16 %v2875
      %v3389 = vunpack.c.l.b16 %v2876
      %v3390 = vunpack.c.h.b16 %v2876
      %v3391 = vunpack.c.l.b16 %v2877
      %v3392 = vunpack.c.h.b16 %v2877
      %v3393 = vunpack.c.l.b16 %v2878
      %v3394 = vunpack.c.h.b16 %v2878
      %v3395 = vunpack.c.l.b16 %v2879
      %v3396 = vunpack.c.h.b16 %v2879
      %v3397 = vunpack.c.l.b16 %v2880
      %v3398 = vunpack.c.h.b16 %v2880
      %v3399 = vunpack.c.l.b16 %v2881
      %v3400 = vunpack.c.h.b16 %v2881
      %v3401 = vunpack.c.l.b16 %v2882
      %v3402 = vunpack.c.h.b16 %v2882
      %v3403 = vunpack.c.l.b16 %v2883
      %v3404 = vunpack.c.h.b16 %v2883
      %v3405 = vunpack.c.l.b16 %v2884
      %v3406 = vunpack.c.h.b16 %v2884
      %v3407 = vunpack.c.l.b16 %v2885
      %v3408 = vunpack.c.h.b16 %v2885
      %v3409 = vunpack.c.l.b16 %v2886
      %v3410 = vunpack.c.h.b16 %v2886
      %v3411 = vunpack.c.l.b16 %v2887
      %v3412 = vunpack.c.h.b16 %v2887
      %v3413 = vunpack.c.l.b16 %v2888
      %v3414 = vunpack.c.h.b16 %v2888
      %v3415 = vunpack.c.l.b16 %v2889
      %v3416 = vunpack.c.h.b16 %v2889
      %v3417 = vunpack.c.l.b16 %v2890
      %v3418 = vunpack.c.h.b16 %v2890
      %v3419 = vunpack.c.l.b16 %v2891
      %v3420 = vunpack.c.h.b16 %v2891
      %v3421 = vunpack.c.l.b16 %v2892
      %v3422 = vunpack.c.h.b16 %v2892
      %v3423 = vunpack.c.l.b16 %v2893
      %v3424 = vunpack.c.h.b16 %v2893
      %v3425 = vunpack.c.l.b16 %v2894
      %v3426 = vunpack.c.h.b16 %v2894
      %v3427 = vunpack.c.l.b16 %v2895
      %v3428 = vunpack.c.h.b16 %v2895
      %v3429 = vunpack.c.l.b16 %v2896
      %v3430 = vunpack.c.h.b16 %v2896
      %v3431 = vunpack.c.l.b16 %v2897
      %v3432 = vunpack.c.h.b16 %v2897
      %v3433 = vunpack.c.l.b16 %v2898
      %v3434 = vunpack.c.h.b16 %v2898
      %v3435 = vunpack.c.l.b16 %v2899
      %v3436 = vunpack.c.h.b16 %v2899
      %v3437 = vunpack.c.l.b16 %v2900
      %v3438 = vunpack.c.h.b16 %v2900
      %v3439 = vunpack.c.l.b16 %v2901
      %v3440 = vunpack.c.h.b16 %v2901
      %v3441 = vunpack.c.l.b16 %v2902
      %v3442 = vunpack.c.h.b16 %v2902
      %v3443 = vunpack.c.l.b16 %v2903
      %v3444 = vunpack.c.h.b16 %v2903
      %v3445 = vunpack.c.l.b16 %v2904
      %v3446 = vunpack.c.h.b16 %v2904
      %v3447 = vunpack.c.l.b16 %v2905
      %v3448 = vunpack.c.h.b16 %v2905
      %v3449 = vunpack.c.l.b16 %v2906
      %v3450 = vunpack.c.h.b16 %v2906
      %v3451 = vunpack.c.l.b16 %v2907
      %v3452 = vunpack.c.h.b16 %v2907
      %v3453 = vunpack.c.l.b16 %v2908
      %v3454 = vunpack.c.h.b16 %v2908
      %v3455 = vunpack.c.l.b16 %v2909
      %v3456 = vunpack.c.h.b16 %v2909
      %v3457 = vunpack.c.l.b16 %v2910
      %v3458 = vunpack.c.h.b16 %v2910
      %v3459 = vunpack.c.l.b16 %v2911
      %v3460 = vunpack.c.h.b16 %v2911
      %v3461 = vunpack.c.l.b16 %v2912
      %v3462 = vunpack.c.h.b16 %v2912
      %v3463 = vunpack.c.l.b16 %v2913
      %v3464 = vunpack.c.h.b16 %v2913
      %v3465 = vunpack.c.l.b16 %v2914
      %v3466 = vunpack.c.h.b16 %v2914
      %v3467 = vunpack.c.l.b16 %v2915
      %v3468 = vunpack.c.h.b16 %v2915
      %v3469 = vunpack.c.l.b16 %v2916
      %v3470 = vunpack.c.h.b16 %v2916
      %v3471 = vunpack.c.l.b16 %v2917
      %v3472 = vunpack.c.h.b16 %v2917
      %v3473 = vunpack.c.l.b16 %v2918
      %v3474 = vunpack.c.h.b16 %v2918
      %v3475 = vunpack.c.l.b16 %v2919
      %v3476 = vunpack.c.h.b16 %v2919
      %v3477 = vunpack.c.l.b16 %v2920
      %v3478 = vunpack.c.h.b16 %v2920
      %v3479 = vunpack.c.l.b16 %v2921
      %v3480 = vunpack.c.h.b16 %v2921
      %v3481 = vunpack.c.l.b16 %v2922
      %v3482 = vunpack.c.h.b16 %v2922
      %v3483 = vunpack.c.l.b16 %v2923
      %v3484 = vunpack.c.h.b16 %v2923
      %v3485 = vunpack.c.l.b16 %v2924
      %v3486 = vunpack.c.h.b16 %v2924
      %v3487 = vunpack.c.l.b16 %v2925
      %v3488 = vunpack.c.h.b16 %v2925
      %v3489 = vunpack.c.l.b16 %v2926
      %v3490 = vunpack.c.h.b16 %v2926
      %v3491 = vunpack.c.l.b16 %v2927
      %v3492 = vunpack.c.h.b16 %v2927
      %v3493 = vunpack.c.l.b16 %v2928
      %v3494 = vunpack.c.h.b16 %v2928
      %v3495 = vunpack.c.l.b16 %v2929
      %v3496 = vunpack.c.h.b16 %v2929
      %v3497 = vunpack.c.l.b16 %v2930
      %v3498 = vunpack.c.h.b16 %v2930
      %v3499 = vunpack.c.l.b16 %v2931
      %v3500 = vunpack.c.h.b16 %v2931
      %v3501 = vunpack.c.l.b16 %v2932
      %v3502 = vunpack.c.h.b16 %v2932
      %v3503 = vunpack.c.l.b16 %v2933
      %v3504 = vunpack.c.h.b16 %v2933
      %v3505 = vunpack.c.l.b16 %v2934
      %v3506 = vunpack.c.h.b16 %v2934
      %v3507 = vunpack.c.l.b16 %v2935
      %v3508 = vunpack.c.h.b16 %v2935
      %v3509 = vunpack.c.l.b16 %v2936
      %v3510 = vunpack.c.h.b16 %v2936
      %v3511 = vunpack.c.l.b16 %v2937
      %v3512 = vunpack.c.h.b16 %v2937
      %v3513 = vunpack.c.l.b16 %v2938
      %v3514 = vunpack.c.h.b16 %v2938
      %v3515 = vunpack.c.l.b16 %v2939
      %v3516 = vunpack.c.h.b16 %v2939
      %v3517 = vunpack.c.l.b16 %v2940
      %v3518 = vunpack.c.h.b16 %v2940
      %v3519 = vunpack.c.l.b16 %v2941
      %v3520 = vunpack.c.h.b16 %v2941
      %v3521 = vunpack.c.l.b16 %v2942
      %v3522 = vunpack.c.h.b16 %v2942
      %v3523 = vunpack.c.l.b16 %v2943
      %v3524 = vunpack.c.h.b16 %v2943
      %v3525 = vunpack.c.l.b16 %v2944
      %v3526 = vunpack.c.h.b16 %v2944
      %v3527 = vunpack.c.l.b16 %v2945
      %v3528 = vunpack.c.h.b16 %v2945
      %v3529 = vunpack.c.l.b16 %v2946
      %v3530 = vunpack.c.h.b16 %v2946
      %v3531 = vunpack.c.l.b16 %v2947
      %v3532 = vunpack.c.h.b16 %v2947
      %v3533 = vunpack.c.l.b16 %v2948
      %v3534 = vunpack.c.h.b16 %v2948
      %v3535 = vunpack.c.l.b16 %v2949
      %v3536 = vunpack.c.h.b16 %v2949
      %v3537 = vunpack.c.l.b16 %v2950
      %v3538 = vunpack.c.h.b16 %v2950
      %v3539 = vunpack.c.l.b16 %v2951
      %v3540 = vunpack.c.h.b16 %v2951
      %v3541 = vunpack.c.l.b16 %v2952
      %v3542 = vunpack.c.h.b16 %v2952
      %v3543 = vunpack.c.l.b16 %v2953
      %v3544 = vunpack.c.h.b16 %v2953
      %v3545 = vunpack.c.l.b16 %v2954
      %v3546 = vunpack.c.h.b16 %v2954
      %v3547 = vunpack.c.l.b16 %v2955
      %v3548 = vunpack.c.h.b16 %v2955
      %v3549 = vunpack.c.l.b16 %v2956
      %v3550 = vunpack.c.h.b16 %v2956
      %v3551 = vunpack.c.l.b16 %v2957
      %v3552 = vunpack.c.h.b16 %v2957
      %v3553 = vunpack.c.l.b16 %v2958
      %v3554 = vunpack.c.h.b16 %v2958
      %v3555 = vunpack.c.l.b16 %v2959
      %v3556 = vunpack.c.h.b16 %v2959
      %v3557 = vunpack.c.l.b16 %v2960
      %v3558 = vunpack.c.h.b16 %v2960
      %v3559 = vunpack.c.l.b16 %v2961
      %v3560 = vunpack.c.h.b16 %v2961
      %v3561 = vunpack.c.l.b16 %v2962
      %v3562 = vunpack.c.h.b16 %v2962
      %v3563 = vunpack.c.l.b16 %v2963
      %v3564 = vunpack.c.h.b16 %v2963
      %v3565 = vunpack.c.l.b16 %v2964
      %v3566 = vunpack.c.h.b16 %v2964
      %v3567 = vunpack.c.l.b16 %v2965
      %v3568 = vunpack.c.h.b16 %v2965
      %v3569 = vunpack.c.l.b16 %v2966
      %v3570 = vunpack.c.h.b16 %v2966
      %v3571 = vunpack.c.l.b16 %v2967
      %v3572 = vunpack.c.h.b16 %v2967
      %v3573 = vunpack.c.l.b16 %v2968
      %v3574 = vunpack.c.h.b16 %v2968
      %v3575 = vunpack.c.l.b16 %v2969
      %v3576 = vunpack.c.h.b16 %v2969
      %v3577 = vunpack.c.l.b16 %v2970
      %v3578 = vunpack.c.h.b16 %v2970
      %v3579 = vunpack.c.l.b16 %v2971
      %v3580 = vunpack.c.h.b16 %v2971
      %v3581 = vunpack.c.l.b16 %v2972
      %v3582 = vunpack.c.h.b16 %v2972
      %v3583 = vunpack.c.l.b16 %v2973
      %v3584 = vunpack.c.h.b16 %v2973
      %v3585 = vunpack.c.l.b16 %v2974
      %v3586 = vunpack.c.h.b16 %v2974
      %v3587 = vunpack.c.l.b16 %v2975
      %v3588 = vunpack.c.h.b16 %v2975
      %v3589 = vunpack.c.l.b16 %v2976
      %v3590 = vunpack.c.h.b16 %v2976
      %v3591 = vunpack.c.l.b16 %v2977
      %v3592 = vunpack.c.h.b16 %v2977
      %v3593 = vunpack.c.l.b16 %v2978
      %v3594 = vunpack.c.h.b16 %v2978
      %v3595 = vunpack.c.l.b16 %v2979
      %v3596 = vunpack.c.h.b16 %v2979
      %v3597 = vunpack.c.l.b16 %v2980
      %v3598 = vunpack.c.h.b16 %v2980
      %v3599 = vunpack.c.l.b16 %v2981
      %v3600 = vunpack.c.h.b16 %v2981
      %v3601 = vunpack.c.l.b16 %v2982
      %v3602 = vunpack.c.h.b16 %v2982
      %v3603 = vunpack.c.l.b16 %v2983
      %v3604 = vunpack.c.h.b16 %v2983
      %v3605 = vunpack.c.l.b16 %v2984
      %v3606 = vunpack.c.h.b16 %v2984
      %v3607 = vunpack.c.l.b16 %v2985
      %v3608 = vunpack.c.h.b16 %v2985
      %v3609 = vunpack.c.l.b16 %v2986
      %v3610 = vunpack.c.h.b16 %v2986
      %v3611 = vunpack.c.l.b16 %v2987
      %v3612 = vunpack.c.h.b16 %v2987
      %v3613 = vunpack.c.l.b16 %v2988
      %v3614 = vunpack.c.h.b16 %v2988
      %v3615 = vunpack.c.l.b16 %v2989
      %v3616 = vunpack.c.h.b16 %v2989
      %v3617 = vunpack.c.l.b16 %v2990
      %v3618 = vunpack.c.h.b16 %v2990
      %v3619 = vunpack.c.l.b16 %v2991
      %v3620 = vunpack.c.h.b16 %v2991
      %v3621 = vunpack.c.l.b16 %v2992
      %v3622 = vunpack.c.h.b16 %v2992
      %v3623 = vunpack.c.l.b16 %v2993
      %v3624 = vunpack.c.h.b16 %v2993
      %v3625 = vunpack.c.l.b16 %v2994
      %v3626 = vunpack.c.h.b16 %v2994
      %v3627 = vunpack.c.l.b16 %v2995
      %v3628 = vunpack.c.h.b16 %v2995
      %v3629 = vunpack.c.l.b16 %v2996
      %v3630 = vunpack.c.h.b16 %v2996
      %v3631 = vunpack.c.l.b16 %v2997
      %v3632 = vunpack.c.h.b16 %v2997
      %v3633 = vunpack.c.l.b16 %v2998
      %v3634 = vunpack.c.h.b16 %v2998
      %v3635 = vunpack.c.l.b16 %v2999
      %v3636 = vunpack.c.h.b16 %v2999
      %v3637 = vunpack.c.l.b16 %v3000
      %v3638 = vunpack.c.h.b16 %v3000
      %v3639 = vunpack.c.l.b16 %v3001
      %v3640 = vunpack.c.h.b16 %v3001
      %v3641 = vunpack.c.l.b16 %v3002
      %v3642 = vunpack.c.h.b16 %v3002
      %v3643 = vunpack.c.l.b16 %v3003
      %v3644 = vunpack.c.h.b16 %v3003
      %v3645 = vunpack.c.l.b16 %v3004
      %v3646 = vunpack.c.h.b16 %v3004
      %v3647 = vunpack.c.l.b16 %v3005
      %v3648 = vunpack.c.h.b16 %v3005
      %v3649 = vunpack.c.l.b16 %v3006
      %v3650 = vunpack.c.h.b16 %v3006
      %v3651 = vunpack.c.l.b16 %v3007
      %v3652 = vunpack.c.h.b16 %v3007
      %v3653 = vunpack.c.l.b16 %v3008
      %v3654 = vunpack.c.h.b16 %v3008
      %v3655 = vunpack.c.l.b16 %v3009
      %v3656 = vunpack.c.h.b16 %v3009
      %v3657 = vunpack.c.l.b16 %v3010
      %v3658 = vunpack.c.h.b16 %v3010
      %v3659 = vunpack.c.l.b16 %v3011
      %v3660 = vunpack.c.h.b16 %v3011
      %v3661 = vunpack.c.l.b16 %v3012
      %v3662 = vunpack.c.h.b16 %v3012
      %v3663 = vunpack.c.l.b16 %v3013
      %v3664 = vunpack.c.h.b16 %v3013
      %v3665 = vunpack.c.l.b16 %v3014
      %v3666 = vunpack.c.h.b16 %v3014
      %v3667 = vunpack.c.l.b16 %v3015
      %v3668 = vunpack.c.h.b16 %v3015
      %v3669 = vunpack.c.l.b16 %v3016
      %v3670 = vunpack.c.h.b16 %v3016
      %v3671 = vunpack.c.l.b16 %v3017
      %v3672 = vunpack.c.h.b16 %v3017
      %v3673 = vunpack.c.l.b16 %v3018
      %v3674 = vunpack.c.h.b16 %v3018
      %v3675 = vunpack.c.l.b16 %v3019
      %v3676 = vunpack.c.h.b16 %v3019
      %v3677 = vunpack.c.l.b16 %v3020
      %v3678 = vunpack.c.h.b16 %v3020
      %v3679 = vpack.c.b16 %v3373, %v3367
      %v3680 = vpack.c.b16 %v3374, %v3368
      %v3681 = vpack.c.b16 %v3375, %v3369
      %v3682 = vpack.c.b16 %v3376, %v3370
      %v3683 = vpack.c.b16 %v3377, %v3371
      %v3684 = vpack.c.b16 %v3378, %v3372
      %v3685 = vpack.c.b16 %v3385, %v3379
      %v3686 = vpack.c.b16 %v3386, %v3380
      %v3687 = vpack.c.b16 %v3387, %v3381
      %v3688 = vpack.c.b16 %v3388, %v3382
      %v3689 = vpack.c.b16 %v3389, %v3383
      %v3690 = vpack.c.b16 %v3390, %v3384
      %v3691 = vpack.c.b16 %v3397, %v3391
      %v3692 = vpack.c.b16 %v3398, %v3392
      %v3693 = vpack.c.b16 %v3399, %v3393
      %v3694 = vpack.c.b16 %v3400, %v3394
      %v3695 = vpack.c.b16 %v3401, %v3395
      %v3696 = vpack.c.b16 %v3402, %v3396
      %v3697 = vpack.c.b16 %v3409, %v3403
      %v3698 = vpack.c.b16 %v3410, %v3404
      %v3699 = vpack.c.b16 %v3411, %v3405
      %v3700 = vpack.c.b16 %v3412, %v3406
      %v3701 = vpack.c.b16 %v3413, %v3407
      %v3702 = vpack.c.b16 %v3414, %v3408
      %v3703 = vpack.c.b16 %v3421, %v3415
      %v3704 = vpack.c.b16 %v3422, %v3416
      %v3705 = vpack.c.b16 %v3423, %v3417
      %v3706 = vpack.c.b16 %v3424, %v3418
      %v3707 = vpack.c.b16 %v3425, %v3419
      %v3708 = vpack.c.b16 %v3426, %v3420
      %v3709 = vpack.c.b16 %v3433, %v3427
      %v3710 = vpack.c.b16 %v3434, %v3428
      %v3711 = vpack.c.b16 %v3435, %v3429
      %v3712 = vpack.c.b16 %v3436, %v3430
      %v3713 = vpack.c.b16 %v3437, %v3431
      %v3714 = vpack.c.b16 %v3438, %v3432
      %v3715 = vpack.c.b16 %v3445, %v3439
      %v3716 = vpack.c.b16 %v3446, %v3440
      %v3717 = vpack.c.b16 %v3447, %v3441
      %v3718 = vpack.c.b16 %v3448, %v3442
      %v3719 = vpack.c.b16 %v3449, %v3443
      %v3720 = vpack.c.b16 %v3450, %v3444
      %v3721 = vpack.c.b16 %v3457, %v3451
      %v3722 = vpack.c.b16 %v3458, %v3452
      %v3723 = vpack.c.b16 %v3459, %v3453
      %v3724 = vpack.c.b16 %v3460, %v3454
      %v3725 = vpack.c.b16 %v3461, %v3455
      %v3726 = vpack.c.b16 %v3462, %v3456
      %v3727 = vpack.c.b16 %v3469, %v3463
      %v3728 = vpack.c.b16 %v3470, %v3464
      %v3729 = vpack.c.b16 %v3471, %v3465
      %v3730 = vpack.c.b16 %v3472, %v3466
      %v3731 = vpack.c.b16 %v3473, %v3467
      %v3732 = vpack.c.b16 %v3474, %v3468
      %v3733 = vpack.c.b16 %v3481, %v3475
      %v3734 = vpack.c.b16 %v3482, %v3476
      %v3735 = vpack.c.b16 %v3483, %v3477
      %v3736 = vpack.c.b16 %v3484, %v3478
      %v3737 = vpack.c.b16 %v3485, %v3479
      %v3738 = vpack.c.b16 %v3486, %v3480
      %v3739 = vpack.c.b16 %v3493, %v3487
      %v3740 = vpack.c.b16 %v3494, %v3488
      %v3741 = vpack.c.b16 %v3495, %v3489
      %v3742 = vpack.c.b16 %v3496, %v3490
      %v3743 = vpack.c.b16 %v3497, %v3491
      %v3744 = vpack.c.b16 %v3498, %v3492
      %v3745 = vpack.c.b16 %v3505, %v3499
      %v3746 = vpack.c.b16 %v3506, %v3500
      %v3747 = vpack.c.b16 %v3507, %v3501
      %v3748 = vpack.c.b16 %v3508, %v3502
      %v3749 = vpack.c.b16 %v3509, %v3503
      %v3750 = vpack.c.b16 %v3510, %v3504
      %v3751 = vpack.c.b16 %v3517, %v3511
      %v3752 = vpack.c.b16 %v3518, %v3512
      %v3753 = vpack.c.b16 %v3519, %v3513
      %v3754 = vpack.c.b16 %v3520, %v3514
      %v3755 = vpack.c.b16 %v3521, %v3515
      %v3756 = vpack.c.b16 %v3522, %v3516
      %v3757 = vpack.c.b16 %v3529, %v3523
      %v3758 = vpack.c.b16 %v3530, %v3524
      %v3759 = vpack.c.b16 %v3531, %v3525
      %v3760 = vpack.c.b16 %v3532, %v3526
      %v3761 = vpack.c.b16 %v3533, %v3527
      %v3762 = vpack.c.b16 %v3534, %v3528
      %v3763 = vpack.c.b16 %v3541, %v3535
      %v3764 = vpack.c.b16 %v3542, %v3536
      %v3765 = vpack.c.b16 %v3543, %v3537
      %v3766 = vpack.c.b16 %v3544, %v3538
      %v3767 = vpack.c.b16 %v3545, %v3539
      %v3768 = vpack.c.b16 %v3546, %v3540
      %v3769 = vpack.c.b16 %v3553, %v3547
      %v3770 = vpack.c.b16 %v3554, %v3548
      %v3771 = vpack.c.b16 %v3555, %v3549
      %v3772 = vpack.c.b16 %v3556, %v3550
      %v3773 = vpack.c.b16 %v3557, %v3551
      %v3774 = vpack.c.b16 %v3558, %v3552
      %v3775 = vpack.c.b16 %v3565, %v3559
      %v3776 = vpack.c.b16 %v3566, %v3560
      %v3777 = vpack.c.b16 %v3567, %v3561
      %v3778 = vpack.c.b16 %v3568, %v3562
      %v3779 = vpack.c.b16 %v3569, %v3563
      %v3780 = vpack.c.b16 %v3570, %v3564
      %v3781 = vpack.c.b16 %v3577, %v3571
      %v3782 = vpack.c.b16 %v3578, %v3572
      %v3783 = vpack.c.b16 %v3579, %v3573
      %v3784 = vpack.c.b16 %v3580, %v3574
      %v3785 = vpack.c.b16 %v3581, %v3575
      %v3786 = vpack.c.b16 %v3582, %v3576
      %v3787 = vpack.c.b16 %v3589, %v3583
      %v3788 = vpack.c.b16 %v3590, %v3584
      %v3789 = vpack.c.b16 %v3591, %v3585
      %v3790 = vpack.c.b16 %v3592, %v3586
      %v3791 = vpack.c.b16 %v3593, %v3587
      %v3792 = vpack.c.b16 %v3594, %v3588
      %v3793 = vpack.c.b16 %v3601, %v3595
      %v3794 = vpack.c.b16 %v3602, %v3596
      %v3795 = vpack.c.b16 %v3603, %v3597
      %v3796 = vpack.c.b16 %v3604, %v3598
      %v3797 = vpack.c.b16 %v3605, %v3599
      %v3798 = vpack.c.b16 %v3606, %v3600
      %v3799 = vpack.c.b16 %v3613, %v3607
      %v3800 = vpack.c.b16 %v3614, %v3608
      %v3801 = vpack.c.b16 %v3615, %v3609
      %v3802 = vpack.c.b16 %v3616, %v3610
      %v3803 = vpack.c.b16 %v3617, %v3611
      %v3804 = vpack.c.b16 %v3618, %v3612
      %v3805 = vpack.c.b16 %v3625, %v3619
      %v3806 = vpack.c.b16 %v3626, %v3620
      %v3807 = vpack.c.b16 %v3627, %v3621
      %v3808 = vpack.c.b16 %v3628, %v3622
      %v3809 = vpack.c.b16 %v3629, %v3623
      %v3810 = vpack.c.b16 %v3630, %v3624
      %v3811 = vpack.c.b16 %v3637, %v3631
      %v3812 = vpack.c.b16 %v3638, %v3632
      %v3813 = vpack.c.b16 %v3639, %v3633
      %v3814 = vpack.c.b16 %v3640, %v3634
      %v3815 = vpack.c.b16 %v3641, %v3635
      %v3816 = vpack.c.b16 %v3642, %v3636
      %v3817 = vpack.c.b16 %v3649, %v3643
      %v3818 = vpack.c.b16 %v3650, %v3644
      %v3819 = vpack.c.b16 %v3651, %v3645
      %v3820 = vpack.c.b16 %v3652, %v3646
      %v3821 = vpack.c.b16 %v3653, %v3647
      %v3822 = vpack.c.b16 %v3654, %v3648
      %v3823 = vpack.c.b16 %v3661, %v3655
      %v3824 = vpack.c.b16 %v3662, %v3656
      %v3825 = vpack.c.b16 %v3663, %v3657
      %v3826 = vpack.c.b16 %v3664, %v3658
      %v3827 = vpack.c.b16 %v3665, %v3659
      %v3828 = vpack.c.b16 %v3666, %v3660
      %v3829 = vpack.c.b16 %v3673, %v3667
      %v3830 = vpack.c.b16 %v3674, %v3668
      %v3831 = vpack.c.b16 %v3675, %v3669
      %v3832 = vpack.c.b16 %v3676, %v3670
      %v3833 = vpack.c.b16 %v3677, %v3671
      %v3834 = vpack.c.b16 %v3678, %v3672
      %v3986 = vsel %vm1359, %v3144, 0
      %v3989 = vsel %vm1359, %v3148, 0
      %v3992 = vsel %vm1359, %v3152, 0
      %v3995 = vsel %vm1359, %v3156, 0
      %v3998 = vsel %vm1359, %v3160, 0
      %v4001 = vsel %vm1359, %v3164, 0
      %v4004 = vsel %vm1359, %v3168, 0
      %v4007 = vsel %vm1359, %v3172, 0
      %v4010 = vsel %vm1359, %v3176, 0
      %v4013 = vsel %vm1359, %v3180, 0
      %v4016 = vsel %vm1390, %v3829, 0
      %v4019 = vsel %vm1390, %v3830, 0
      %v4022 = vsel %vm1390, %v3831, 0
      %v4025 = vsel %vm1390, %v3832, 0
      %v4028 = vsel %vm1390, %v3833, 0
      %v4031 = vsel %vm1390, %v3834, 0
      %4033 = vmatpush.bf16.msra.mxu0 %v3721
      %4034 = vmatpush.bf16.msra.mxu0 %v3715
      %4035 = vmatpush.bf16.msra.mxu0 %v3709
      %4036 = vmatpush.bf16.msra.mxu0 %v3703
      %4037 = vmatpush.bf16.msra.mxu0 %v3697
      %4038 = vmatpush.bf16.msra.mxu0 %v3691
      %4039 = vmatpush.bf16.msra.mxu0 %v3685
      %4040 = vmatpush.bf16.msra.mxu0 %v3679
      %4041 = vmatmul.bf16.gmra.mxu0 %v3141
      %v4042 = vpop.f32.mrf.mxu0
      %v4043 = vadd.f32 0.0, %v4042
      %v4044 = vpop.f32.mrf.mxu0
      %v4045 = vadd.f32 0.0, %v4044
      %4046 = vmatmul.bf16.gmra.mxu0 %v3145
      %v4047 = vpop.f32.mrf.mxu0
      %v4048 = vadd.f32 0.0, %v4047
      %v4049 = vpop.f32.mrf.mxu0
      %v4050 = vadd.f32 0.0, %v4049
      %4051 = vmatmul.bf16.gmra.mxu0 %v3149
      %v4052 = vpop.f32.mrf.mxu0
      %v4053 = vadd.f32 0.0, %v4052
      %v4054 = vpop.f32.mrf.mxu0
      %v4055 = vadd.f32 0.0, %v4054
      %4056 = vmatmul.bf16.gmra.mxu0 %v3153
      %v4057 = vpop.f32.mrf.mxu0
      %v4058 = vadd.f32 0.0, %v4057
      %v4059 = vpop.f32.mrf.mxu0
      %v4060 = vadd.f32 0.0, %v4059
      %4061 = vmatmul.bf16.gmra.mxu0 %v3157
      %v4062 = vpop.f32.mrf.mxu0
      %v4063 = vadd.f32 0.0, %v4062
      %v4064 = vpop.f32.mrf.mxu0
      %v4065 = vadd.f32 0.0, %v4064
      %4066 = vmatmul.bf16.gmra.mxu0 %v3161
      %v4067 = vpop.f32.mrf.mxu0
      %v4068 = vadd.f32 0.0, %v4067
      %v4069 = vpop.f32.mrf.mxu0
      %v4070 = vadd.f32 0.0, %v4069
      %4071 = vmatmul.bf16.gmra.mxu0 %v3165
      %v4072 = vpop.f32.mrf.mxu0
      %v4073 = vadd.f32 0.0, %v4072
      %v4074 = vpop.f32.mrf.mxu0
      %v4075 = vadd.f32 0.0, %v4074
      %4076 = vmatmul.bf16.gmra.mxu0 %v3169
      %v4077 = vpop.f32.mrf.mxu0
      %v4078 = vadd.f32 0.0, %v4077
      %v4079 = vpop.f32.mrf.mxu0
      %v4080 = vadd.f32 0.0, %v4079
      %4081 = vmatmul.bf16.gmra.mxu0 %v3173
      %v4082 = vpop.f32.mrf.mxu0
      %v4083 = vadd.f32 0.0, %v4082
      %v4084 = vpop.f32.mrf.mxu0
      %v4085 = vadd.f32 0.0, %v4084
      %4086 = vmatmul.bf16.gmra.mxu0 %v3177
      %v4087 = vpop.f32.mrf.mxu0
      %v4088 = vadd.f32 0.0, %v4087
      %v4089 = vpop.f32.mrf.mxu0
      %v4090 = vadd.f32 0.0, %v4089
      %4091 = vdwg.mxu0
      %4092 = vmatpush.bf16.msra.mxu0 %v3769
      %4093 = vmatpush.bf16.msra.mxu0 %v3763
      %4094 = vmatpush.bf16.msra.mxu0 %v3757
      %4095 = vmatpush.bf16.msra.mxu0 %v3751
      %4096 = vmatpush.bf16.msra.mxu0 %v3745
      %4097 = vmatpush.bf16.msra.mxu0 %v3739
      %4098 = vmatpush.bf16.msra.mxu0 %v3733
      %4099 = vmatpush.bf16.msra.mxu0 %v3727
      %4100 = vmatmul.bf16.gmra.mxu0 %v3142
      %v4101 = vpop.f32.mrf.mxu0
      %v4102 = vadd.f32 %v4043, %v4101
      %v4103 = vpop.f32.mrf.mxu0
      %v4104 = vadd.f32 %v4045, %v4103
      %4105 = vmatmul.bf16.gmra.mxu0 %v3146
      %v4106 = vpop.f32.mrf.mxu0
      %v4107 = vadd.f32 %v4048, %v4106
      %v4108 = vpop.f32.mrf.mxu0
      %v4109 = vadd.f32 %v4050, %v4108
      %4110 = vmatmul.bf16.gmra.mxu0 %v3150
      %v4111 = vpop.f32.mrf.mxu0
      %v4112 = vadd.f32 %v4053, %v4111
      %v4113 = vpop.f32.mrf.mxu0
      %v4114 = vadd.f32 %v4055, %v4113
      %4115 = vmatmul.bf16.gmra.mxu0 %v3154
      %v4116 = vpop.f32.mrf.mxu0
      %v4117 = vadd.f32 %v4058, %v4116
      %v4118 = vpop.f32.mrf.mxu0
      %v4119 = vadd.f32 %v4060, %v4118
      %4120 = vmatmul.bf16.gmra.mxu0 %v3158
      %v4121 = vpop.f32.mrf.mxu0
      %v4122 = vadd.f32 %v4063, %v4121
      %v4123 = vpop.f32.mrf.mxu0
      %v4124 = vadd.f32 %v4065, %v4123
      %4125 = vmatmul.bf16.gmra.mxu0 %v3162
      %v4126 = vpop.f32.mrf.mxu0
      %v4127 = vadd.f32 %v4068, %v4126
      %v4128 = vpop.f32.mrf.mxu0
      %v4129 = vadd.f32 %v4070, %v4128
      %4130 = vmatmul.bf16.gmra.mxu0 %v3166
      %v4131 = vpop.f32.mrf.mxu0
      %v4132 = vadd.f32 %v4073, %v4131
      %v4133 = vpop.f32.mrf.mxu0
      %v4134 = vadd.f32 %v4075, %v4133
      %4135 = vmatmul.bf16.gmra.mxu0 %v3170
      %v4136 = vpop.f32.mrf.mxu0
      %v4137 = vadd.f32 %v4078, %v4136
      %v4138 = vpop.f32.mrf.mxu0
      %v4139 = vadd.f32 %v4080, %v4138
      %4140 = vmatmul.bf16.gmra.mxu0 %v3174
      %v4141 = vpop.f32.mrf.mxu0
      %v4142 = vadd.f32 %v4083, %v4141
      %v4143 = vpop.f32.mrf.mxu0
      %v4144 = vadd.f32 %v4085, %v4143
      %4145 = vmatmul.bf16.gmra.mxu0 %v3178
      %v4146 = vpop.f32.mrf.mxu0
      %v4147 = vadd.f32 %v4088, %v4146
      %v4148 = vpop.f32.mrf.mxu0
      %v4149 = vadd.f32 %v4090, %v4148
      %4150 = vdwg.mxu0
      %4151 = vmatpush.bf16.msra.mxu0 %v3817
      %4152 = vmatpush.bf16.msra.mxu0 %v3811
      %4153 = vmatpush.bf16.msra.mxu0 %v3805
      %4154 = vmatpush.bf16.msra.mxu0 %v3799
      %4155 = vmatpush.bf16.msra.mxu0 %v3793
      %4156 = vmatpush.bf16.msra.mxu0 %v3787
      %4157 = vmatpush.bf16.msra.mxu0 %v3781
      %4158 = vmatpush.bf16.msra.mxu0 %v3775
      %4159 = vmatmul.bf16.gmra.mxu0 %v3143
      %v4160 = vpop.f32.mrf.mxu0
      %v4161 = vadd.f32 %v4102, %v4160
      %v4162 = vpop.f32.mrf.mxu0
      %v4163 = vadd.f32 %v4104, %v4162
      %4164 = vmatmul.bf16.gmra.mxu0 %v3147
      %v4165 = vpop.f32.mrf.mxu0
      %v4166 = vadd.f32 %v4107, %v4165
      %v4167 = vpop.f32.mrf.mxu0
      %v4168 = vadd.f32 %v4109, %v4167
      %4169 = vmatmul.bf16.gmra.mxu0 %v3151
      %v4170 = vpop.f32.mrf.mxu0
      %v4171 = vadd.f32 %v4112, %v4170
      %v4172 = vpop.f32.mrf.mxu0
      %v4173 = vadd.f32 %v4114, %v4172
      %4174 = vmatmul.bf16.gmra.mxu0 %v3155
      %v4175 = vpop.f32.mrf.mxu0
      %v4176 = vadd.f32 %v4117, %v4175
      %v4177 = vpop.f32.mrf.mxu0
      %v4178 = vadd.f32 %v4119, %v4177
      %4179 = vmatmul.bf16.gmra.mxu0 %v3159
      %v4180 = vpop.f32.mrf.mxu0
      %v4181 = vadd.f32 %v4122, %v4180
      %v4182 = vpop.f32.mrf.mxu0
      %v4183 = vadd.f32 %v4124, %v4182
      %4184 = vmatmul.bf16.gmra.mxu0 %v3163
      %v4185 = vpop.f32.mrf.mxu0
      %v4186 = vadd.f32 %v4127, %v4185
      %v4187 = vpop.f32.mrf.mxu0
      %v4188 = vadd.f32 %v4129, %v4187
      %4189 = vmatmul.bf16.gmra.mxu0 %v3167
      %v4190 = vpop.f32.mrf.mxu0
      %v4191 = vadd.f32 %v4132, %v4190
      %v4192 = vpop.f32.mrf.mxu0
      %v4193 = vadd.f32 %v4134, %v4192
      %4194 = vmatmul.bf16.gmra.mxu0 %v3171
      %v4195 = vpop.f32.mrf.mxu0
      %v4196 = vadd.f32 %v4137, %v4195
      %v4197 = vpop.f32.mrf.mxu0
      %v4198 = vadd.f32 %v4139, %v4197
      %4199 = vmatmul.bf16.gmra.mxu0 %v3175
      %v4200 = vpop.f32.mrf.mxu0
      %v4201 = vadd.f32 %v4142, %v4200
      %v4202 = vpop.f32.mrf.mxu0
      %v4203 = vadd.f32 %v4144, %v4202
      %4204 = vmatmul.bf16.gmra.mxu0 %v3179
      %v4205 = vpop.f32.mrf.mxu0
      %v4206 = vadd.f32 %v4147, %v4205
      %v4207 = vpop.f32.mrf.mxu0
      %v4208 = vadd.f32 %v4149, %v4207
      %4209 = vdwg.mxu0
      %4210 = vmatpush.bf16.msra.mxu0 0
      %4211 = vmatpush.bf16.msra.mxu0 0
      %4212 = vmatpush.bf16.msra.mxu0 0
      %4213 = vmatpush.bf16.msra.mxu0 0
      %4214 = vmatpush.bf16.msra.mxu0 0
      %4215 = vmatpush.bf16.msra.mxu0 0
      %4216 = vmatpush.bf16.msra.mxu0 %v4016
      %4217 = vmatpush.bf16.msra.mxu0 %v3823
      %4218 = vmatmul.bf16.gmra.mxu0 %v3986
      %v4219 = vpop.f32.mrf.mxu0
      %v4220 = vadd.f32 %v4161, %v4219
      %v4221 = vpop.f32.mrf.mxu0
      %v4222 = vadd.f32 %v4163, %v4221
      %4223 = vmatmul.bf16.gmra.mxu0 %v3989
      %v4224 = vpop.f32.mrf.mxu0
      %v4225 = vadd.f32 %v4166, %v4224
      %v4226 = vpop.f32.mrf.mxu0
      %v4227 = vadd.f32 %v4168, %v4226
      %4228 = vmatmul.bf16.gmra.mxu0 %v3992
      %v4229 = vpop.f32.mrf.mxu0
      %v4230 = vadd.f32 %v4171, %v4229
      %v4231 = vpop.f32.mrf.mxu0
      %v4232 = vadd.f32 %v4173, %v4231
      %4233 = vmatmul.bf16.gmra.mxu0 %v3995
      %v4234 = vpop.f32.mrf.mxu0
      %v4235 = vadd.f32 %v4176, %v4234
      %v4236 = vpop.f32.mrf.mxu0
      %v4237 = vadd.f32 %v4178, %v4236
      %4238 = vmatmul.bf16.gmra.mxu0 %v3998
      %v4239 = vpop.f32.mrf.mxu0
      %v4240 = vadd.f32 %v4181, %v4239
      %v4241 = vpop.f32.mrf.mxu0
      %v4242 = vadd.f32 %v4183, %v4241
      %4243 = vmatmul.bf16.gmra.mxu0 %v4001
      %v4244 = vpop.f32.mrf.mxu0
      %v4245 = vadd.f32 %v4186, %v4244
      %v4246 = vpop.f32.mrf.mxu0
      %v4247 = vadd.f32 %v4188, %v4246
      %4248 = vmatmul.bf16.gmra.mxu0 %v4004
      %v4249 = vpop.f32.mrf.mxu0
      %v4250 = vadd.f32 %v4191, %v4249
      %v4251 = vpop.f32.mrf.mxu0
      %v4252 = vadd.f32 %v4193, %v4251
      %4253 = vmatmul.bf16.gmra.mxu0 %v4007
      %v4254 = vpop.f32.mrf.mxu0
      %v4255 = vadd.f32 %v4196, %v4254
      %v4256 = vpop.f32.mrf.mxu0
      %v4257 = vadd.f32 %v4198, %v4256
      %4258 = vmatmul.bf16.gmra.mxu0 %v4010
      %v4259 = vpop.f32.mrf.mxu0
      %v4260 = vadd.f32 %v4201, %v4259
      %v4261 = vpop.f32.mrf.mxu0
      %v4262 = vadd.f32 %v4203, %v4261
      %4263 = vmatmul.bf16.gmra.mxu0 %v4013
      %v4264 = vpop.f32.mrf.mxu0
      %v4265 = vadd.f32 %v4206, %v4264
      %v4266 = vpop.f32.mrf.mxu0
      %v4267 = vadd.f32 %v4208, %v4266
      %4268 = vdwg.mxu0
      %4269 = vmatpush.bf16.msra.mxu0 %v3722
      %4270 = vmatpush.bf16.msra.mxu0 %v3716
      %4271 = vmatpush.bf16.msra.mxu0 %v3710
      %4272 = vmatpush.bf16.msra.mxu0 %v3704
      %4273 = vmatpush.bf16.msra.mxu0 %v3698
      %4274 = vmatpush.bf16.msra.mxu0 %v3692
      %4275 = vmatpush.bf16.msra.mxu0 %v3686
      %4276 = vmatpush.bf16.msra.mxu0 %v3680
      %4277 = vmatmul.bf16.gmra.mxu0 %v3141
      %v4278 = vpop.f32.mrf.mxu0
      %v4279 = vadd.f32 0.0, %v4278
      %v4280 = vpop.f32.mrf.mxu0
      %v4281 = vadd.f32 0.0, %v4280
      %4282 = vmatmul.bf16.gmra.mxu0 %v3145
      %v4283 = vpop.f32.mrf.mxu0
      %v4284 = vadd.f32 0.0, %v4283
      %v4285 = vpop.f32.mrf.mxu0
      %v4286 = vadd.f32 0.0, %v4285
      %4287 = vmatmul.bf16.gmra.mxu0 %v3149
      %v4288 = vpop.f32.mrf.mxu0
      %v4289 = vadd.f32 0.0, %v4288
      %v4290 = vpop.f32.mrf.mxu0
      %v4291 = vadd.f32 0.0, %v4290
      %4292 = vmatmul.bf16.gmra.mxu0 %v3153
      %v4293 = vpop.f32.mrf.mxu0
      %v4294 = vadd.f32 0.0, %v4293
      %v4295 = vpop.f32.mrf.mxu0
      %v4296 = vadd.f32 0.0, %v4295
      %4297 = vmatmul.bf16.gmra.mxu0 %v3157
      %v4298 = vpop.f32.mrf.mxu0
      %v4299 = vadd.f32 0.0, %v4298
      %v4300 = vpop.f32.mrf.mxu0
      %v4301 = vadd.f32 0.0, %v4300
      %4302 = vmatmul.bf16.gmra.mxu0 %v3161
      %v4303 = vpop.f32.mrf.mxu0
      %v4304 = vadd.f32 0.0, %v4303
      %v4305 = vpop.f32.mrf.mxu0
      %v4306 = vadd.f32 0.0, %v4305
      %4307 = vmatmul.bf16.gmra.mxu0 %v3165
      %v4308 = vpop.f32.mrf.mxu0
      %v4309 = vadd.f32 0.0, %v4308
      %v4310 = vpop.f32.mrf.mxu0
      %v4311 = vadd.f32 0.0, %v4310
      %4312 = vmatmul.bf16.gmra.mxu0 %v3169
      %v4313 = vpop.f32.mrf.mxu0
      %v4314 = vadd.f32 0.0, %v4313
      %v4315 = vpop.f32.mrf.mxu0
      %v4316 = vadd.f32 0.0, %v4315
      %4317 = vmatmul.bf16.gmra.mxu0 %v3173
      %v4318 = vpop.f32.mrf.mxu0
      %v4319 = vadd.f32 0.0, %v4318
      %v4320 = vpop.f32.mrf.mxu0
      %v4321 = vadd.f32 0.0, %v4320
      %4322 = vmatmul.bf16.gmra.mxu0 %v3177
      %v4323 = vpop.f32.mrf.mxu0
      %v4324 = vadd.f32 0.0, %v4323
      %v4325 = vpop.f32.mrf.mxu0
      %v4326 = vadd.f32 0.0, %v4325
      %4327 = vdwg.mxu0
      %4328 = vmatpush.bf16.msra.mxu0 %v3770
      %4329 = vmatpush.bf16.msra.mxu0 %v3764
      %4330 = vmatpush.bf16.msra.mxu0 %v3758
      %4331 = vmatpush.bf16.msra.mxu0 %v3752
      %4332 = vmatpush.bf16.msra.mxu0 %v3746
      %4333 = vmatpush.bf16.msra.mxu0 %v3740
      %4334 = vmatpush.bf16.msra.mxu0 %v3734
      %4335 = vmatpush.bf16.msra.mxu0 %v3728
      %4336 = vmatmul.bf16.gmra.mxu0 %v3142
      %v4337 = vpop.f32.mrf.mxu0
      %v4338 = vadd.f32 %v4279, %v4337
      %v4339 = vpop.f32.mrf.mxu0
      %v4340 = vadd.f32 %v4281, %v4339
      %4341 = vmatmul.bf16.gmra.mxu0 %v3146
      %v4342 = vpop.f32.mrf.mxu0
      %v4343 = vadd.f32 %v4284, %v4342
      %v4344 = vpop.f32.mrf.mxu0
      %v4345 = vadd.f32 %v4286, %v4344
      %4346 = vmatmul.bf16.gmra.mxu0 %v3150
      %v4347 = vpop.f32.mrf.mxu0
      %v4348 = vadd.f32 %v4289, %v4347
      %v4349 = vpop.f32.mrf.mxu0
      %v4350 = vadd.f32 %v4291, %v4349
      %4351 = vmatmul.bf16.gmra.mxu0 %v3154
      %v4352 = vpop.f32.mrf.mxu0
      %v4353 = vadd.f32 %v4294, %v4352
      %v4354 = vpop.f32.mrf.mxu0
      %v4355 = vadd.f32 %v4296, %v4354
      %4356 = vmatmul.bf16.gmra.mxu0 %v3158
      %v4357 = vpop.f32.mrf.mxu0
      %v4358 = vadd.f32 %v4299, %v4357
      %v4359 = vpop.f32.mrf.mxu0
      %v4360 = vadd.f32 %v4301, %v4359
      %4361 = vmatmul.bf16.gmra.mxu0 %v3162
      %v4362 = vpop.f32.mrf.mxu0
      %v4363 = vadd.f32 %v4304, %v4362
      %v4364 = vpop.f32.mrf.mxu0
      %v4365 = vadd.f32 %v4306, %v4364
      %4366 = vmatmul.bf16.gmra.mxu0 %v3166
      %v4367 = vpop.f32.mrf.mxu0
      %v4368 = vadd.f32 %v4309, %v4367
      %v4369 = vpop.f32.mrf.mxu0
      %v4370 = vadd.f32 %v4311, %v4369
      %4371 = vmatmul.bf16.gmra.mxu0 %v3170
      %v4372 = vpop.f32.mrf.mxu0
      %v4373 = vadd.f32 %v4314, %v4372
      %v4374 = vpop.f32.mrf.mxu0
      %v4375 = vadd.f32 %v4316, %v4374
      %4376 = vmatmul.bf16.gmra.mxu0 %v3174
      %v4377 = vpop.f32.mrf.mxu0
      %v4378 = vadd.f32 %v4319, %v4377
      %v4379 = vpop.f32.mrf.mxu0
      %v4380 = vadd.f32 %v4321, %v4379
      %4381 = vmatmul.bf16.gmra.mxu0 %v3178
      %v4382 = vpop.f32.mrf.mxu0
      %v4383 = vadd.f32 %v4324, %v4382
      %v4384 = vpop.f32.mrf.mxu0
      %v4385 = vadd.f32 %v4326, %v4384
      %4386 = vdwg.mxu0
      %4387 = vmatpush.bf16.msra.mxu0 %v3818
      %4388 = vmatpush.bf16.msra.mxu0 %v3812
      %4389 = vmatpush.bf16.msra.mxu0 %v3806
      %4390 = vmatpush.bf16.msra.mxu0 %v3800
      %4391 = vmatpush.bf16.msra.mxu0 %v3794
      %4392 = vmatpush.bf16.msra.mxu0 %v3788
      %4393 = vmatpush.bf16.msra.mxu0 %v3782
      %4394 = vmatpush.bf16.msra.mxu0 %v3776
      %4395 = vmatmul.bf16.gmra.mxu0 %v3143
      %v4396 = vpop.f32.mrf.mxu0
      %v4397 = vadd.f32 %v4338, %v4396
      %v4398 = vpop.f32.mrf.mxu0
      %v4399 = vadd.f32 %v4340, %v4398
      %4400 = vmatmul.bf16.gmra.mxu0 %v3147
      %v4401 = vpop.f32.mrf.mxu0
      %v4402 = vadd.f32 %v4343, %v4401
      %v4403 = vpop.f32.mrf.mxu0
      %v4404 = vadd.f32 %v4345, %v4403
      %4405 = vmatmul.bf16.gmra.mxu0 %v3151
      %v4406 = vpop.f32.mrf.mxu0
      %v4407 = vadd.f32 %v4348, %v4406
      %v4408 = vpop.f32.mrf.mxu0
      %v4409 = vadd.f32 %v4350, %v4408
      %4410 = vmatmul.bf16.gmra.mxu0 %v3155
      %v4411 = vpop.f32.mrf.mxu0
      %v4412 = vadd.f32 %v4353, %v4411
      %v4413 = vpop.f32.mrf.mxu0
      %v4414 = vadd.f32 %v4355, %v4413
      %4415 = vmatmul.bf16.gmra.mxu0 %v3159
      %v4416 = vpop.f32.mrf.mxu0
      %v4417 = vadd.f32 %v4358, %v4416
      %v4418 = vpop.f32.mrf.mxu0
      %v4419 = vadd.f32 %v4360, %v4418
      %4420 = vmatmul.bf16.gmra.mxu0 %v3163
      %v4421 = vpop.f32.mrf.mxu0
      %v4422 = vadd.f32 %v4363, %v4421
      %v4423 = vpop.f32.mrf.mxu0
      %v4424 = vadd.f32 %v4365, %v4423
      %4425 = vmatmul.bf16.gmra.mxu0 %v3167
      %v4426 = vpop.f32.mrf.mxu0
      %v4427 = vadd.f32 %v4368, %v4426
      %v4428 = vpop.f32.mrf.mxu0
      %v4429 = vadd.f32 %v4370, %v4428
      %4430 = vmatmul.bf16.gmra.mxu0 %v3171
      %v4431 = vpop.f32.mrf.mxu0
      %v4432 = vadd.f32 %v4373, %v4431
      %v4433 = vpop.f32.mrf.mxu0
      %v4434 = vadd.f32 %v4375, %v4433
      %4435 = vmatmul.bf16.gmra.mxu0 %v3175
      %v4436 = vpop.f32.mrf.mxu0
      %v4437 = vadd.f32 %v4378, %v4436
      %v4438 = vpop.f32.mrf.mxu0
      %v4439 = vadd.f32 %v4380, %v4438
      %4440 = vmatmul.bf16.gmra.mxu0 %v3179
      %v4441 = vpop.f32.mrf.mxu0
      %v4442 = vadd.f32 %v4383, %v4441
      %v4443 = vpop.f32.mrf.mxu0
      %v4444 = vadd.f32 %v4385, %v4443
      %4445 = vdwg.mxu0
      %4446 = vmatpush.bf16.msra.mxu0 0
      %4447 = vmatpush.bf16.msra.mxu0 0
      %4448 = vmatpush.bf16.msra.mxu0 0
      %4449 = vmatpush.bf16.msra.mxu0 0
      %4450 = vmatpush.bf16.msra.mxu0 0
      %4451 = vmatpush.bf16.msra.mxu0 0
      %4452 = vmatpush.bf16.msra.mxu0 %v4019
      %4453 = vmatpush.bf16.msra.mxu0 %v3824
      %4454 = vmatmul.bf16.gmra.mxu0 %v3986
      %v4455 = vpop.f32.mrf.mxu0
      %v4456 = vadd.f32 %v4397, %v4455
      %v4457 = vpop.f32.mrf.mxu0
      %v4458 = vadd.f32 %v4399, %v4457
      %4459 = vmatmul.bf16.gmra.mxu0 %v3989
      %v4460 = vpop.f32.mrf.mxu0
      %v4461 = vadd.f32 %v4402, %v4460
      %v4462 = vpop.f32.mrf.mxu0
      %v4463 = vadd.f32 %v4404, %v4462
      %4464 = vmatmul.bf16.gmra.mxu0 %v3992
      %v4465 = vpop.f32.mrf.mxu0
      %v4466 = vadd.f32 %v4407, %v4465
      %v4467 = vpop.f32.mrf.mxu0
      %v4468 = vadd.f32 %v4409, %v4467
      %4469 = vmatmul.bf16.gmra.mxu0 %v3995
      %v4470 = vpop.f32.mrf.mxu0
      %v4471 = vadd.f32 %v4412, %v4470
      %v4472 = vpop.f32.mrf.mxu0
      %v4473 = vadd.f32 %v4414, %v4472
      %4474 = vmatmul.bf16.gmra.mxu0 %v3998
      %v4475 = vpop.f32.mrf.mxu0
      %v4476 = vadd.f32 %v4417, %v4475
      %v4477 = vpop.f32.mrf.mxu0
      %v4478 = vadd.f32 %v4419, %v4477
      %4479 = vmatmul.bf16.gmra.mxu0 %v4001
      %v4480 = vpop.f32.mrf.mxu0
      %v4481 = vadd.f32 %v4422, %v4480
      %v4482 = vpop.f32.mrf.mxu0
      %v4483 = vadd.f32 %v4424, %v4482
      %4484 = vmatmul.bf16.gmra.mxu0 %v4004
      %v4485 = vpop.f32.mrf.mxu0
      %v4486 = vadd.f32 %v4427, %v4485
      %v4487 = vpop.f32.mrf.mxu0
      %v4488 = vadd.f32 %v4429, %v4487
      %4489 = vmatmul.bf16.gmra.mxu0 %v4007
      %v4490 = vpop.f32.mrf.mxu0
      %v4491 = vadd.f32 %v4432, %v4490
      %v4492 = vpop.f32.mrf.mxu0
      %v4493 = vadd.f32 %v4434, %v4492
      %4494 = vmatmul.bf16.gmra.mxu0 %v4010
      %v4495 = vpop.f32.mrf.mxu0
      %v4496 = vadd.f32 %v4437, %v4495
      %v4497 = vpop.f32.mrf.mxu0
      %v4498 = vadd.f32 %v4439, %v4497
      %4499 = vmatmul.bf16.gmra.mxu0 %v4013
      %v4500 = vpop.f32.mrf.mxu0
      %v4501 = vadd.f32 %v4442, %v4500
      %v4502 = vpop.f32.mrf.mxu0
      %v4503 = vadd.f32 %v4444, %v4502
      %4504 = vdwg.mxu0
      %4505 = vmatpush.bf16.msra.mxu0 %v3723
      %4506 = vmatpush.bf16.msra.mxu0 %v3717
      %4507 = vmatpush.bf16.msra.mxu0 %v3711
      %4508 = vmatpush.bf16.msra.mxu0 %v3705
      %4509 = vmatpush.bf16.msra.mxu0 %v3699
      %4510 = vmatpush.bf16.msra.mxu0 %v3693
      %4511 = vmatpush.bf16.msra.mxu0 %v3687
      %4512 = vmatpush.bf16.msra.mxu0 %v3681
      %4513 = vmatmul.bf16.gmra.mxu0 %v3141
      %v4514 = vpop.f32.mrf.mxu0
      %v4515 = vadd.f32 0.0, %v4514
      %v4516 = vpop.f32.mrf.mxu0
      %v4517 = vadd.f32 0.0, %v4516
      %4518 = vmatmul.bf16.gmra.mxu0 %v3145
      %v4519 = vpop.f32.mrf.mxu0
      %v4520 = vadd.f32 0.0, %v4519
      %v4521 = vpop.f32.mrf.mxu0
      %v4522 = vadd.f32 0.0, %v4521
      %4523 = vmatmul.bf16.gmra.mxu0 %v3149
      %v4524 = vpop.f32.mrf.mxu0
      %v4525 = vadd.f32 0.0, %v4524
      %v4526 = vpop.f32.mrf.mxu0
      %v4527 = vadd.f32 0.0, %v4526
      %4528 = vmatmul.bf16.gmra.mxu0 %v3153
      %v4529 = vpop.f32.mrf.mxu0
      %v4530 = vadd.f32 0.0, %v4529
      %v4531 = vpop.f32.mrf.mxu0
      %v4532 = vadd.f32 0.0, %v4531
      %4533 = vmatmul.bf16.gmra.mxu0 %v3157
      %v4534 = vpop.f32.mrf.mxu0
      %v4535 = vadd.f32 0.0, %v4534
      %v4536 = vpop.f32.mrf.mxu0
      %v4537 = vadd.f32 0.0, %v4536
      %4538 = vmatmul.bf16.gmra.mxu0 %v3161
      %v4539 = vpop.f32.mrf.mxu0
      %v4540 = vadd.f32 0.0, %v4539
      %v4541 = vpop.f32.mrf.mxu0
      %v4542 = vadd.f32 0.0, %v4541
      %4543 = vmatmul.bf16.gmra.mxu0 %v3165
      %v4544 = vpop.f32.mrf.mxu0
      %v4545 = vadd.f32 0.0, %v4544
      %v4546 = vpop.f32.mrf.mxu0
      %v4547 = vadd.f32 0.0, %v4546
      %4548 = vmatmul.bf16.gmra.mxu0 %v3169
      %v4549 = vpop.f32.mrf.mxu0
      %v4550 = vadd.f32 0.0, %v4549
      %v4551 = vpop.f32.mrf.mxu0
      %v4552 = vadd.f32 0.0, %v4551
      %4553 = vmatmul.bf16.gmra.mxu0 %v3173
      %v4554 = vpop.f32.mrf.mxu0
      %v4555 = vadd.f32 0.0, %v4554
      %v4556 = vpop.f32.mrf.mxu0
      %v4557 = vadd.f32 0.0, %v4556
      %4558 = vmatmul.bf16.gmra.mxu0 %v3177
      %v4559 = vpop.f32.mrf.mxu0
      %v4560 = vadd.f32 0.0, %v4559
      %v4561 = vpop.f32.mrf.mxu0
      %v4562 = vadd.f32 0.0, %v4561
      %4563 = vdwg.mxu0
      %4564 = vmatpush.bf16.msra.mxu0 %v3771
      %4565 = vmatpush.bf16.msra.mxu0 %v3765
      %4566 = vmatpush.bf16.msra.mxu0 %v3759
      %4567 = vmatpush.bf16.msra.mxu0 %v3753
      %4568 = vmatpush.bf16.msra.mxu0 %v3747
      %4569 = vmatpush.bf16.msra.mxu0 %v3741
      %4570 = vmatpush.bf16.msra.mxu0 %v3735
      %4571 = vmatpush.bf16.msra.mxu0 %v3729
      %4572 = vmatmul.bf16.gmra.mxu0 %v3142
      %v4573 = vpop.f32.mrf.mxu0
      %v4574 = vadd.f32 %v4515, %v4573
      %v4575 = vpop.f32.mrf.mxu0
      %v4576 = vadd.f32 %v4517, %v4575
      %4577 = vmatmul.bf16.gmra.mxu0 %v3146
      %v4578 = vpop.f32.mrf.mxu0
      %v4579 = vadd.f32 %v4520, %v4578
      %v4580 = vpop.f32.mrf.mxu0
      %v4581 = vadd.f32 %v4522, %v4580
      %4582 = vmatmul.bf16.gmra.mxu0 %v3150
      %v4583 = vpop.f32.mrf.mxu0
      %v4584 = vadd.f32 %v4525, %v4583
      %v4585 = vpop.f32.mrf.mxu0
      %v4586 = vadd.f32 %v4527, %v4585
      %4587 = vmatmul.bf16.gmra.mxu0 %v3154
      %v4588 = vpop.f32.mrf.mxu0
      %v4589 = vadd.f32 %v4530, %v4588
      %v4590 = vpop.f32.mrf.mxu0
      %v4591 = vadd.f32 %v4532, %v4590
      %4592 = vmatmul.bf16.gmra.mxu0 %v3158
      %v4593 = vpop.f32.mrf.mxu0
      %v4594 = vadd.f32 %v4535, %v4593
      %v4595 = vpop.f32.mrf.mxu0
      %v4596 = vadd.f32 %v4537, %v4595
      %4597 = vmatmul.bf16.gmra.mxu0 %v3162
      %v4598 = vpop.f32.mrf.mxu0
      %v4599 = vadd.f32 %v4540, %v4598
      %v4600 = vpop.f32.mrf.mxu0
      %v4601 = vadd.f32 %v4542, %v4600
      %4602 = vmatmul.bf16.gmra.mxu0 %v3166
      %v4603 = vpop.f32.mrf.mxu0
      %v4604 = vadd.f32 %v4545, %v4603
      %v4605 = vpop.f32.mrf.mxu0
      %v4606 = vadd.f32 %v4547, %v4605
      %4607 = vmatmul.bf16.gmra.mxu0 %v3170
      %v4608 = vpop.f32.mrf.mxu0
      %v4609 = vadd.f32 %v4550, %v4608
      %v4610 = vpop.f32.mrf.mxu0
      %v4611 = vadd.f32 %v4552, %v4610
      %4612 = vmatmul.bf16.gmra.mxu0 %v3174
      %v4613 = vpop.f32.mrf.mxu0
      %v4614 = vadd.f32 %v4555, %v4613
      %v4615 = vpop.f32.mrf.mxu0
      %v4616 = vadd.f32 %v4557, %v4615
      %4617 = vmatmul.bf16.gmra.mxu0 %v3178
      %v4618 = vpop.f32.mrf.mxu0
      %v4619 = vadd.f32 %v4560, %v4618
      %v4620 = vpop.f32.mrf.mxu0
      %v4621 = vadd.f32 %v4562, %v4620
      %4622 = vdwg.mxu0
      %4623 = vmatpush.bf16.msra.mxu0 %v3819
      %4624 = vmatpush.bf16.msra.mxu0 %v3813
      %4625 = vmatpush.bf16.msra.mxu0 %v3807
      %4626 = vmatpush.bf16.msra.mxu0 %v3801
      %4627 = vmatpush.bf16.msra.mxu0 %v3795
      %4628 = vmatpush.bf16.msra.mxu0 %v3789
      %4629 = vmatpush.bf16.msra.mxu0 %v3783
      %4630 = vmatpush.bf16.msra.mxu0 %v3777
      %4631 = vmatmul.bf16.gmra.mxu0 %v3143
      %v4632 = vpop.f32.mrf.mxu0
      %v4633 = vadd.f32 %v4574, %v4632
      %v4634 = vpop.f32.mrf.mxu0
      %v4635 = vadd.f32 %v4576, %v4634
      %4636 = vmatmul.bf16.gmra.mxu0 %v3147
      %v4637 = vpop.f32.mrf.mxu0
      %v4638 = vadd.f32 %v4579, %v4637
      %v4639 = vpop.f32.mrf.mxu0
      %v4640 = vadd.f32 %v4581, %v4639
      %4641 = vmatmul.bf16.gmra.mxu0 %v3151
      %v4642 = vpop.f32.mrf.mxu0
      %v4643 = vadd.f32 %v4584, %v4642
      %v4644 = vpop.f32.mrf.mxu0
      %v4645 = vadd.f32 %v4586, %v4644
      %4646 = vmatmul.bf16.gmra.mxu0 %v3155
      %v4647 = vpop.f32.mrf.mxu0
      %v4648 = vadd.f32 %v4589, %v4647
      %v4649 = vpop.f32.mrf.mxu0
      %v4650 = vadd.f32 %v4591, %v4649
      %4651 = vmatmul.bf16.gmra.mxu0 %v3159
      %v4652 = vpop.f32.mrf.mxu0
      %v4653 = vadd.f32 %v4594, %v4652
      %v4654 = vpop.f32.mrf.mxu0
      %v4655 = vadd.f32 %v4596, %v4654
      %4656 = vmatmul.bf16.gmra.mxu0 %v3163
      %v4657 = vpop.f32.mrf.mxu0
      %v4658 = vadd.f32 %v4599, %v4657
      %v4659 = vpop.f32.mrf.mxu0
      %v4660 = vadd.f32 %v4601, %v4659
      %4661 = vmatmul.bf16.gmra.mxu0 %v3167
      %v4662 = vpop.f32.mrf.mxu0
      %v4663 = vadd.f32 %v4604, %v4662
      %v4664 = vpop.f32.mrf.mxu0
      %v4665 = vadd.f32 %v4606, %v4664
      %4666 = vmatmul.bf16.gmra.mxu0 %v3171
      %v4667 = vpop.f32.mrf.mxu0
      %v4668 = vadd.f32 %v4609, %v4667
      %v4669 = vpop.f32.mrf.mxu0
      %v4670 = vadd.f32 %v4611, %v4669
      %4671 = vmatmul.bf16.gmra.mxu0 %v3175
      %v4672 = vpop.f32.mrf.mxu0
      %v4673 = vadd.f32 %v4614, %v4672
      %v4674 = vpop.f32.mrf.mxu0
      %v4675 = vadd.f32 %v4616, %v4674
      %4676 = vmatmul.bf16.gmra.mxu0 %v3179
      %v4677 = vpop.f32.mrf.mxu0
      %v4678 = vadd.f32 %v4619, %v4677
      %v4679 = vpop.f32.mrf.mxu0
      %v4680 = vadd.f32 %v4621, %v4679
      %4681 = vdwg.mxu0
      %4682 = vmatpush.bf16.msra.mxu0 0
      %4683 = vmatpush.bf16.msra.mxu0 0
      %4684 = vmatpush.bf16.msra.mxu0 0
      %4685 = vmatpush.bf16.msra.mxu0 0
      %4686 = vmatpush.bf16.msra.mxu0 0
      %4687 = vmatpush.bf16.msra.mxu0 0
      %4688 = vmatpush.bf16.msra.mxu0 %v4022
      %4689 = vmatpush.bf16.msra.mxu0 %v3825
      %4690 = vmatmul.bf16.gmra.mxu0 %v3986
      %v4691 = vpop.f32.mrf.mxu0
      %v4692 = vadd.f32 %v4633, %v4691
      %v4693 = vpop.f32.mrf.mxu0
      %v4694 = vadd.f32 %v4635, %v4693
      %4695 = vmatmul.bf16.gmra.mxu0 %v3989
      %v4696 = vpop.f32.mrf.mxu0
      %v4697 = vadd.f32 %v4638, %v4696
      %v4698 = vpop.f32.mrf.mxu0
      %v4699 = vadd.f32 %v4640, %v4698
      %4700 = vmatmul.bf16.gmra.mxu0 %v3992
      %v4701 = vpop.f32.mrf.mxu0
      %v4702 = vadd.f32 %v4643, %v4701
      %v4703 = vpop.f32.mrf.mxu0
      %v4704 = vadd.f32 %v4645, %v4703
      %4705 = vmatmul.bf16.gmra.mxu0 %v3995
      %v4706 = vpop.f32.mrf.mxu0
      %v4707 = vadd.f32 %v4648, %v4706
      %v4708 = vpop.f32.mrf.mxu0
      %v4709 = vadd.f32 %v4650, %v4708
      %4710 = vmatmul.bf16.gmra.mxu0 %v3998
      %v4711 = vpop.f32.mrf.mxu0
      %v4712 = vadd.f32 %v4653, %v4711
      %v4713 = vpop.f32.mrf.mxu0
      %v4714 = vadd.f32 %v4655, %v4713
      %4715 = vmatmul.bf16.gmra.mxu0 %v4001
      %v4716 = vpop.f32.mrf.mxu0
      %v4717 = vadd.f32 %v4658, %v4716
      %v4718 = vpop.f32.mrf.mxu0
      %v4719 = vadd.f32 %v4660, %v4718
      %4720 = vmatmul.bf16.gmra.mxu0 %v4004
      %v4721 = vpop.f32.mrf.mxu0
      %v4722 = vadd.f32 %v4663, %v4721
      %v4723 = vpop.f32.mrf.mxu0
      %v4724 = vadd.f32 %v4665, %v4723
      %4725 = vmatmul.bf16.gmra.mxu0 %v4007
      %v4726 = vpop.f32.mrf.mxu0
      %v4727 = vadd.f32 %v4668, %v4726
      %v4728 = vpop.f32.mrf.mxu0
      %v4729 = vadd.f32 %v4670, %v4728
      %4730 = vmatmul.bf16.gmra.mxu0 %v4010
      %v4731 = vpop.f32.mrf.mxu0
      %v4732 = vadd.f32 %v4673, %v4731
      %v4733 = vpop.f32.mrf.mxu0
      %v4734 = vadd.f32 %v4675, %v4733
      %4735 = vmatmul.bf16.gmra.mxu0 %v4013
      %v4736 = vpop.f32.mrf.mxu0
      %v4737 = vadd.f32 %v4678, %v4736
      %v4738 = vpop.f32.mrf.mxu0
      %v4739 = vadd.f32 %v4680, %v4738
      %4740 = vdwg.mxu0
      %4741 = vmatpush.bf16.msra.mxu0 %v3724
      %4742 = vmatpush.bf16.msra.mxu0 %v3718
      %4743 = vmatpush.bf16.msra.mxu0 %v3712
      %4744 = vmatpush.bf16.msra.mxu0 %v3706
      %4745 = vmatpush.bf16.msra.mxu0 %v3700
      %4746 = vmatpush.bf16.msra.mxu0 %v3694
      %4747 = vmatpush.bf16.msra.mxu0 %v3688
      %4748 = vmatpush.bf16.msra.mxu0 %v3682
      %4749 = vmatmul.bf16.gmra.mxu0 %v3141
      %v4750 = vpop.f32.mrf.mxu0
      %v4751 = vadd.f32 0.0, %v4750
      %v4752 = vpop.f32.mrf.mxu0
      %v4753 = vadd.f32 0.0, %v4752
      %4754 = vmatmul.bf16.gmra.mxu0 %v3145
      %v4755 = vpop.f32.mrf.mxu0
      %v4756 = vadd.f32 0.0, %v4755
      %v4757 = vpop.f32.mrf.mxu0
      %v4758 = vadd.f32 0.0, %v4757
      %4759 = vmatmul.bf16.gmra.mxu0 %v3149
      %v4760 = vpop.f32.mrf.mxu0
      %v4761 = vadd.f32 0.0, %v4760
      %v4762 = vpop.f32.mrf.mxu0
      %v4763 = vadd.f32 0.0, %v4762
      %4764 = vmatmul.bf16.gmra.mxu0 %v3153
      %v4765 = vpop.f32.mrf.mxu0
      %v4766 = vadd.f32 0.0, %v4765
      %v4767 = vpop.f32.mrf.mxu0
      %v4768 = vadd.f32 0.0, %v4767
      %4769 = vmatmul.bf16.gmra.mxu0 %v3157
      %v4770 = vpop.f32.mrf.mxu0
      %v4771 = vadd.f32 0.0, %v4770
      %v4772 = vpop.f32.mrf.mxu0
      %v4773 = vadd.f32 0.0, %v4772
      %4774 = vmatmul.bf16.gmra.mxu0 %v3161
      %v4775 = vpop.f32.mrf.mxu0
      %v4776 = vadd.f32 0.0, %v4775
      %v4777 = vpop.f32.mrf.mxu0
      %v4778 = vadd.f32 0.0, %v4777
      %4779 = vmatmul.bf16.gmra.mxu0 %v3165
      %v4780 = vpop.f32.mrf.mxu0
      %v4781 = vadd.f32 0.0, %v4780
      %v4782 = vpop.f32.mrf.mxu0
      %v4783 = vadd.f32 0.0, %v4782
      %4784 = vmatmul.bf16.gmra.mxu0 %v3169
      %v4785 = vpop.f32.mrf.mxu0
      %v4786 = vadd.f32 0.0, %v4785
      %v4787 = vpop.f32.mrf.mxu0
      %v4788 = vadd.f32 0.0, %v4787
      %4789 = vmatmul.bf16.gmra.mxu0 %v3173
      %v4790 = vpop.f32.mrf.mxu0
      %v4791 = vadd.f32 0.0, %v4790
      %v4792 = vpop.f32.mrf.mxu0
      %v4793 = vadd.f32 0.0, %v4792
      %4794 = vmatmul.bf16.gmra.mxu0 %v3177
      %v4795 = vpop.f32.mrf.mxu0
      %v4796 = vadd.f32 0.0, %v4795
      %v4797 = vpop.f32.mrf.mxu0
      %v4798 = vadd.f32 0.0, %v4797
      %4799 = vdwg.mxu0
      %4800 = vmatpush.bf16.msra.mxu0 %v3772
      %4801 = vmatpush.bf16.msra.mxu0 %v3766
      %4802 = vmatpush.bf16.msra.mxu0 %v3760
      %4803 = vmatpush.bf16.msra.mxu0 %v3754
      %4804 = vmatpush.bf16.msra.mxu0 %v3748
      %4805 = vmatpush.bf16.msra.mxu0 %v3742
      %4806 = vmatpush.bf16.msra.mxu0 %v3736
      %4807 = vmatpush.bf16.msra.mxu0 %v3730
      %4808 = vmatmul.bf16.gmra.mxu0 %v3142
      %v4809 = vpop.f32.mrf.mxu0
      %v4810 = vadd.f32 %v4751, %v4809
      %v4811 = vpop.f32.mrf.mxu0
      %v4812 = vadd.f32 %v4753, %v4811
      %4813 = vmatmul.bf16.gmra.mxu0 %v3146
      %v4814 = vpop.f32.mrf.mxu0
      %v4815 = vadd.f32 %v4756, %v4814
      %v4816 = vpop.f32.mrf.mxu0
      %v4817 = vadd.f32 %v4758, %v4816
      %4818 = vmatmul.bf16.gmra.mxu0 %v3150
      %v4819 = vpop.f32.mrf.mxu0
      %v4820 = vadd.f32 %v4761, %v4819
      %v4821 = vpop.f32.mrf.mxu0
      %v4822 = vadd.f32 %v4763, %v4821
      %4823 = vmatmul.bf16.gmra.mxu0 %v3154
      %v4824 = vpop.f32.mrf.mxu0
      %v4825 = vadd.f32 %v4766, %v4824
      %v4826 = vpop.f32.mrf.mxu0
      %v4827 = vadd.f32 %v4768, %v4826
      %4828 = vmatmul.bf16.gmra.mxu0 %v3158
      %v4829 = vpop.f32.mrf.mxu0
      %v4830 = vadd.f32 %v4771, %v4829
      %v4831 = vpop.f32.mrf.mxu0
      %v4832 = vadd.f32 %v4773, %v4831
      %4833 = vmatmul.bf16.gmra.mxu0 %v3162
      %v4834 = vpop.f32.mrf.mxu0
      %v4835 = vadd.f32 %v4776, %v4834
      %v4836 = vpop.f32.mrf.mxu0
      %v4837 = vadd.f32 %v4778, %v4836
      %4838 = vmatmul.bf16.gmra.mxu0 %v3166
      %v4839 = vpop.f32.mrf.mxu0
      %v4840 = vadd.f32 %v4781, %v4839
      %v4841 = vpop.f32.mrf.mxu0
      %v4842 = vadd.f32 %v4783, %v4841
      %4843 = vmatmul.bf16.gmra.mxu0 %v3170
      %v4844 = vpop.f32.mrf.mxu0
      %v4845 = vadd.f32 %v4786, %v4844
      %v4846 = vpop.f32.mrf.mxu0
      %v4847 = vadd.f32 %v4788, %v4846
      %4848 = vmatmul.bf16.gmra.mxu0 %v3174
      %v4849 = vpop.f32.mrf.mxu0
      %v4850 = vadd.f32 %v4791, %v4849
      %v4851 = vpop.f32.mrf.mxu0
      %v4852 = vadd.f32 %v4793, %v4851
      %4853 = vmatmul.bf16.gmra.mxu0 %v3178
      %v4854 = vpop.f32.mrf.mxu0
      %v4855 = vadd.f32 %v4796, %v4854
      %v4856 = vpop.f32.mrf.mxu0
      %v4857 = vadd.f32 %v4798, %v4856
      %4858 = vdwg.mxu0
      %4859 = vmatpush.bf16.msra.mxu0 %v3820
      %4860 = vmatpush.bf16.msra.mxu0 %v3814
      %4861 = vmatpush.bf16.msra.mxu0 %v3808
      %4862 = vmatpush.bf16.msra.mxu0 %v3802
      %4863 = vmatpush.bf16.msra.mxu0 %v3796
      %4864 = vmatpush.bf16.msra.mxu0 %v3790
      %4865 = vmatpush.bf16.msra.mxu0 %v3784
      %4866 = vmatpush.bf16.msra.mxu0 %v3778
      %4867 = vmatmul.bf16.gmra.mxu0 %v3143
      %v4868 = vpop.f32.mrf.mxu0
      %v4869 = vadd.f32 %v4810, %v4868
      %v4870 = vpop.f32.mrf.mxu0
      %v4871 = vadd.f32 %v4812, %v4870
      %4872 = vmatmul.bf16.gmra.mxu0 %v3147
      %v4873 = vpop.f32.mrf.mxu0
      %v4874 = vadd.f32 %v4815, %v4873
      %v4875 = vpop.f32.mrf.mxu0
      %v4876 = vadd.f32 %v4817, %v4875
      %4877 = vmatmul.bf16.gmra.mxu0 %v3151
      %v4878 = vpop.f32.mrf.mxu0
      %v4879 = vadd.f32 %v4820, %v4878
      %v4880 = vpop.f32.mrf.mxu0
      %v4881 = vadd.f32 %v4822, %v4880
      %4882 = vmatmul.bf16.gmra.mxu0 %v3155
      %v4883 = vpop.f32.mrf.mxu0
      %v4884 = vadd.f32 %v4825, %v4883
      %v4885 = vpop.f32.mrf.mxu0
      %v4886 = vadd.f32 %v4827, %v4885
      %4887 = vmatmul.bf16.gmra.mxu0 %v3159
      %v4888 = vpop.f32.mrf.mxu0
      %v4889 = vadd.f32 %v4830, %v4888
      %v4890 = vpop.f32.mrf.mxu0
      %v4891 = vadd.f32 %v4832, %v4890
      %4892 = vmatmul.bf16.gmra.mxu0 %v3163
      %v4893 = vpop.f32.mrf.mxu0
      %v4894 = vadd.f32 %v4835, %v4893
      %v4895 = vpop.f32.mrf.mxu0
      %v4896 = vadd.f32 %v4837, %v4895
      %4897 = vmatmul.bf16.gmra.mxu0 %v3167
      %v4898 = vpop.f32.mrf.mxu0
      %v4899 = vadd.f32 %v4840, %v4898
      %v4900 = vpop.f32.mrf.mxu0
      %v4901 = vadd.f32 %v4842, %v4900
      %4902 = vmatmul.bf16.gmra.mxu0 %v3171
      %v4903 = vpop.f32.mrf.mxu0
      %v4904 = vadd.f32 %v4845, %v4903
      %v4905 = vpop.f32.mrf.mxu0
      %v4906 = vadd.f32 %v4847, %v4905
      %4907 = vmatmul.bf16.gmra.mxu0 %v3175
      %v4908 = vpop.f32.mrf.mxu0
      %v4909 = vadd.f32 %v4850, %v4908
      %v4910 = vpop.f32.mrf.mxu0
      %v4911 = vadd.f32 %v4852, %v4910
      %4912 = vmatmul.bf16.gmra.mxu0 %v3179
      %v4913 = vpop.f32.mrf.mxu0
      %v4914 = vadd.f32 %v4855, %v4913
      %v4915 = vpop.f32.mrf.mxu0
      %v4916 = vadd.f32 %v4857, %v4915
      %4917 = vdwg.mxu0
      %4918 = vmatpush.bf16.msra.mxu0 0
      %4919 = vmatpush.bf16.msra.mxu0 0
      %4920 = vmatpush.bf16.msra.mxu0 0
      %4921 = vmatpush.bf16.msra.mxu0 0
      %4922 = vmatpush.bf16.msra.mxu0 0
      %4923 = vmatpush.bf16.msra.mxu0 0
      %4924 = vmatpush.bf16.msra.mxu0 %v4025
      %4925 = vmatpush.bf16.msra.mxu0 %v3826
      %4926 = vmatmul.bf16.gmra.mxu0 %v3986
      %v4927 = vpop.f32.mrf.mxu0
      %v4928 = vadd.f32 %v4869, %v4927
      %v4929 = vpop.f32.mrf.mxu0
      %v4930 = vadd.f32 %v4871, %v4929
      %4931 = vmatmul.bf16.gmra.mxu0 %v3989
      %v4932 = vpop.f32.mrf.mxu0
      %v4933 = vadd.f32 %v4874, %v4932
      %v4934 = vpop.f32.mrf.mxu0
      %v4935 = vadd.f32 %v4876, %v4934
      %4936 = vmatmul.bf16.gmra.mxu0 %v3992
      %v4937 = vpop.f32.mrf.mxu0
      %v4938 = vadd.f32 %v4879, %v4937
      %v4939 = vpop.f32.mrf.mxu0
      %v4940 = vadd.f32 %v4881, %v4939
      %4941 = vmatmul.bf16.gmra.mxu0 %v3995
      %v4942 = vpop.f32.mrf.mxu0
      %v4943 = vadd.f32 %v4884, %v4942
      %v4944 = vpop.f32.mrf.mxu0
      %v4945 = vadd.f32 %v4886, %v4944
      %4946 = vmatmul.bf16.gmra.mxu0 %v3998
      %v4947 = vpop.f32.mrf.mxu0
      %v4948 = vadd.f32 %v4889, %v4947
      %v4949 = vpop.f32.mrf.mxu0
      %v4950 = vadd.f32 %v4891, %v4949
      %4951 = vmatmul.bf16.gmra.mxu0 %v4001
      %v4952 = vpop.f32.mrf.mxu0
      %v4953 = vadd.f32 %v4894, %v4952
      %v4954 = vpop.f32.mrf.mxu0
      %v4955 = vadd.f32 %v4896, %v4954
      %4956 = vmatmul.bf16.gmra.mxu0 %v4004
      %v4957 = vpop.f32.mrf.mxu0
      %v4958 = vadd.f32 %v4899, %v4957
      %v4959 = vpop.f32.mrf.mxu0
      %v4960 = vadd.f32 %v4901, %v4959
      %4961 = vmatmul.bf16.gmra.mxu0 %v4007
      %v4962 = vpop.f32.mrf.mxu0
      %v4963 = vadd.f32 %v4904, %v4962
      %v4964 = vpop.f32.mrf.mxu0
      %v4965 = vadd.f32 %v4906, %v4964
      %4966 = vmatmul.bf16.gmra.mxu0 %v4010
      %v4967 = vpop.f32.mrf.mxu0
      %v4968 = vadd.f32 %v4909, %v4967
      %v4969 = vpop.f32.mrf.mxu0
      %v4970 = vadd.f32 %v4911, %v4969
      %4971 = vmatmul.bf16.gmra.mxu0 %v4013
      %v4972 = vpop.f32.mrf.mxu0
      %v4973 = vadd.f32 %v4914, %v4972
      %v4974 = vpop.f32.mrf.mxu0
      %v4975 = vadd.f32 %v4916, %v4974
      %4976 = vdwg.mxu0
      %4977 = vmatpush.bf16.msra.mxu0 %v3725
      %4978 = vmatpush.bf16.msra.mxu0 %v3719
      %4979 = vmatpush.bf16.msra.mxu0 %v3713
      %4980 = vmatpush.bf16.msra.mxu0 %v3707
      %4981 = vmatpush.bf16.msra.mxu0 %v3701
      %4982 = vmatpush.bf16.msra.mxu0 %v3695
      %4983 = vmatpush.bf16.msra.mxu0 %v3689
      %4984 = vmatpush.bf16.msra.mxu0 %v3683
      %4985 = vmatmul.bf16.gmra.mxu0 %v3141
      %v4986 = vpop.f32.mrf.mxu0
      %v4987 = vadd.f32 0.0, %v4986
      %v4988 = vpop.f32.mrf.mxu0
      %v4989 = vadd.f32 0.0, %v4988
      %4990 = vmatmul.bf16.gmra.mxu0 %v3145
      %v4991 = vpop.f32.mrf.mxu0
      %v4992 = vadd.f32 0.0, %v4991
      %v4993 = vpop.f32.mrf.mxu0
      %v4994 = vadd.f32 0.0, %v4993
      %4995 = vmatmul.bf16.gmra.mxu0 %v3149
      %v4996 = vpop.f32.mrf.mxu0
      %v4997 = vadd.f32 0.0, %v4996
      %v4998 = vpop.f32.mrf.mxu0
      %v4999 = vadd.f32 0.0, %v4998
      %5000 = vmatmul.bf16.gmra.mxu0 %v3153
      %v5001 = vpop.f32.mrf.mxu0
      %v5002 = vadd.f32 0.0, %v5001
      %v5003 = vpop.f32.mrf.mxu0
      %v5004 = vadd.f32 0.0, %v5003
      %5005 = vmatmul.bf16.gmra.mxu0 %v3157
      %v5006 = vpop.f32.mrf.mxu0
      %v5007 = vadd.f32 0.0, %v5006
      %v5008 = vpop.f32.mrf.mxu0
      %v5009 = vadd.f32 0.0, %v5008
      %5010 = vmatmul.bf16.gmra.mxu0 %v3161
      %v5011 = vpop.f32.mrf.mxu0
      %v5012 = vadd.f32 0.0, %v5011
      %v5013 = vpop.f32.mrf.mxu0
      %v5014 = vadd.f32 0.0, %v5013
      %5015 = vmatmul.bf16.gmra.mxu0 %v3165
      %v5016 = vpop.f32.mrf.mxu0
      %v5017 = vadd.f32 0.0, %v5016
      %v5018 = vpop.f32.mrf.mxu0
      %v5019 = vadd.f32 0.0, %v5018
      %5020 = vmatmul.bf16.gmra.mxu0 %v3169
      %v5021 = vpop.f32.mrf.mxu0
      %v5022 = vadd.f32 0.0, %v5021
      %v5023 = vpop.f32.mrf.mxu0
      %v5024 = vadd.f32 0.0, %v5023
      %5025 = vmatmul.bf16.gmra.mxu0 %v3173
      %v5026 = vpop.f32.mrf.mxu0
      %v5027 = vadd.f32 0.0, %v5026
      %v5028 = vpop.f32.mrf.mxu0
      %v5029 = vadd.f32 0.0, %v5028
      %5030 = vmatmul.bf16.gmra.mxu0 %v3177
      %v5031 = vpop.f32.mrf.mxu0
      %v5032 = vadd.f32 0.0, %v5031
      %v5033 = vpop.f32.mrf.mxu0
      %v5034 = vadd.f32 0.0, %v5033
      %5035 = vdwg.mxu0
      %5036 = vmatpush.bf16.msra.mxu0 %v3773
      %5037 = vmatpush.bf16.msra.mxu0 %v3767
      %5038 = vmatpush.bf16.msra.mxu0 %v3761
      %5039 = vmatpush.bf16.msra.mxu0 %v3755
      %5040 = vmatpush.bf16.msra.mxu0 %v3749
      %5041 = vmatpush.bf16.msra.mxu0 %v3743
      %5042 = vmatpush.bf16.msra.mxu0 %v3737
      %5043 = vmatpush.bf16.msra.mxu0 %v3731
      %5044 = vmatmul.bf16.gmra.mxu0 %v3142
      %v5045 = vpop.f32.mrf.mxu0
      %v5046 = vadd.f32 %v4987, %v5045
      %v5047 = vpop.f32.mrf.mxu0
      %v5048 = vadd.f32 %v4989, %v5047
      %5049 = vmatmul.bf16.gmra.mxu0 %v3146
      %v5050 = vpop.f32.mrf.mxu0
      %v5051 = vadd.f32 %v4992, %v5050
      %v5052 = vpop.f32.mrf.mxu0
      %v5053 = vadd.f32 %v4994, %v5052
      %5054 = vmatmul.bf16.gmra.mxu0 %v3150
      %v5055 = vpop.f32.mrf.mxu0
      %v5056 = vadd.f32 %v4997, %v5055
      %v5057 = vpop.f32.mrf.mxu0
      %v5058 = vadd.f32 %v4999, %v5057
      %5059 = vmatmul.bf16.gmra.mxu0 %v3154
      %v5060 = vpop.f32.mrf.mxu0
      %v5061 = vadd.f32 %v5002, %v5060
      %v5062 = vpop.f32.mrf.mxu0
      %v5063 = vadd.f32 %v5004, %v5062
      %5064 = vmatmul.bf16.gmra.mxu0 %v3158
      %v5065 = vpop.f32.mrf.mxu0
      %v5066 = vadd.f32 %v5007, %v5065
      %v5067 = vpop.f32.mrf.mxu0
      %v5068 = vadd.f32 %v5009, %v5067
      %5069 = vmatmul.bf16.gmra.mxu0 %v3162
      %v5070 = vpop.f32.mrf.mxu0
      %v5071 = vadd.f32 %v5012, %v5070
      %v5072 = vpop.f32.mrf.mxu0
      %v5073 = vadd.f32 %v5014, %v5072
      %5074 = vmatmul.bf16.gmra.mxu0 %v3166
      %v5075 = vpop.f32.mrf.mxu0
      %v5076 = vadd.f32 %v5017, %v5075
      %v5077 = vpop.f32.mrf.mxu0
      %v5078 = vadd.f32 %v5019, %v5077
      %5079 = vmatmul.bf16.gmra.mxu0 %v3170
      %v5080 = vpop.f32.mrf.mxu0
      %v5081 = vadd.f32 %v5022, %v5080
      %v5082 = vpop.f32.mrf.mxu0
      %v5083 = vadd.f32 %v5024, %v5082
      %5084 = vmatmul.bf16.gmra.mxu0 %v3174
      %v5085 = vpop.f32.mrf.mxu0
      %v5086 = vadd.f32 %v5027, %v5085
      %v5087 = vpop.f32.mrf.mxu0
      %v5088 = vadd.f32 %v5029, %v5087
      %5089 = vmatmul.bf16.gmra.mxu0 %v3178
      %v5090 = vpop.f32.mrf.mxu0
      %v5091 = vadd.f32 %v5032, %v5090
      %v5092 = vpop.f32.mrf.mxu0
      %v5093 = vadd.f32 %v5034, %v5092
      %5094 = vdwg.mxu0
      %5095 = vmatpush.bf16.msra.mxu0 %v3821
      %5096 = vmatpush.bf16.msra.mxu0 %v3815
      %5097 = vmatpush.bf16.msra.mxu0 %v3809
      %5098 = vmatpush.bf16.msra.mxu0 %v3803
      %5099 = vmatpush.bf16.msra.mxu0 %v3797
      %5100 = vmatpush.bf16.msra.mxu0 %v3791
      %5101 = vmatpush.bf16.msra.mxu0 %v3785
      %5102 = vmatpush.bf16.msra.mxu0 %v3779
      %5103 = vmatmul.bf16.gmra.mxu0 %v3143
      %v5104 = vpop.f32.mrf.mxu0
      %v5105 = vadd.f32 %v5046, %v5104
      %v5106 = vpop.f32.mrf.mxu0
      %v5107 = vadd.f32 %v5048, %v5106
      %5108 = vmatmul.bf16.gmra.mxu0 %v3147
      %v5109 = vpop.f32.mrf.mxu0
      %v5110 = vadd.f32 %v5051, %v5109
      %v5111 = vpop.f32.mrf.mxu0
      %v5112 = vadd.f32 %v5053, %v5111
      %5113 = vmatmul.bf16.gmra.mxu0 %v3151
      %v5114 = vpop.f32.mrf.mxu0
      %v5115 = vadd.f32 %v5056, %v5114
      %v5116 = vpop.f32.mrf.mxu0
      %v5117 = vadd.f32 %v5058, %v5116
      %5118 = vmatmul.bf16.gmra.mxu0 %v3155
      %v5119 = vpop.f32.mrf.mxu0
      %v5120 = vadd.f32 %v5061, %v5119
      %v5121 = vpop.f32.mrf.mxu0
      %v5122 = vadd.f32 %v5063, %v5121
      %5123 = vmatmul.bf16.gmra.mxu0 %v3159
      %v5124 = vpop.f32.mrf.mxu0
      %v5125 = vadd.f32 %v5066, %v5124
      %v5126 = vpop.f32.mrf.mxu0
      %v5127 = vadd.f32 %v5068, %v5126
      %5128 = vmatmul.bf16.gmra.mxu0 %v3163
      %v5129 = vpop.f32.mrf.mxu0
      %v5130 = vadd.f32 %v5071, %v5129
      %v5131 = vpop.f32.mrf.mxu0
      %v5132 = vadd.f32 %v5073, %v5131
      %5133 = vmatmul.bf16.gmra.mxu0 %v3167
      %v5134 = vpop.f32.mrf.mxu0
      %v5135 = vadd.f32 %v5076, %v5134
      %v5136 = vpop.f32.mrf.mxu0
      %v5137 = vadd.f32 %v5078, %v5136
      %5138 = vmatmul.bf16.gmra.mxu0 %v3171
      %v5139 = vpop.f32.mrf.mxu0
      %v5140 = vadd.f32 %v5081, %v5139
      %v5141 = vpop.f32.mrf.mxu0
      %v5142 = vadd.f32 %v5083, %v5141
      %5143 = vmatmul.bf16.gmra.mxu0 %v3175
      %v5144 = vpop.f32.mrf.mxu0
      %v5145 = vadd.f32 %v5086, %v5144
      %v5146 = vpop.f32.mrf.mxu0
      %v5147 = vadd.f32 %v5088, %v5146
      %5148 = vmatmul.bf16.gmra.mxu0 %v3179
      %v5149 = vpop.f32.mrf.mxu0
      %v5150 = vadd.f32 %v5091, %v5149
      %v5151 = vpop.f32.mrf.mxu0
      %v5152 = vadd.f32 %v5093, %v5151
      %5153 = vdwg.mxu0
      %5154 = vmatpush.bf16.msra.mxu0 0
      %5155 = vmatpush.bf16.msra.mxu0 0
      %5156 = vmatpush.bf16.msra.mxu0 0
      %5157 = vmatpush.bf16.msra.mxu0 0
      %5158 = vmatpush.bf16.msra.mxu0 0
      %5159 = vmatpush.bf16.msra.mxu0 0
      %5160 = vmatpush.bf16.msra.mxu0 %v4028
      %5161 = vmatpush.bf16.msra.mxu0 %v3827
      %5162 = vmatmul.bf16.gmra.mxu0 %v3986
      %v5163 = vpop.f32.mrf.mxu0
      %v5164 = vadd.f32 %v5105, %v5163
      %v5165 = vpop.f32.mrf.mxu0
      %v5166 = vadd.f32 %v5107, %v5165
      %5167 = vmatmul.bf16.gmra.mxu0 %v3989
      %v5168 = vpop.f32.mrf.mxu0
      %v5169 = vadd.f32 %v5110, %v5168
      %v5170 = vpop.f32.mrf.mxu0
      %v5171 = vadd.f32 %v5112, %v5170
      %5172 = vmatmul.bf16.gmra.mxu0 %v3992
      %v5173 = vpop.f32.mrf.mxu0
      %v5174 = vadd.f32 %v5115, %v5173
      %v5175 = vpop.f32.mrf.mxu0
      %v5176 = vadd.f32 %v5117, %v5175
      %5177 = vmatmul.bf16.gmra.mxu0 %v3995
      %v5178 = vpop.f32.mrf.mxu0
      %v5179 = vadd.f32 %v5120, %v5178
      %v5180 = vpop.f32.mrf.mxu0
      %v5181 = vadd.f32 %v5122, %v5180
      %5182 = vmatmul.bf16.gmra.mxu0 %v3998
      %v5183 = vpop.f32.mrf.mxu0
      %v5184 = vadd.f32 %v5125, %v5183
      %v5185 = vpop.f32.mrf.mxu0
      %v5186 = vadd.f32 %v5127, %v5185
      %5187 = vmatmul.bf16.gmra.mxu0 %v4001
      %v5188 = vpop.f32.mrf.mxu0
      %v5189 = vadd.f32 %v5130, %v5188
      %v5190 = vpop.f32.mrf.mxu0
      %v5191 = vadd.f32 %v5132, %v5190
      %5192 = vmatmul.bf16.gmra.mxu0 %v4004
      %v5193 = vpop.f32.mrf.mxu0
      %v5194 = vadd.f32 %v5135, %v5193
      %v5195 = vpop.f32.mrf.mxu0
      %v5196 = vadd.f32 %v5137, %v5195
      %5197 = vmatmul.bf16.gmra.mxu0 %v4007
      %v5198 = vpop.f32.mrf.mxu0
      %v5199 = vadd.f32 %v5140, %v5198
      %v5200 = vpop.f32.mrf.mxu0
      %v5201 = vadd.f32 %v5142, %v5200
      %5202 = vmatmul.bf16.gmra.mxu0 %v4010
      %v5203 = vpop.f32.mrf.mxu0
      %v5204 = vadd.f32 %v5145, %v5203
      %v5205 = vpop.f32.mrf.mxu0
      %v5206 = vadd.f32 %v5147, %v5205
      %5207 = vmatmul.bf16.gmra.mxu0 %v4013
      %v5208 = vpop.f32.mrf.mxu0
      %v5209 = vadd.f32 %v5150, %v5208
      %v5210 = vpop.f32.mrf.mxu0
      %v5211 = vadd.f32 %v5152, %v5210
      %5212 = vdwg.mxu0
      %5213 = vmatpush.bf16.msra.mxu0 %v3726
      %5214 = vmatpush.bf16.msra.mxu0 %v3720
      %5215 = vmatpush.bf16.msra.mxu0 %v3714
      %5216 = vmatpush.bf16.msra.mxu0 %v3708
      %5217 = vmatpush.bf16.msra.mxu0 %v3702
      %5218 = vmatpush.bf16.msra.mxu0 %v3696
      %5219 = vmatpush.bf16.msra.mxu0 %v3690
      %5220 = vmatpush.bf16.msra.mxu0 %v3684
      %5221 = vmatmul.bf16.gmra.mxu0 %v3141
      %v5222 = vpop.f32.mrf.mxu0
      %v5223 = vadd.f32 0.0, %v5222
      %v5224 = vpop.f32.mrf.mxu0
      %v5225 = vadd.f32 0.0, %v5224
      %5226 = vmatmul.bf16.gmra.mxu0 %v3145
      %v5227 = vpop.f32.mrf.mxu0
      %v5228 = vadd.f32 0.0, %v5227
      %v5229 = vpop.f32.mrf.mxu0
      %v5230 = vadd.f32 0.0, %v5229
      %5231 = vmatmul.bf16.gmra.mxu0 %v3149
      %v5232 = vpop.f32.mrf.mxu0
      %v5233 = vadd.f32 0.0, %v5232
      %v5234 = vpop.f32.mrf.mxu0
      %v5235 = vadd.f32 0.0, %v5234
      %5236 = vmatmul.bf16.gmra.mxu0 %v3153
      %v5237 = vpop.f32.mrf.mxu0
      %v5238 = vadd.f32 0.0, %v5237
      %v5239 = vpop.f32.mrf.mxu0
      %v5240 = vadd.f32 0.0, %v5239
      %5241 = vmatmul.bf16.gmra.mxu0 %v3157
      %v5242 = vpop.f32.mrf.mxu0
      %v5243 = vadd.f32 0.0, %v5242
      %v5244 = vpop.f32.mrf.mxu0
      %v5245 = vadd.f32 0.0, %v5244
      %5246 = vmatmul.bf16.gmra.mxu0 %v3161
      %v5247 = vpop.f32.mrf.mxu0
      %v5248 = vadd.f32 0.0, %v5247
      %v5249 = vpop.f32.mrf.mxu0
      %v5250 = vadd.f32 0.0, %v5249
      %5251 = vmatmul.bf16.gmra.mxu0 %v3165
      %v5252 = vpop.f32.mrf.mxu0
      %v5253 = vadd.f32 0.0, %v5252
      %v5254 = vpop.f32.mrf.mxu0
      %v5255 = vadd.f32 0.0, %v5254
      %5256 = vmatmul.bf16.gmra.mxu0 %v3169
      %v5257 = vpop.f32.mrf.mxu0
      %v5258 = vadd.f32 0.0, %v5257
      %v5259 = vpop.f32.mrf.mxu0
      %v5260 = vadd.f32 0.0, %v5259
      %5261 = vmatmul.bf16.gmra.mxu0 %v3173
      %v5262 = vpop.f32.mrf.mxu0
      %v5263 = vadd.f32 0.0, %v5262
      %v5264 = vpop.f32.mrf.mxu0
      %v5265 = vadd.f32 0.0, %v5264
      %5266 = vmatmul.bf16.gmra.mxu0 %v3177
      %v5267 = vpop.f32.mrf.mxu0
      %v5268 = vadd.f32 0.0, %v5267
      %v5269 = vpop.f32.mrf.mxu0
      %v5270 = vadd.f32 0.0, %v5269
      %5271 = vdwg.mxu0
      %5272 = vmatpush.bf16.msra.mxu0 %v3774
      %5273 = vmatpush.bf16.msra.mxu0 %v3768
      %5274 = vmatpush.bf16.msra.mxu0 %v3762
      %5275 = vmatpush.bf16.msra.mxu0 %v3756
      %5276 = vmatpush.bf16.msra.mxu0 %v3750
      %5277 = vmatpush.bf16.msra.mxu0 %v3744
      %5278 = vmatpush.bf16.msra.mxu0 %v3738
      %5279 = vmatpush.bf16.msra.mxu0 %v3732
      %5280 = vmatmul.bf16.gmra.mxu0 %v3142
      %v5281 = vpop.f32.mrf.mxu0
      %v5282 = vadd.f32 %v5223, %v5281
      %v5283 = vpop.f32.mrf.mxu0
      %v5284 = vadd.f32 %v5225, %v5283
      %5285 = vmatmul.bf16.gmra.mxu0 %v3146
      %v5286 = vpop.f32.mrf.mxu0
      %v5287 = vadd.f32 %v5228, %v5286
      %v5288 = vpop.f32.mrf.mxu0
      %v5289 = vadd.f32 %v5230, %v5288
      %5290 = vmatmul.bf16.gmra.mxu0 %v3150
      %v5291 = vpop.f32.mrf.mxu0
      %v5292 = vadd.f32 %v5233, %v5291
      %v5293 = vpop.f32.mrf.mxu0
      %v5294 = vadd.f32 %v5235, %v5293
      %5295 = vmatmul.bf16.gmra.mxu0 %v3154
      %v5296 = vpop.f32.mrf.mxu0
      %v5297 = vadd.f32 %v5238, %v5296
      %v5298 = vpop.f32.mrf.mxu0
      %v5299 = vadd.f32 %v5240, %v5298
      %5300 = vmatmul.bf16.gmra.mxu0 %v3158
      %v5301 = vpop.f32.mrf.mxu0
      %v5302 = vadd.f32 %v5243, %v5301
      %v5303 = vpop.f32.mrf.mxu0
      %v5304 = vadd.f32 %v5245, %v5303
      %5305 = vmatmul.bf16.gmra.mxu0 %v3162
      %v5306 = vpop.f32.mrf.mxu0
      %v5307 = vadd.f32 %v5248, %v5306
      %v5308 = vpop.f32.mrf.mxu0
      %v5309 = vadd.f32 %v5250, %v5308
      %5310 = vmatmul.bf16.gmra.mxu0 %v3166
      %v5311 = vpop.f32.mrf.mxu0
      %v5312 = vadd.f32 %v5253, %v5311
      %v5313 = vpop.f32.mrf.mxu0
      %v5314 = vadd.f32 %v5255, %v5313
      %5315 = vmatmul.bf16.gmra.mxu0 %v3170
      %v5316 = vpop.f32.mrf.mxu0
      %v5317 = vadd.f32 %v5258, %v5316
      %v5318 = vpop.f32.mrf.mxu0
      %v5319 = vadd.f32 %v5260, %v5318
      %5320 = vmatmul.bf16.gmra.mxu0 %v3174
      %v5321 = vpop.f32.mrf.mxu0
      %v5322 = vadd.f32 %v5263, %v5321
      %v5323 = vpop.f32.mrf.mxu0
      %v5324 = vadd.f32 %v5265, %v5323
      %5325 = vmatmul.bf16.gmra.mxu0 %v3178
      %v5326 = vpop.f32.mrf.mxu0
      %v5327 = vadd.f32 %v5268, %v5326
      %v5328 = vpop.f32.mrf.mxu0
      %v5329 = vadd.f32 %v5270, %v5328
      %5330 = vdwg.mxu0
      %5331 = vmatpush.bf16.msra.mxu0 %v3822
      %5332 = vmatpush.bf16.msra.mxu0 %v3816
      %5333 = vmatpush.bf16.msra.mxu0 %v3810
      %5334 = vmatpush.bf16.msra.mxu0 %v3804
      %5335 = vmatpush.bf16.msra.mxu0 %v3798
      %5336 = vmatpush.bf16.msra.mxu0 %v3792
      %5337 = vmatpush.bf16.msra.mxu0 %v3786
      %5338 = vmatpush.bf16.msra.mxu0 %v3780
      %5339 = vmatmul.bf16.gmra.mxu0 %v3143
      %v5340 = vpop.f32.mrf.mxu0
      %v5341 = vadd.f32 %v5282, %v5340
      %v5342 = vpop.f32.mrf.mxu0
      %v5343 = vadd.f32 %v5284, %v5342
      %5344 = vmatmul.bf16.gmra.mxu0 %v3147
      %v5345 = vpop.f32.mrf.mxu0
      %v5346 = vadd.f32 %v5287, %v5345
      %v5347 = vpop.f32.mrf.mxu0
      %v5348 = vadd.f32 %v5289, %v5347
      %5349 = vmatmul.bf16.gmra.mxu0 %v3151
      %v5350 = vpop.f32.mrf.mxu0
      %v5351 = vadd.f32 %v5292, %v5350
      %v5352 = vpop.f32.mrf.mxu0
      %v5353 = vadd.f32 %v5294, %v5352
      %5354 = vmatmul.bf16.gmra.mxu0 %v3155
      %v5355 = vpop.f32.mrf.mxu0
      %v5356 = vadd.f32 %v5297, %v5355
      %v5357 = vpop.f32.mrf.mxu0
      %v5358 = vadd.f32 %v5299, %v5357
      %5359 = vmatmul.bf16.gmra.mxu0 %v3159
      %v5360 = vpop.f32.mrf.mxu0
      %v5361 = vadd.f32 %v5302, %v5360
      %v5362 = vpop.f32.mrf.mxu0
      %v5363 = vadd.f32 %v5304, %v5362
      %5364 = vmatmul.bf16.gmra.mxu0 %v3163
      %v5365 = vpop.f32.mrf.mxu0
      %v5366 = vadd.f32 %v5307, %v5365
      %v5367 = vpop.f32.mrf.mxu0
      %v5368 = vadd.f32 %v5309, %v5367
      %5369 = vmatmul.bf16.gmra.mxu0 %v3167
      %v5370 = vpop.f32.mrf.mxu0
      %v5371 = vadd.f32 %v5312, %v5370
      %v5372 = vpop.f32.mrf.mxu0
      %v5373 = vadd.f32 %v5314, %v5372
      %5374 = vmatmul.bf16.gmra.mxu0 %v3171
      %v5375 = vpop.f32.mrf.mxu0
      %v5376 = vadd.f32 %v5317, %v5375
      %v5377 = vpop.f32.mrf.mxu0
      %v5378 = vadd.f32 %v5319, %v5377
      %5379 = vmatmul.bf16.gmra.mxu0 %v3175
      %v5380 = vpop.f32.mrf.mxu0
      %v5381 = vadd.f32 %v5322, %v5380
      %v5382 = vpop.f32.mrf.mxu0
      %v5383 = vadd.f32 %v5324, %v5382
      %5384 = vmatmul.bf16.gmra.mxu0 %v3179
      %v5385 = vpop.f32.mrf.mxu0
      %v5386 = vadd.f32 %v5327, %v5385
      %v5387 = vpop.f32.mrf.mxu0
      %v5388 = vadd.f32 %v5329, %v5387
      %5389 = vdwg.mxu0
      %5390 = vmatpush.bf16.msra.mxu0 0
      %5391 = vmatpush.bf16.msra.mxu0 0
      %5392 = vmatpush.bf16.msra.mxu0 0
      %5393 = vmatpush.bf16.msra.mxu0 0
      %5394 = vmatpush.bf16.msra.mxu0 0
      %5395 = vmatpush.bf16.msra.mxu0 0
      %5396 = vmatpush.bf16.msra.mxu0 %v4031
      %5397 = vmatpush.bf16.msra.mxu0 %v3828
      %5398 = vmatmul.bf16.gmra.mxu0 %v3986
      %v5399 = vpop.f32.mrf.mxu0
      %v5400 = vadd.f32 %v5341, %v5399
      %v5401 = vpop.f32.mrf.mxu0
      %v5402 = vadd.f32 %v5343, %v5401
      %5403 = vmatmul.bf16.gmra.mxu0 %v3989
      %v5404 = vpop.f32.mrf.mxu0
      %v5405 = vadd.f32 %v5346, %v5404
      %v5406 = vpop.f32.mrf.mxu0
      %v5407 = vadd.f32 %v5348, %v5406
      %5408 = vmatmul.bf16.gmra.mxu0 %v3992
      %v5409 = vpop.f32.mrf.mxu0
      %v5410 = vadd.f32 %v5351, %v5409
      %v5411 = vpop.f32.mrf.mxu0
      %v5412 = vadd.f32 %v5353, %v5411
      %5413 = vmatmul.bf16.gmra.mxu0 %v3995
      %v5414 = vpop.f32.mrf.mxu0
      %v5415 = vadd.f32 %v5356, %v5414
      %v5416 = vpop.f32.mrf.mxu0
      %v5417 = vadd.f32 %v5358, %v5416
      %5418 = vmatmul.bf16.gmra.mxu0 %v3998
      %v5419 = vpop.f32.mrf.mxu0
      %v5420 = vadd.f32 %v5361, %v5419
      %v5421 = vpop.f32.mrf.mxu0
      %v5422 = vadd.f32 %v5363, %v5421
      %5423 = vmatmul.bf16.gmra.mxu0 %v4001
      %v5424 = vpop.f32.mrf.mxu0
      %v5425 = vadd.f32 %v5366, %v5424
      %v5426 = vpop.f32.mrf.mxu0
      %v5427 = vadd.f32 %v5368, %v5426
      %5428 = vmatmul.bf16.gmra.mxu0 %v4004
      %v5429 = vpop.f32.mrf.mxu0
      %v5430 = vadd.f32 %v5371, %v5429
      %v5431 = vpop.f32.mrf.mxu0
      %v5432 = vadd.f32 %v5373, %v5431
      %5433 = vmatmul.bf16.gmra.mxu0 %v4007
      %v5434 = vpop.f32.mrf.mxu0
      %v5435 = vadd.f32 %v5376, %v5434
      %v5436 = vpop.f32.mrf.mxu0
      %v5437 = vadd.f32 %v5378, %v5436
      %5438 = vmatmul.bf16.gmra.mxu0 %v4010
      %v5439 = vpop.f32.mrf.mxu0
      %v5440 = vadd.f32 %v5381, %v5439
      %v5441 = vpop.f32.mrf.mxu0
      %v5442 = vadd.f32 %v5383, %v5441
      %5443 = vmatmul.bf16.gmra.mxu0 %v4013
      %v5444 = vpop.f32.mrf.mxu0
      %v5445 = vadd.f32 %v5386, %v5444
      %v5446 = vpop.f32.mrf.mxu0
      %v5447 = vadd.f32 %v5388, %v5446
      %5448 = vdwg.mxu0
      %v5449 = vld [vmem:[%s192] sm:$0xff]
      %v5450 = vld [vmem:[%s192 + $0x8] sm:$0xff]
      %v5451 = vld [vmem:[%s192 + $0x10] sm:$0xff]
      %v5452 = vld [vmem:[%s192 + $0x18] sm:$0xff]
      %v5453 = vld [vmem:[%s192 + $0x20] sm:$0xff]
      %v5454 = vld [vmem:[%s192 + $0x28] sm:$0xff]
      %v5455 = vld [vmem:[%s192 + $0x30] sm:$0xff]
      %v5456 = vld [vmem:[%s192 + $0x38] sm:$0xff]
      %v5457 = vld [vmem:[%s192 + $0x40] sm:$0xff]
      %v5458 = vld [vmem:[%s192 + $0x48] sm:$0xff]
      %v5459 = vld [vmem:[%s192 + $0x50] sm:$0xff]
      %v5460 = vld [vmem:[%s192 + $0x58] sm:$0xff]
      %v5461 = vld [vmem:[%s192 + $0x60] sm:$0xff]
      %v5462 = vld [vmem:[%s192 + $0x68] sm:$0xff]
      %v5463 = vld [vmem:[%s192 + $0x70] sm:$0xff]
      %v5464 = vld [vmem:[%s192 + $0x78] sm:$0xff]
      %v5465 = vld [vmem:[%s192 + $0x80] sm:$0xff]
      %v5466 = vld [vmem:[%s192 + $0x88] sm:$0xff]
      %v5467 = vld [vmem:[%s192 + $0x90] sm:$0xff]
      %v5468 = vld [vmem:[%s192 + $0x98] sm:$0xff]
      %v5469 = vld [vmem:[%s192 + $0xa0] sm:$0xff]
      %v5470 = vld [vmem:[%s192 + $0xa8] sm:$0xff]
      %v5471 = vld [vmem:[%s192 + $0xb0] sm:$0xff]
      %v5472 = vld [vmem:[%s192 + $0xb8] sm:$0xff]
      %v5473 = vld [vmem:[%s192 + $0xc0] sm:$0xff]
      %v5474 = vld [vmem:[%s192 + $0xc8] sm:$0xff]
      %v5475 = vld [vmem:[%s192 + $0xd0] sm:$0xff]
      %v5476 = vld [vmem:[%s192 + $0xd8] sm:$0xff]
      %v5477 = vld [vmem:[%s192 + $0xe0] sm:$0xff]
      %v5478 = vld [vmem:[%s192 + $0xe8] sm:$0xff]
      %v5479 = vld [vmem:[%s192 + $0xf0] sm:$0xff]
      %v5480 = vld [vmem:[%s192 + $0xf8] sm:$0xff]
      %v5481 = vld [vmem:[%s192 + $0x100] sm:$0xff]
      %v5482 = vld [vmem:[%s192 + $0x108] sm:$0xff]
      %v5483 = vld [vmem:[%s192 + $0x110] sm:$0xff]
      %v5484 = vld [vmem:[%s192 + $0x118] sm:$0xff]
      %v5485 = vld [vmem:[%s192 + $0x120] sm:$0xff]
      %v5486 = vld [vmem:[%s192 + $0x128] sm:$0xff]
      %v5487 = vld [vmem:[%s192 + $0x130] sm:$0xff]
      %v5488 = vld [vmem:[%s192 + $0x138] sm:$0xff]
      %v5489 = vld [vmem:[%s3] sm:$0xff]
      %v5490 = vld [vmem:[%s3 + $0x8] sm:$0xff]
      %v5491 = vld [vmem:[%s3 + $0x10] sm:$0xff]
      %v5492 = vld [vmem:[%s3 + $0x18] sm:$0xff]
      %v5493 = vld [vmem:[%s3 + $0x20] sm:$0xff]
      %v5494 = vld [vmem:[%s3 + $0x28] sm:$0xff]
      %v5495 = vld [vmem:[%s3 + $0x30] sm:$0xff]
      %v5496 = vld [vmem:[%s3 + $0x38] sm:$0xff]
      %v5497 = vld [vmem:[%s3 + $0x40] sm:$0xff]
      %v5498 = vld [vmem:[%s3 + $0x48] sm:$0xff]
      %v5499 = vld [vmem:[%s3 + $0x50] sm:$0xff]
      %v5500 = vld [vmem:[%s3 + $0x58] sm:$0xff]
      %v5501 = vld [vmem:[%s3 + $0x60] sm:$0xff]
      %v5502 = vld [vmem:[%s3 + $0x68] sm:$0xff]
      %v5503 = vld [vmem:[%s3 + $0x70] sm:$0xff]
      %v5504 = vld [vmem:[%s3 + $0x78] sm:$0xff]
      %v5505 = vld [vmem:[%s3 + $0x80] sm:$0xff]
      %v5506 = vld [vmem:[%s3 + $0x88] sm:$0xff]
      %v5507 = vld [vmem:[%s3 + $0x90] sm:$0xff]
      %v5508 = vld [vmem:[%s3 + $0x98] sm:$0xff]
      %v5509 = vld [vmem:[%s3 + $0xa0] sm:$0xff]
      %v5510 = vld [vmem:[%s3 + $0xa8] sm:$0xff]
      %v5511 = vld [vmem:[%s3 + $0xb0] sm:$0xff]
      %v5512 = vld [vmem:[%s3 + $0xb8] sm:$0xff]
      %v5513 = vld [vmem:[%s3 + $0xc0] sm:$0xff]
      %v5514 = vld [vmem:[%s3 + $0xc8] sm:$0xff]
      %v5515 = vld [vmem:[%s3 + $0xd0] sm:$0xff]
      %v5516 = vld [vmem:[%s3 + $0xd8] sm:$0xff]
      %v5517 = vld [vmem:[%s3 + $0xe0] sm:$0xff]
      %v5518 = vld [vmem:[%s3 + $0xe8] sm:$0xff]
      %v5519 = vld [vmem:[%s3 + $0xf0] sm:$0xff]
      %v5520 = vld [vmem:[%s3 + $0xf8] sm:$0xff]
      %v5521 = vld [vmem:[%s3 + $0x100] sm:$0xff]
      %v5522 = vld [vmem:[%s3 + $0x108] sm:$0xff]
      %v5523 = vld [vmem:[%s3 + $0x110] sm:$0xff]
      %v5524 = vld [vmem:[%s3 + $0x118] sm:$0xff]
      %v5525 = vld [vmem:[%s3 + $0x120] sm:$0xff]
      %v5526 = vld [vmem:[%s3 + $0x128] sm:$0xff]
      %v5527 = vld [vmem:[%s3 + $0x130] sm:$0xff]
      %v5528 = vld [vmem:[%s3 + $0x138] sm:$0xff]
      %v5529 = vld [vmem:[%s3 + $0x140] sm:$0xff]
      %v5530 = vld [vmem:[%s3 + $0x148] sm:$0xff]
      %v5531 = vld [vmem:[%s3 + $0x150] sm:$0xff]
      %v5532 = vld [vmem:[%s3 + $0x158] sm:$0xff]
      %v5533 = vld [vmem:[%s3 + $0x160] sm:$0xff]
      %v5534 = vld [vmem:[%s3 + $0x168] sm:$0xff]
      %v5535 = vld [vmem:[%s3 + $0x170] sm:$0xff]
      %v5536 = vld [vmem:[%s3 + $0x178] sm:$0xff]
      %v5537 = vld [vmem:[%s3 + $0x180] sm:$0xff]
      %v5538 = vld [vmem:[%s3 + $0x188] sm:$0xff]
      %v5539 = vld [vmem:[%s3 + $0x190] sm:$0xff]
      %v5540 = vld [vmem:[%s3 + $0x198] sm:$0x77]
      %v5581 = vunpack.c.l.b16 %v5449
      %v5582 = vunpack.c.h.b16 %v5449
      %v5583 = vunpack.c.l.b16 %v5450
      %v5584 = vunpack.c.h.b16 %v5450
      %v5585 = vunpack.c.l.b16 %v5451
      %v5586 = vunpack.c.h.b16 %v5451
      %v5587 = vunpack.c.l.b16 %v5452
      %v5588 = vunpack.c.h.b16 %v5452
      %v5589 = vunpack.c.l.b16 %v5453
      %v5590 = vunpack.c.h.b16 %v5453
      %v5591 = vunpack.c.l.b16 %v5454
      %v5592 = vunpack.c.h.b16 %v5454
      %v5593 = vunpack.c.l.b16 %v5455
      %v5594 = vunpack.c.h.b16 %v5455
      %v5595 = vunpack.c.l.b16 %v5456
      %v5596 = vunpack.c.h.b16 %v5456
      %v5597 = vunpack.c.l.b16 %v5457
      %v5598 = vunpack.c.h.b16 %v5457
      %v5599 = vunpack.c.l.b16 %v5458
      %v5600 = vunpack.c.h.b16 %v5458
      %v5601 = vunpack.c.l.b16 %v5459
      %v5602 = vunpack.c.h.b16 %v5459
      %v5603 = vunpack.c.l.b16 %v5460
      %v5604 = vunpack.c.h.b16 %v5460
      %v5605 = vunpack.c.l.b16 %v5461
      %v5606 = vunpack.c.h.b16 %v5461
      %v5607 = vunpack.c.l.b16 %v5462
      %v5608 = vunpack.c.h.b16 %v5462
      %v5609 = vunpack.c.l.b16 %v5463
      %v5610 = vunpack.c.h.b16 %v5463
      %v5611 = vunpack.c.l.b16 %v5464
      %v5612 = vunpack.c.h.b16 %v5464
      %v5613 = vunpack.c.l.b16 %v5465
      %v5614 = vunpack.c.h.b16 %v5465
      %v5615 = vunpack.c.l.b16 %v5466
      %v5616 = vunpack.c.h.b16 %v5466
      %v5617 = vunpack.c.l.b16 %v5467
      %v5618 = vunpack.c.h.b16 %v5467
      %v5619 = vunpack.c.l.b16 %v5468
      %v5620 = vunpack.c.h.b16 %v5468
      %v5621 = vunpack.c.l.b16 %v5469
      %v5622 = vunpack.c.h.b16 %v5469
      %v5623 = vunpack.c.l.b16 %v5470
      %v5624 = vunpack.c.h.b16 %v5470
      %v5625 = vunpack.c.l.b16 %v5471
      %v5626 = vunpack.c.h.b16 %v5471
      %v5627 = vunpack.c.l.b16 %v5472
      %v5628 = vunpack.c.h.b16 %v5472
      %v5629 = vunpack.c.l.b16 %v5473
      %v5630 = vunpack.c.h.b16 %v5473
      %v5631 = vunpack.c.l.b16 %v5474
      %v5632 = vunpack.c.h.b16 %v5474
      %v5633 = vunpack.c.l.b16 %v5475
      %v5634 = vunpack.c.h.b16 %v5475
      %v5635 = vunpack.c.l.b16 %v5476
      %v5636 = vunpack.c.h.b16 %v5476
      %v5637 = vunpack.c.l.b16 %v5477
      %v5638 = vunpack.c.h.b16 %v5477
      %v5639 = vunpack.c.l.b16 %v5478
      %v5640 = vunpack.c.h.b16 %v5478
      %v5641 = vunpack.c.l.b16 %v5479
      %v5642 = vunpack.c.h.b16 %v5479
      %v5643 = vunpack.c.l.b16 %v5480
      %v5644 = vunpack.c.h.b16 %v5480
      %v5645 = vunpack.c.l.b16 %v5481
      %v5646 = vunpack.c.h.b16 %v5481
      %v5647 = vunpack.c.l.b16 %v5482
      %v5648 = vunpack.c.h.b16 %v5482
      %v5649 = vunpack.c.l.b16 %v5483
      %v5650 = vunpack.c.h.b16 %v5483
      %v5651 = vunpack.c.l.b16 %v5484
      %v5652 = vunpack.c.h.b16 %v5484
      %v5653 = vunpack.c.l.b16 %v5485
      %v5654 = vunpack.c.h.b16 %v5485
      %v5655 = vunpack.c.l.b16 %v5486
      %v5656 = vunpack.c.h.b16 %v5486
      %v5657 = vunpack.c.l.b16 %v5487
      %v5658 = vunpack.c.h.b16 %v5487
      %v5659 = vunpack.c.l.b16 %v5488
      %v5660 = vunpack.c.h.b16 %v5488
      %v5661 = vpack.c.b16 %v5585, %v5581
      %v5662 = vpack.c.b16 %v5586, %v5582
      %v5663 = vpack.c.b16 %v5587, %v5583
      %v5664 = vpack.c.b16 %v5588, %v5584
      %v5665 = vpack.c.b16 %v5593, %v5589
      %v5666 = vpack.c.b16 %v5594, %v5590
      %v5667 = vpack.c.b16 %v5595, %v5591
      %v5668 = vpack.c.b16 %v5596, %v5592
      %v5669 = vpack.c.b16 %v5601, %v5597
      %v5670 = vpack.c.b16 %v5602, %v5598
      %v5671 = vpack.c.b16 %v5603, %v5599
      %v5672 = vpack.c.b16 %v5604, %v5600
      %v5673 = vpack.c.b16 %v5609, %v5605
      %v5674 = vpack.c.b16 %v5610, %v5606
      %v5675 = vpack.c.b16 %v5611, %v5607
      %v5676 = vpack.c.b16 %v5612, %v5608
      %v5677 = vpack.c.b16 %v5617, %v5613
      %v5678 = vpack.c.b16 %v5618, %v5614
      %v5679 = vpack.c.b16 %v5619, %v5615
      %v5680 = vpack.c.b16 %v5620, %v5616
      %v5681 = vpack.c.b16 %v5625, %v5621
      %v5682 = vpack.c.b16 %v5626, %v5622
      %v5683 = vpack.c.b16 %v5627, %v5623
      %v5684 = vpack.c.b16 %v5628, %v5624
      %v5685 = vpack.c.b16 %v5633, %v5629
      %v5686 = vpack.c.b16 %v5634, %v5630
      %v5687 = vpack.c.b16 %v5635, %v5631
      %v5688 = vpack.c.b16 %v5636, %v5632
      %v5689 = vpack.c.b16 %v5641, %v5637
      %v5690 = vpack.c.b16 %v5642, %v5638
      %v5691 = vpack.c.b16 %v5643, %v5639
      %v5692 = vpack.c.b16 %v5644, %v5640
      %v5693 = vpack.c.b16 %v5649, %v5645
      %v5694 = vpack.c.b16 %v5650, %v5646
      %v5695 = vpack.c.b16 %v5651, %v5647
      %v5696 = vpack.c.b16 %v5652, %v5648
      %v5697 = vpack.c.b16 %v5657, %v5653
      %v5698 = vpack.c.b16 %v5658, %v5654
      %v5699 = vpack.c.b16 %v5659, %v5655
      %v5700 = vpack.c.b16 %v5660, %v5656
      %v5783 = vunpack.c.l.b16 %v5489
      %v5784 = vunpack.c.h.b16 %v5489
      %v5785 = vunpack.c.l.b16 %v5490
      %v5786 = vunpack.c.h.b16 %v5490
      %v5787 = vunpack.c.l.b16 %v5491
      %v5788 = vunpack.c.h.b16 %v5491
      %v5789 = vunpack.c.l.b16 %v5492
      %v5790 = vunpack.c.h.b16 %v5492
      %v5791 = vunpack.c.l.b16 %v5493
      %v5792 = vunpack.c.h.b16 %v5493
      %v5793 = vunpack.c.l.b16 %v5494
      %v5794 = vunpack.c.h.b16 %v5494
      %v5795 = vunpack.c.l.b16 %v5495
      %v5796 = vunpack.c.h.b16 %v5495
      %v5797 = vunpack.c.l.b16 %v5496
      %v5798 = vunpack.c.h.b16 %v5496
      %v5799 = vunpack.c.l.b16 %v5497
      %v5800 = vunpack.c.h.b16 %v5497
      %v5801 = vunpack.c.l.b16 %v5498
      %v5802 = vunpack.c.h.b16 %v5498
      %v5803 = vunpack.c.l.b16 %v5499
      %v5804 = vunpack.c.h.b16 %v5499
      %v5805 = vunpack.c.l.b16 %v5500
      %v5806 = vunpack.c.h.b16 %v5500
      %v5807 = vunpack.c.l.b16 %v5501
      %v5808 = vunpack.c.h.b16 %v5501
      %v5809 = vunpack.c.l.b16 %v5502
      %v5810 = vunpack.c.h.b16 %v5502
      %v5811 = vunpack.c.l.b16 %v5503
      %v5812 = vunpack.c.h.b16 %v5503
      %v5813 = vunpack.c.l.b16 %v5504
      %v5814 = vunpack.c.h.b16 %v5504
      %v5815 = vunpack.c.l.b16 %v5505
      %v5816 = vunpack.c.h.b16 %v5505
      %v5817 = vunpack.c.l.b16 %v5506
      %v5818 = vunpack.c.h.b16 %v5506
      %v5819 = vunpack.c.l.b16 %v5507
      %v5820 = vunpack.c.h.b16 %v5507
      %v5821 = vunpack.c.l.b16 %v5508
      %v5822 = vunpack.c.h.b16 %v5508
      %v5823 = vunpack.c.l.b16 %v5509
      %v5824 = vunpack.c.h.b16 %v5509
      %v5825 = vunpack.c.l.b16 %v5510
      %v5826 = vunpack.c.h.b16 %v5510
      %v5827 = vunpack.c.l.b16 %v5511
      %v5828 = vunpack.c.h.b16 %v5511
      %v5829 = vunpack.c.l.b16 %v5512
      %v5830 = vunpack.c.h.b16 %v5512
      %v5831 = vunpack.c.l.b16 %v5513
      %v5832 = vunpack.c.h.b16 %v5513
      %v5833 = vunpack.c.l.b16 %v5514
      %v5834 = vunpack.c.h.b16 %v5514
      %v5835 = vunpack.c.l.b16 %v5515
      %v5836 = vunpack.c.h.b16 %v5515
      %v5837 = vunpack.c.l.b16 %v5516
      %v5838 = vunpack.c.h.b16 %v5516
      %v5839 = vunpack.c.l.b16 %v5517
      %v5840 = vunpack.c.h.b16 %v5517
      %v5841 = vunpack.c.l.b16 %v5518
      %v5842 = vunpack.c.h.b16 %v5518
      %v5843 = vunpack.c.l.b16 %v5519
      %v5844 = vunpack.c.h.b16 %v5519
      %v5845 = vunpack.c.l.b16 %v5520
      %v5846 = vunpack.c.h.b16 %v5520
      %v5847 = vunpack.c.l.b16 %v5521
      %v5848 = vunpack.c.h.b16 %v5521
      %v5849 = vunpack.c.l.b16 %v5522
      %v5850 = vunpack.c.h.b16 %v5522
      %v5851 = vunpack.c.l.b16 %v5523
      %v5852 = vunpack.c.h.b16 %v5523
      %v5853 = vunpack.c.l.b16 %v5524
      %v5854 = vunpack.c.h.b16 %v5524
      %v5855 = vunpack.c.l.b16 %v5525
      %v5856 = vunpack.c.h.b16 %v5525
      %v5857 = vunpack.c.l.b16 %v5526
      %v5858 = vunpack.c.h.b16 %v5526
      %v5859 = vunpack.c.l.b16 %v5527
      %v5860 = vunpack.c.h.b16 %v5527
      %v5861 = vunpack.c.l.b16 %v5528
      %v5862 = vunpack.c.h.b16 %v5528
      %v5863 = vunpack.c.l.b16 %v5529
      %v5864 = vunpack.c.h.b16 %v5529
      %v5865 = vunpack.c.l.b16 %v5530
      %v5866 = vunpack.c.h.b16 %v5530
      %v5867 = vunpack.c.l.b16 %v5531
      %v5868 = vunpack.c.h.b16 %v5531
      %v5869 = vunpack.c.l.b16 %v5532
      %v5870 = vunpack.c.h.b16 %v5532
      %v5871 = vunpack.c.l.b16 %v5533
      %v5872 = vunpack.c.h.b16 %v5533
      %v5873 = vunpack.c.l.b16 %v5534
      %v5874 = vunpack.c.h.b16 %v5534
      %v5875 = vunpack.c.l.b16 %v5535
      %v5876 = vunpack.c.h.b16 %v5535
      %v5877 = vunpack.c.l.b16 %v5536
      %v5878 = vunpack.c.h.b16 %v5536
      %v5879 = vunpack.c.l.b16 %v5537
      %v5880 = vunpack.c.h.b16 %v5537
      %v5881 = vunpack.c.l.b16 %v5538
      %v5882 = vunpack.c.h.b16 %v5538
      %v5883 = vunpack.c.l.b16 %v5539
      %v5884 = vunpack.c.h.b16 %v5539
      %v5885 = vunpack.c.l.b16 %v5540
      %v5886 = vunpack.c.h.b16 %v5540
      %v5887 = vpack.c.b16 %v5785, %v5783
      %v5888 = vpack.c.b16 %v5786, %v5784
      %v5889 = vpack.c.b16 %v5789, %v5787
      %v5890 = vpack.c.b16 %v5790, %v5788
      %v5891 = vpack.c.b16 %v5793, %v5791
      %v5892 = vpack.c.b16 %v5794, %v5792
      %v5893 = vpack.c.b16 %v5797, %v5795
      %v5894 = vpack.c.b16 %v5798, %v5796
      %v5895 = vpack.c.b16 %v5801, %v5799
      %v5896 = vpack.c.b16 %v5802, %v5800
      %v5897 = vpack.c.b16 %v5805, %v5803
      %v5898 = vpack.c.b16 %v5806, %v5804
      %v5899 = vpack.c.b16 %v5809, %v5807
      %v5900 = vpack.c.b16 %v5810, %v5808
      %v5901 = vpack.c.b16 %v5813, %v5811
      %v5902 = vpack.c.b16 %v5814, %v5812
      %v5903 = vpack.c.b16 %v5817, %v5815
      %v5904 = vpack.c.b16 %v5818, %v5816
      %v5905 = vpack.c.b16 %v5821, %v5819
      %v5906 = vpack.c.b16 %v5822, %v5820
      %v5907 = vpack.c.b16 %v5825, %v5823
      %v5908 = vpack.c.b16 %v5826, %v5824
      %v5909 = vpack.c.b16 %v5829, %v5827
      %v5910 = vpack.c.b16 %v5830, %v5828
      %v5911 = vpack.c.b16 %v5833, %v5831
      %v5912 = vpack.c.b16 %v5834, %v5832
      %v5913 = vpack.c.b16 %v5837, %v5835
      %v5914 = vpack.c.b16 %v5838, %v5836
      %v5915 = vpack.c.b16 %v5841, %v5839
      %v5916 = vpack.c.b16 %v5842, %v5840
      %v5917 = vpack.c.b16 %v5845, %v5843
      %v5918 = vpack.c.b16 %v5846, %v5844
      %v5919 = vpack.c.b16 %v5849, %v5847
      %v5920 = vpack.c.b16 %v5850, %v5848
      %v5921 = vpack.c.b16 %v5853, %v5851
      %v5922 = vpack.c.b16 %v5854, %v5852
      %v5923 = vpack.c.b16 %v5857, %v5855
      %v5924 = vpack.c.b16 %v5858, %v5856
      %v5925 = vpack.c.b16 %v5861, %v5859
      %v5926 = vpack.c.b16 %v5862, %v5860
      %v5927 = vpack.c.b16 %v5865, %v5863
      %v5928 = vpack.c.b16 %v5866, %v5864
      %v5929 = vpack.c.b16 %v5869, %v5867
      %v5930 = vpack.c.b16 %v5870, %v5868
      %v5931 = vpack.c.b16 %v5873, %v5871
      %v5932 = vpack.c.b16 %v5874, %v5872
      %v5933 = vpack.c.b16 %v5877, %v5875
      %v5934 = vpack.c.b16 %v5878, %v5876
      %v5935 = vpack.c.b16 %v5881, %v5879
      %v5936 = vpack.c.b16 %v5882, %v5880
      %v5937 = vpack.c.b16 %v5885, %v5883
      %v5938 = vpack.c.b16 %v5886, %v5884
      %v5990 = vsel %vm1359, %v5664, 0
      %v5993 = vsel %vm1359, %v5668, 0
      %v5996 = vsel %vm1359, %v5672, 0
      %v5999 = vsel %vm1359, %v5676, 0
      %v6002 = vsel %vm1359, %v5680, 0
      %v6005 = vsel %vm1359, %v5684, 0
      %v6008 = vsel %vm1359, %v5688, 0
      %v6011 = vsel %vm1359, %v5692, 0
      %v6014 = vsel %vm1359, %v5696, 0
      %v6017 = vsel %vm1359, %v5700, 0
      %v6020 = vsel %vm1390, %v5937, 0
      %v6023 = vsel %vm1390, %v5938, 0
      %6025 = vmatpush.bf16.msra.mxu0 %v5901
      %6026 = vmatpush.bf16.msra.mxu0 %v5899
      %6027 = vmatpush.bf16.msra.mxu0 %v5897
      %6028 = vmatpush.bf16.msra.mxu0 %v5895
      %6029 = vmatpush.bf16.msra.mxu0 %v5893
      %6030 = vmatpush.bf16.msra.mxu0 %v5891
      %6031 = vmatpush.bf16.msra.mxu0 %v5889
      %6032 = vmatpush.bf16.msra.mxu0 %v5887
      %6033 = vmatmul.bf16.gmra.mxu0 %v5661
      %v6034 = vpop.f32.mrf.mxu0
      %v6035 = vadd.f32 0.0, %v6034
      %v6036 = vpop.f32.mrf.mxu0
      %v6037 = vadd.f32 0.0, %v6036
      %6038 = vmatmul.bf16.gmra.mxu0 %v5665
      %v6039 = vpop.f32.mrf.mxu0
      %v6040 = vadd.f32 0.0, %v6039
      %v6041 = vpop.f32.mrf.mxu0
      %v6042 = vadd.f32 0.0, %v6041
      %6043 = vmatmul.bf16.gmra.mxu0 %v5669
      %v6044 = vpop.f32.mrf.mxu0
      %v6045 = vadd.f32 0.0, %v6044
      %v6046 = vpop.f32.mrf.mxu0
      %v6047 = vadd.f32 0.0, %v6046
      %6048 = vmatmul.bf16.gmra.mxu0 %v5673
      %v6049 = vpop.f32.mrf.mxu0
      %v6050 = vadd.f32 0.0, %v6049
      %v6051 = vpop.f32.mrf.mxu0
      %v6052 = vadd.f32 0.0, %v6051
      %6053 = vmatmul.bf16.gmra.mxu0 %v5677
      %v6054 = vpop.f32.mrf.mxu0
      %v6055 = vadd.f32 0.0, %v6054
      %v6056 = vpop.f32.mrf.mxu0
      %v6057 = vadd.f32 0.0, %v6056
      %6058 = vmatmul.bf16.gmra.mxu0 %v5681
      %v6059 = vpop.f32.mrf.mxu0
      %v6060 = vadd.f32 0.0, %v6059
      %v6061 = vpop.f32.mrf.mxu0
      %v6062 = vadd.f32 0.0, %v6061
      %6063 = vmatmul.bf16.gmra.mxu0 %v5685
      %v6064 = vpop.f32.mrf.mxu0
      %v6065 = vadd.f32 0.0, %v6064
      %v6066 = vpop.f32.mrf.mxu0
      %v6067 = vadd.f32 0.0, %v6066
      %6068 = vmatmul.bf16.gmra.mxu0 %v5689
      %v6069 = vpop.f32.mrf.mxu0
      %v6070 = vadd.f32 0.0, %v6069
      %v6071 = vpop.f32.mrf.mxu0
      %v6072 = vadd.f32 0.0, %v6071
      %6073 = vmatmul.bf16.gmra.mxu0 %v5693
      %v6074 = vpop.f32.mrf.mxu0
      %v6075 = vadd.f32 0.0, %v6074
      %v6076 = vpop.f32.mrf.mxu0
      %v6077 = vadd.f32 0.0, %v6076
      %6078 = vmatmul.bf16.gmra.mxu0 %v5697
      %v6079 = vpop.f32.mrf.mxu0
      %v6080 = vadd.f32 0.0, %v6079
      %v6081 = vpop.f32.mrf.mxu0
      %v6082 = vadd.f32 0.0, %v6081
      %6083 = vdwg.mxu0
      %6084 = vmatpush.bf16.msra.mxu0 %v5917
      %6085 = vmatpush.bf16.msra.mxu0 %v5915
      %6086 = vmatpush.bf16.msra.mxu0 %v5913
      %6087 = vmatpush.bf16.msra.mxu0 %v5911
      %6088 = vmatpush.bf16.msra.mxu0 %v5909
      %6089 = vmatpush.bf16.msra.mxu0 %v5907
      %6090 = vmatpush.bf16.msra.mxu0 %v5905
      %6091 = vmatpush.bf16.msra.mxu0 %v5903
      %6092 = vmatmul.bf16.gmra.mxu0 %v5662
      %v6093 = vpop.f32.mrf.mxu0
      %v6094 = vadd.f32 %v6035, %v6093
      %v6095 = vpop.f32.mrf.mxu0
      %v6096 = vadd.f32 %v6037, %v6095
      %6097 = vmatmul.bf16.gmra.mxu0 %v5666
      %v6098 = vpop.f32.mrf.mxu0
      %v6099 = vadd.f32 %v6040, %v6098
      %v6100 = vpop.f32.mrf.mxu0
      %v6101 = vadd.f32 %v6042, %v6100
      %6102 = vmatmul.bf16.gmra.mxu0 %v5670
      %v6103 = vpop.f32.mrf.mxu0
      %v6104 = vadd.f32 %v6045, %v6103
      %v6105 = vpop.f32.mrf.mxu0
      %v6106 = vadd.f32 %v6047, %v6105
      %6107 = vmatmul.bf16.gmra.mxu0 %v5674
      %v6108 = vpop.f32.mrf.mxu0
      %v6109 = vadd.f32 %v6050, %v6108
      %v6110 = vpop.f32.mrf.mxu0
      %v6111 = vadd.f32 %v6052, %v6110
      %6112 = vmatmul.bf16.gmra.mxu0 %v5678
      %v6113 = vpop.f32.mrf.mxu0
      %v6114 = vadd.f32 %v6055, %v6113
      %v6115 = vpop.f32.mrf.mxu0
      %v6116 = vadd.f32 %v6057, %v6115
      %6117 = vmatmul.bf16.gmra.mxu0 %v5682
      %v6118 = vpop.f32.mrf.mxu0
      %v6119 = vadd.f32 %v6060, %v6118
      %v6120 = vpop.f32.mrf.mxu0
      %v6121 = vadd.f32 %v6062, %v6120
      %6122 = vmatmul.bf16.gmra.mxu0 %v5686
      %v6123 = vpop.f32.mrf.mxu0
      %v6124 = vadd.f32 %v6065, %v6123
      %v6125 = vpop.f32.mrf.mxu0
      %v6126 = vadd.f32 %v6067, %v6125
      %6127 = vmatmul.bf16.gmra.mxu0 %v5690
      %v6128 = vpop.f32.mrf.mxu0
      %v6129 = vadd.f32 %v6070, %v6128
      %v6130 = vpop.f32.mrf.mxu0
      %v6131 = vadd.f32 %v6072, %v6130
      %6132 = vmatmul.bf16.gmra.mxu0 %v5694
      %v6133 = vpop.f32.mrf.mxu0
      %v6134 = vadd.f32 %v6075, %v6133
      %v6135 = vpop.f32.mrf.mxu0
      %v6136 = vadd.f32 %v6077, %v6135
      %6137 = vmatmul.bf16.gmra.mxu0 %v5698
      %v6138 = vpop.f32.mrf.mxu0
      %v6139 = vadd.f32 %v6080, %v6138
      %v6140 = vpop.f32.mrf.mxu0
      %v6141 = vadd.f32 %v6082, %v6140
      %6142 = vdwg.mxu0
      %6143 = vmatpush.bf16.msra.mxu0 %v5933
      %6144 = vmatpush.bf16.msra.mxu0 %v5931
      %6145 = vmatpush.bf16.msra.mxu0 %v5929
      %6146 = vmatpush.bf16.msra.mxu0 %v5927
      %6147 = vmatpush.bf16.msra.mxu0 %v5925
      %6148 = vmatpush.bf16.msra.mxu0 %v5923
      %6149 = vmatpush.bf16.msra.mxu0 %v5921
      %6150 = vmatpush.bf16.msra.mxu0 %v5919
      %6151 = vmatmul.bf16.gmra.mxu0 %v5663
      %v6152 = vpop.f32.mrf.mxu0
      %v6153 = vadd.f32 %v6094, %v6152
      %v6154 = vpop.f32.mrf.mxu0
      %v6155 = vadd.f32 %v6096, %v6154
      %6156 = vmatmul.bf16.gmra.mxu0 %v5667
      %v6157 = vpop.f32.mrf.mxu0
      %v6158 = vadd.f32 %v6099, %v6157
      %v6159 = vpop.f32.mrf.mxu0
      %v6160 = vadd.f32 %v6101, %v6159
      %6161 = vmatmul.bf16.gmra.mxu0 %v5671
      %v6162 = vpop.f32.mrf.mxu0
      %v6163 = vadd.f32 %v6104, %v6162
      %v6164 = vpop.f32.mrf.mxu0
      %v6165 = vadd.f32 %v6106, %v6164
      %6166 = vmatmul.bf16.gmra.mxu0 %v5675
      %v6167 = vpop.f32.mrf.mxu0
      %v6168 = vadd.f32 %v6109, %v6167
      %v6169 = vpop.f32.mrf.mxu0
      %v6170 = vadd.f32 %v6111, %v6169
      %6171 = vmatmul.bf16.gmra.mxu0 %v5679
      %v6172 = vpop.f32.mrf.mxu0
      %v6173 = vadd.f32 %v6114, %v6172
      %v6174 = vpop.f32.mrf.mxu0
      %v6175 = vadd.f32 %v6116, %v6174
      %6176 = vmatmul.bf16.gmra.mxu0 %v5683
      %v6177 = vpop.f32.mrf.mxu0
      %v6178 = vadd.f32 %v6119, %v6177
      %v6179 = vpop.f32.mrf.mxu0
      %v6180 = vadd.f32 %v6121, %v6179
      %6181 = vmatmul.bf16.gmra.mxu0 %v5687
      %v6182 = vpop.f32.mrf.mxu0
      %v6183 = vadd.f32 %v6124, %v6182
      %v6184 = vpop.f32.mrf.mxu0
      %v6185 = vadd.f32 %v6126, %v6184
      %6186 = vmatmul.bf16.gmra.mxu0 %v5691
      %v6187 = vpop.f32.mrf.mxu0
      %v6188 = vadd.f32 %v6129, %v6187
      %v6189 = vpop.f32.mrf.mxu0
      %v6190 = vadd.f32 %v6131, %v6189
      %6191 = vmatmul.bf16.gmra.mxu0 %v5695
      %v6192 = vpop.f32.mrf.mxu0
      %v6193 = vadd.f32 %v6134, %v6192
      %v6194 = vpop.f32.mrf.mxu0
      %v6195 = vadd.f32 %v6136, %v6194
      %6196 = vmatmul.bf16.gmra.mxu0 %v5699
      %v6197 = vpop.f32.mrf.mxu0
      %v6198 = vadd.f32 %v6139, %v6197
      %v6199 = vpop.f32.mrf.mxu0
      %v6200 = vadd.f32 %v6141, %v6199
      %6201 = vdwg.mxu0
      %6202 = vmatpush.bf16.msra.mxu0 0
      %6203 = vmatpush.bf16.msra.mxu0 0
      %6204 = vmatpush.bf16.msra.mxu0 0
      %6205 = vmatpush.bf16.msra.mxu0 0
      %6206 = vmatpush.bf16.msra.mxu0 0
      %6207 = vmatpush.bf16.msra.mxu0 0
      %6208 = vmatpush.bf16.msra.mxu0 %v6020
      %6209 = vmatpush.bf16.msra.mxu0 %v5935
      %6210 = vmatmul.bf16.gmra.mxu0 %v5990
      %v6211 = vpop.f32.mrf.mxu0
      %v6212 = vadd.f32 %v6153, %v6211
      %v6213 = vpop.f32.mrf.mxu0
      %v6214 = vadd.f32 %v6155, %v6213
      %6215 = vmatmul.bf16.gmra.mxu0 %v5993
      %v6216 = vpop.f32.mrf.mxu0
      %v6217 = vadd.f32 %v6158, %v6216
      %v6218 = vpop.f32.mrf.mxu0
      %v6219 = vadd.f32 %v6160, %v6218
      %6220 = vmatmul.bf16.gmra.mxu0 %v5996
      %v6221 = vpop.f32.mrf.mxu0
      %v6222 = vadd.f32 %v6163, %v6221
      %v6223 = vpop.f32.mrf.mxu0
      %v6224 = vadd.f32 %v6165, %v6223
      %6225 = vmatmul.bf16.gmra.mxu0 %v5999
      %v6226 = vpop.f32.mrf.mxu0
      %v6227 = vadd.f32 %v6168, %v6226
      %v6228 = vpop.f32.mrf.mxu0
      %v6229 = vadd.f32 %v6170, %v6228
      %6230 = vmatmul.bf16.gmra.mxu0 %v6002
      %v6231 = vpop.f32.mrf.mxu0
      %v6232 = vadd.f32 %v6173, %v6231
      %v6233 = vpop.f32.mrf.mxu0
      %v6234 = vadd.f32 %v6175, %v6233
      %6235 = vmatmul.bf16.gmra.mxu0 %v6005
      %v6236 = vpop.f32.mrf.mxu0
      %v6237 = vadd.f32 %v6178, %v6236
      %v6238 = vpop.f32.mrf.mxu0
      %v6239 = vadd.f32 %v6180, %v6238
      %6240 = vmatmul.bf16.gmra.mxu0 %v6008
      %v6241 = vpop.f32.mrf.mxu0
      %v6242 = vadd.f32 %v6183, %v6241
      %v6243 = vpop.f32.mrf.mxu0
      %v6244 = vadd.f32 %v6185, %v6243
      %6245 = vmatmul.bf16.gmra.mxu0 %v6011
      %v6246 = vpop.f32.mrf.mxu0
      %v6247 = vadd.f32 %v6188, %v6246
      %v6248 = vpop.f32.mrf.mxu0
      %v6249 = vadd.f32 %v6190, %v6248
      %6250 = vmatmul.bf16.gmra.mxu0 %v6014
      %v6251 = vpop.f32.mrf.mxu0
      %v6252 = vadd.f32 %v6193, %v6251
      %v6253 = vpop.f32.mrf.mxu0
      %v6254 = vadd.f32 %v6195, %v6253
      %6255 = vmatmul.bf16.gmra.mxu0 %v6017
      %v6256 = vpop.f32.mrf.mxu0
      %v6257 = vadd.f32 %v6198, %v6256
      %v6258 = vpop.f32.mrf.mxu0
      %v6259 = vadd.f32 %v6200, %v6258
      %6260 = vdwg.mxu0
      %6261 = vmatpush.bf16.msra.mxu0 %v5902
      %6262 = vmatpush.bf16.msra.mxu0 %v5900
      %6263 = vmatpush.bf16.msra.mxu0 %v5898
      %6264 = vmatpush.bf16.msra.mxu0 %v5896
      %6265 = vmatpush.bf16.msra.mxu0 %v5894
      %6266 = vmatpush.bf16.msra.mxu0 %v5892
      %6267 = vmatpush.bf16.msra.mxu0 %v5890
      %6268 = vmatpush.bf16.msra.mxu0 %v5888
      %6269 = vmatmul.bf16.gmra.mxu0 %v5661
      %v6270 = vpop.f32.mrf.mxu0
      %v6271 = vadd.f32 0.0, %v6270
      %v6272 = vpop.f32.mrf.mxu0
      %v6273 = vadd.f32 0.0, %v6272
      %6274 = vmatmul.bf16.gmra.mxu0 %v5665
      %v6275 = vpop.f32.mrf.mxu0
      %v6276 = vadd.f32 0.0, %v6275
      %v6277 = vpop.f32.mrf.mxu0
      %v6278 = vadd.f32 0.0, %v6277
      %6279 = vmatmul.bf16.gmra.mxu0 %v5669
      %v6280 = vpop.f32.mrf.mxu0
      %v6281 = vadd.f32 0.0, %v6280
      %v6282 = vpop.f32.mrf.mxu0
      %v6283 = vadd.f32 0.0, %v6282
      %6284 = vmatmul.bf16.gmra.mxu0 %v5673
      %v6285 = vpop.f32.mrf.mxu0
      %v6286 = vadd.f32 0.0, %v6285
      %v6287 = vpop.f32.mrf.mxu0
      %v6288 = vadd.f32 0.0, %v6287
      %6289 = vmatmul.bf16.gmra.mxu0 %v5677
      %v6290 = vpop.f32.mrf.mxu0
      %v6291 = vadd.f32 0.0, %v6290
      %v6292 = vpop.f32.mrf.mxu0
      %v6293 = vadd.f32 0.0, %v6292
      %6294 = vmatmul.bf16.gmra.mxu0 %v5681
      %v6295 = vpop.f32.mrf.mxu0
      %v6296 = vadd.f32 0.0, %v6295
      %v6297 = vpop.f32.mrf.mxu0
      %v6298 = vadd.f32 0.0, %v6297
      %6299 = vmatmul.bf16.gmra.mxu0 %v5685
      %v6300 = vpop.f32.mrf.mxu0
      %v6301 = vadd.f32 0.0, %v6300
      %v6302 = vpop.f32.mrf.mxu0
      %v6303 = vadd.f32 0.0, %v6302
      %6304 = vmatmul.bf16.gmra.mxu0 %v5689
      %v6305 = vpop.f32.mrf.mxu0
      %v6306 = vadd.f32 0.0, %v6305
      %v6307 = vpop.f32.mrf.mxu0
      %v6308 = vadd.f32 0.0, %v6307
      %6309 = vmatmul.bf16.gmra.mxu0 %v5693
      %v6310 = vpop.f32.mrf.mxu0
      %v6311 = vadd.f32 0.0, %v6310
      %v6312 = vpop.f32.mrf.mxu0
      %v6313 = vadd.f32 0.0, %v6312
      %6314 = vmatmul.bf16.gmra.mxu0 %v5697
      %v6315 = vpop.f32.mrf.mxu0
      %v6316 = vadd.f32 0.0, %v6315
      %v6317 = vpop.f32.mrf.mxu0
      %v6318 = vadd.f32 0.0, %v6317
      %6319 = vdwg.mxu0
      %6320 = vmatpush.bf16.msra.mxu0 %v5918
      %6321 = vmatpush.bf16.msra.mxu0 %v5916
      %6322 = vmatpush.bf16.msra.mxu0 %v5914
      %6323 = vmatpush.bf16.msra.mxu0 %v5912
      %6324 = vmatpush.bf16.msra.mxu0 %v5910
      %6325 = vmatpush.bf16.msra.mxu0 %v5908
      %6326 = vmatpush.bf16.msra.mxu0 %v5906
      %6327 = vmatpush.bf16.msra.mxu0 %v5904
      %6328 = vmatmul.bf16.gmra.mxu0 %v5662
      %v6329 = vpop.f32.mrf.mxu0
      %v6330 = vadd.f32 %v6271, %v6329
      %v6331 = vpop.f32.mrf.mxu0
      %v6332 = vadd.f32 %v6273, %v6331
      %6333 = vmatmul.bf16.gmra.mxu0 %v5666
      %v6334 = vpop.f32.mrf.mxu0
      %v6335 = vadd.f32 %v6276, %v6334
      %v6336 = vpop.f32.mrf.mxu0
      %v6337 = vadd.f32 %v6278, %v6336
      %6338 = vmatmul.bf16.gmra.mxu0 %v5670
      %v6339 = vpop.f32.mrf.mxu0
      %v6340 = vadd.f32 %v6281, %v6339
      %v6341 = vpop.f32.mrf.mxu0
      %v6342 = vadd.f32 %v6283, %v6341
      %6343 = vmatmul.bf16.gmra.mxu0 %v5674
      %v6344 = vpop.f32.mrf.mxu0
      %v6345 = vadd.f32 %v6286, %v6344
      %v6346 = vpop.f32.mrf.mxu0
      %v6347 = vadd.f32 %v6288, %v6346
      %6348 = vmatmul.bf16.gmra.mxu0 %v5678
      %v6349 = vpop.f32.mrf.mxu0
      %v6350 = vadd.f32 %v6291, %v6349
      %v6351 = vpop.f32.mrf.mxu0
      %v6352 = vadd.f32 %v6293, %v6351
      %6353 = vmatmul.bf16.gmra.mxu0 %v5682
      %v6354 = vpop.f32.mrf.mxu0
      %v6355 = vadd.f32 %v6296, %v6354
      %v6356 = vpop.f32.mrf.mxu0
      %v6357 = vadd.f32 %v6298, %v6356
      %6358 = vmatmul.bf16.gmra.mxu0 %v5686
      %v6359 = vpop.f32.mrf.mxu0
      %v6360 = vadd.f32 %v6301, %v6359
      %v6361 = vpop.f32.mrf.mxu0
      %v6362 = vadd.f32 %v6303, %v6361
      %6363 = vmatmul.bf16.gmra.mxu0 %v5690
      %v6364 = vpop.f32.mrf.mxu0
      %v6365 = vadd.f32 %v6306, %v6364
      %v6366 = vpop.f32.mrf.mxu0
      %v6367 = vadd.f32 %v6308, %v6366
      %6368 = vmatmul.bf16.gmra.mxu0 %v5694
      %v6369 = vpop.f32.mrf.mxu0
      %v6370 = vadd.f32 %v6311, %v6369
      %v6371 = vpop.f32.mrf.mxu0
      %v6372 = vadd.f32 %v6313, %v6371
      %6373 = vmatmul.bf16.gmra.mxu0 %v5698
      %v6374 = vpop.f32.mrf.mxu0
      %v6375 = vadd.f32 %v6316, %v6374
      %v6376 = vpop.f32.mrf.mxu0
      %v6377 = vadd.f32 %v6318, %v6376
      %6378 = vdwg.mxu0
      %6379 = vmatpush.bf16.msra.mxu0 %v5934
      %6380 = vmatpush.bf16.msra.mxu0 %v5932
      %6381 = vmatpush.bf16.msra.mxu0 %v5930
      %6382 = vmatpush.bf16.msra.mxu0 %v5928
      %6383 = vmatpush.bf16.msra.mxu0 %v5926
      %6384 = vmatpush.bf16.msra.mxu0 %v5924
      %6385 = vmatpush.bf16.msra.mxu0 %v5922
      %6386 = vmatpush.bf16.msra.mxu0 %v5920
      %6387 = vmatmul.bf16.gmra.mxu0 %v5663
      %v6388 = vpop.f32.mrf.mxu0
      %v6389 = vadd.f32 %v6330, %v6388
      %v6390 = vpop.f32.mrf.mxu0
      %v6391 = vadd.f32 %v6332, %v6390
      %6392 = vmatmul.bf16.gmra.mxu0 %v5667
      %v6393 = vpop.f32.mrf.mxu0
      %v6394 = vadd.f32 %v6335, %v6393
      %v6395 = vpop.f32.mrf.mxu0
      %v6396 = vadd.f32 %v6337, %v6395
      %6397 = vmatmul.bf16.gmra.mxu0 %v5671
      %v6398 = vpop.f32.mrf.mxu0
      %v6399 = vadd.f32 %v6340, %v6398
      %v6400 = vpop.f32.mrf.mxu0
      %v6401 = vadd.f32 %v6342, %v6400
      %6402 = vmatmul.bf16.gmra.mxu0 %v5675
      %v6403 = vpop.f32.mrf.mxu0
      %v6404 = vadd.f32 %v6345, %v6403
      %v6405 = vpop.f32.mrf.mxu0
      %v6406 = vadd.f32 %v6347, %v6405
      %6407 = vmatmul.bf16.gmra.mxu0 %v5679
      %v6408 = vpop.f32.mrf.mxu0
      %v6409 = vadd.f32 %v6350, %v6408
      %v6410 = vpop.f32.mrf.mxu0
      %v6411 = vadd.f32 %v6352, %v6410
      %6412 = vmatmul.bf16.gmra.mxu0 %v5683
      %v6413 = vpop.f32.mrf.mxu0
      %v6414 = vadd.f32 %v6355, %v6413
      %v6415 = vpop.f32.mrf.mxu0
      %v6416 = vadd.f32 %v6357, %v6415
      %6417 = vmatmul.bf16.gmra.mxu0 %v5687
      %v6418 = vpop.f32.mrf.mxu0
      %v6419 = vadd.f32 %v6360, %v6418
      %v6420 = vpop.f32.mrf.mxu0
      %v6421 = vadd.f32 %v6362, %v6420
      %6422 = vmatmul.bf16.gmra.mxu0 %v5691
      %v6423 = vpop.f32.mrf.mxu0
      %v6424 = vadd.f32 %v6365, %v6423
      %v6425 = vpop.f32.mrf.mxu0
      %v6426 = vadd.f32 %v6367, %v6425
      %6427 = vmatmul.bf16.gmra.mxu0 %v5695
      %v6428 = vpop.f32.mrf.mxu0
      %v6429 = vadd.f32 %v6370, %v6428
      %v6430 = vpop.f32.mrf.mxu0
      %v6431 = vadd.f32 %v6372, %v6430
      %6432 = vmatmul.bf16.gmra.mxu0 %v5699
      %v6433 = vpop.f32.mrf.mxu0
      %v6434 = vadd.f32 %v6375, %v6433
      %v6435 = vpop.f32.mrf.mxu0
      %v6436 = vadd.f32 %v6377, %v6435
      %6437 = vdwg.mxu0
      %6438 = vmatpush.bf16.msra.mxu0 0
      %6439 = vmatpush.bf16.msra.mxu0 0
      %6440 = vmatpush.bf16.msra.mxu0 0
      %6441 = vmatpush.bf16.msra.mxu0 0
      %6442 = vmatpush.bf16.msra.mxu0 0
      %6443 = vmatpush.bf16.msra.mxu0 0
      %6444 = vmatpush.bf16.msra.mxu0 %v6023
      %6445 = vmatpush.bf16.msra.mxu0 %v5936
      %6446 = vmatmul.bf16.gmra.mxu0 %v5990
      %v6447 = vpop.f32.mrf.mxu0
      %v6448 = vadd.f32 %v6389, %v6447
      %v6449 = vpop.f32.mrf.mxu0
      %v6450 = vadd.f32 %v6391, %v6449
      %6451 = vmatmul.bf16.gmra.mxu0 %v5993
      %v6452 = vpop.f32.mrf.mxu0
      %v6453 = vadd.f32 %v6394, %v6452
      %v6454 = vpop.f32.mrf.mxu0
      %v6455 = vadd.f32 %v6396, %v6454
      %6456 = vmatmul.bf16.gmra.mxu0 %v5996
      %v6457 = vpop.f32.mrf.mxu0
      %v6458 = vadd.f32 %v6399, %v6457
      %v6459 = vpop.f32.mrf.mxu0
      %v6460 = vadd.f32 %v6401, %v6459
      %6461 = vmatmul.bf16.gmra.mxu0 %v5999
      %v6462 = vpop.f32.mrf.mxu0
      %v6463 = vadd.f32 %v6404, %v6462
      %v6464 = vpop.f32.mrf.mxu0
      %v6465 = vadd.f32 %v6406, %v6464
      %6466 = vmatmul.bf16.gmra.mxu0 %v6002
      %v6467 = vpop.f32.mrf.mxu0
      %v6468 = vadd.f32 %v6409, %v6467
      %v6469 = vpop.f32.mrf.mxu0
      %v6470 = vadd.f32 %v6411, %v6469
      %6471 = vmatmul.bf16.gmra.mxu0 %v6005
      %v6472 = vpop.f32.mrf.mxu0
      %v6473 = vadd.f32 %v6414, %v6472
      %v6474 = vpop.f32.mrf.mxu0
      %v6475 = vadd.f32 %v6416, %v6474
      %6476 = vmatmul.bf16.gmra.mxu0 %v6008
      %v6477 = vpop.f32.mrf.mxu0
      %v6478 = vadd.f32 %v6419, %v6477
      %v6479 = vpop.f32.mrf.mxu0
      %v6480 = vadd.f32 %v6421, %v6479
      %6481 = vmatmul.bf16.gmra.mxu0 %v6011
      %v6482 = vpop.f32.mrf.mxu0
      %v6483 = vadd.f32 %v6424, %v6482
      %v6484 = vpop.f32.mrf.mxu0
      %v6485 = vadd.f32 %v6426, %v6484
      %6486 = vmatmul.bf16.gmra.mxu0 %v6014
      %v6487 = vpop.f32.mrf.mxu0
      %v6488 = vadd.f32 %v6429, %v6487
      %v6489 = vpop.f32.mrf.mxu0
      %v6490 = vadd.f32 %v6431, %v6489
      %6491 = vmatmul.bf16.gmra.mxu0 %v6017
      %v6492 = vpop.f32.mrf.mxu0
      %v6493 = vadd.f32 %v6434, %v6492
      %v6494 = vpop.f32.mrf.mxu0
      %v6495 = vadd.f32 %v6436, %v6494
      %6496 = vdwg.mxu0
      %v6497 = vadd.f32 %v1596, %v4220
      %v6498 = vadd.f32 %v1832, %v4456
      %v6499 = vadd.f32 %v1598, %v4222
      %v6500 = vadd.f32 %v1834, %v4458
      %v6501 = vadd.f32 %v1601, %v4225
      %v6502 = vadd.f32 %v1837, %v4461
      %v6503 = vadd.f32 %v1603, %v4227
      %v6504 = vadd.f32 %v1839, %v4463
      %v6505 = vadd.f32 %v1606, %v4230
      %v6506 = vadd.f32 %v1842, %v4466
      %v6507 = vadd.f32 %v1608, %v4232
      %v6508 = vadd.f32 %v1844, %v4468
      %v6509 = vadd.f32 %v1611, %v4235
      %v6510 = vadd.f32 %v1847, %v4471
      %v6511 = vadd.f32 %v1613, %v4237
      %v6512 = vadd.f32 %v1849, %v4473
      %v6513 = vadd.f32 %v1616, %v4240
      %v6514 = vadd.f32 %v1852, %v4476
      %v6515 = vadd.f32 %v1618, %v4242
      %v6516 = vadd.f32 %v1854, %v4478
      %v6517 = vadd.f32 %v1621, %v4245
      %v6518 = vadd.f32 %v1857, %v4481
      %v6519 = vadd.f32 %v1623, %v4247
      %v6520 = vadd.f32 %v1859, %v4483
      %v6521 = vadd.f32 %v1626, %v4250
      %v6522 = vadd.f32 %v1862, %v4486
      %v6523 = vadd.f32 %v1628, %v4252
      %v6524 = vadd.f32 %v1864, %v4488
      %v6525 = vadd.f32 %v1631, %v4255
      %v6526 = vadd.f32 %v1867, %v4491
      %v6527 = vadd.f32 %v1633, %v4257
      %v6528 = vadd.f32 %v1869, %v4493
      %v6529 = vadd.f32 %v1636, %v4260
      %v6530 = vadd.f32 %v1872, %v4496
      %v6531 = vadd.f32 %v1638, %v4262
      %v6532 = vadd.f32 %v1874, %v4498
      %v6533 = vadd.f32 %v1641, %v4265
      %v6534 = vadd.f32 %v1877, %v4501
      %v6535 = vadd.f32 %v1643, %v4267
      %v6536 = vadd.f32 %v1879, %v4503
      %v6537 = vadd.f32 %v6497, %v6212
      %v6538 = vadd.f32 %v6498, %v6448
      %v6539 = vadd.f32 %v6499, %v6214
      %v6540 = vadd.f32 %v6500, %v6450
      %v6541 = vadd.f32 %v6501, %v6217
      %v6542 = vadd.f32 %v6502, %v6453
      %v6543 = vadd.f32 %v6503, %v6219
      %v6544 = vadd.f32 %v6504, %v6455
      %v6545 = vadd.f32 %v6505, %v6222
      %v6546 = vadd.f32 %v6506, %v6458
      %v6547 = vadd.f32 %v6507, %v6224
      %v6548 = vadd.f32 %v6508, %v6460
      %v6549 = vadd.f32 %v6509, %v6227
      %v6550 = vadd.f32 %v6510, %v6463
      %v6551 = vadd.f32 %v6511, %v6229
      %v6552 = vadd.f32 %v6512, %v6465
      %v6553 = vadd.f32 %v6513, %v6232
      %v6554 = vadd.f32 %v6514, %v6468
      %v6555 = vadd.f32 %v6515, %v6234
      %v6556 = vadd.f32 %v6516, %v6470
      %v6557 = vadd.f32 %v6517, %v6237
      %v6558 = vadd.f32 %v6518, %v6473
      %v6559 = vadd.f32 %v6519, %v6239
      %v6560 = vadd.f32 %v6520, %v6475
      %v6561 = vadd.f32 %v6521, %v6242
      %v6562 = vadd.f32 %v6522, %v6478
      %v6563 = vadd.f32 %v6523, %v6244
      %v6564 = vadd.f32 %v6524, %v6480
      %v6565 = vadd.f32 %v6525, %v6247
      %v6566 = vadd.f32 %v6526, %v6483
      %v6567 = vadd.f32 %v6527, %v6249
      %v6568 = vadd.f32 %v6528, %v6485
      %v6569 = vadd.f32 %v6529, %v6252
      %v6570 = vadd.f32 %v6530, %v6488
      %v6571 = vadd.f32 %v6531, %v6254
      %v6572 = vadd.f32 %v6532, %v6490
      %v6573 = vadd.f32 %v6533, %v6257
      %v6574 = vadd.f32 %v6534, %v6493
      %v6575 = vadd.f32 %v6535, %v6259
      %v6576 = vadd.f32 %v6536, %v6495
      %v6577 = vmax.f32 %v6537, 0.0
      %v6578 = vmax.f32 %v6538, 0.0
      %v6579 = vmax.f32 %v6539, 0.0
      %v6580 = vmax.f32 %v6540, 0.0
      %v6581 = vmax.f32 %v6541, 0.0
      %v6582 = vmax.f32 %v6542, 0.0
      %v6583 = vmax.f32 %v6543, 0.0
      %v6584 = vmax.f32 %v6544, 0.0
      %v6585 = vmax.f32 %v6545, 0.0
      %v6586 = vmax.f32 %v6546, 0.0
      %v6587 = vmax.f32 %v6547, 0.0
      %v6588 = vmax.f32 %v6548, 0.0
      %v6589 = vmax.f32 %v6549, 0.0
      %v6590 = vmax.f32 %v6550, 0.0
      %v6591 = vmax.f32 %v6551, 0.0
      %v6592 = vmax.f32 %v6552, 0.0
      %v6593 = vmax.f32 %v6553, 0.0
      %v6594 = vmax.f32 %v6554, 0.0
      %v6595 = vmax.f32 %v6555, 0.0
      %v6596 = vmax.f32 %v6556, 0.0
      %v6597 = vmax.f32 %v6557, 0.0
      %v6598 = vmax.f32 %v6558, 0.0
      %v6599 = vmax.f32 %v6559, 0.0
      %v6600 = vmax.f32 %v6560, 0.0
      %v6601 = vmax.f32 %v6561, 0.0
      %v6602 = vmax.f32 %v6562, 0.0
      %v6603 = vmax.f32 %v6563, 0.0
      %v6604 = vmax.f32 %v6564, 0.0
      %v6605 = vmax.f32 %v6565, 0.0
      %v6606 = vmax.f32 %v6566, 0.0
      %v6607 = vmax.f32 %v6567, 0.0
      %v6608 = vmax.f32 %v6568, 0.0
      %v6609 = vmax.f32 %v6569, 0.0
      %v6610 = vmax.f32 %v6570, 0.0
      %v6611 = vmax.f32 %v6571, 0.0
      %v6612 = vmax.f32 %v6572, 0.0
      %v6613 = vmax.f32 %v6573, 0.0
      %v6614 = vmax.f32 %v6574, 0.0
      %v6615 = vmax.f32 %v6575, 0.0
      %v6616 = vmax.f32 %v6576, 0.0
      %v6617 = vpack.c.bf16 %v6578, %v6577
      %v6618 = vpack.c.bf16 %v6580, %v6579
      %v6619 = vpack.c.bf16 %v6582, %v6581
      %v6620 = vpack.c.bf16 %v6584, %v6583
      %v6621 = vpack.c.bf16 %v6586, %v6585
      %v6622 = vpack.c.bf16 %v6588, %v6587
      %v6623 = vpack.c.bf16 %v6590, %v6589
      %v6624 = vpack.c.bf16 %v6592, %v6591
      %v6625 = vpack.c.bf16 %v6594, %v6593
      %v6626 = vpack.c.bf16 %v6596, %v6595
      %v6627 = vpack.c.bf16 %v6598, %v6597
      %v6628 = vpack.c.bf16 %v6600, %v6599
      %v6629 = vpack.c.bf16 %v6602, %v6601
      %v6630 = vpack.c.bf16 %v6604, %v6603
      %v6631 = vpack.c.bf16 %v6606, %v6605
      %v6632 = vpack.c.bf16 %v6608, %v6607
      %v6633 = vpack.c.bf16 %v6610, %v6609
      %v6634 = vpack.c.bf16 %v6612, %v6611
      %v6635 = vpack.c.bf16 %v6614, %v6613
      %v6636 = vpack.c.bf16 %v6616, %v6615
      %6637 = vst [vmem:[%s197] sm:$0xff] %v6617
      %6638 = vst [vmem:[%s197 + $0x8] sm:$0xff] %v6618
      %6639 = vst [vmem:[%s197 + $0x10] sm:$0xff] %v6619
      %6640 = vst [vmem:[%s197 + $0x18] sm:$0xff] %v6620
      %6641 = vst [vmem:[%s197 + $0x20] sm:$0xff] %v6621
      %6642 = vst [vmem:[%s197 + $0x28] sm:$0xff] %v6622
      %6643 = vst [vmem:[%s197 + $0x30] sm:$0xff] %v6623
      %6644 = vst [vmem:[%s197 + $0x38] sm:$0xff] %v6624
      %6645 = vst [vmem:[%s197 + $0x40] sm:$0xff] %v6625
      %6646 = vst [vmem:[%s197 + $0x48] sm:$0xff] %v6626
      %6647 = vst [vmem:[%s197 + $0x50] sm:$0xff] %v6627
      %6648 = vst [vmem:[%s197 + $0x58] sm:$0xff] %v6628
      %6649 = vst [vmem:[%s197 + $0x60] sm:$0xff] %v6629
      %6650 = vst [vmem:[%s197 + $0x68] sm:$0xff] %v6630
      %6651 = vst [vmem:[%s197 + $0x70] sm:$0xff] %v6631
      %6652 = vst [vmem:[%s197 + $0x78] sm:$0xff] %v6632
      %6653 = vst [vmem:[%s197 + $0x80] sm:$0xff] %v6633
      %6654 = vst [vmem:[%s197 + $0x88] sm:$0xff] %v6634
      %6655 = vst [vmem:[%s197 + $0x90] sm:$0xff] %v6635
      %6656 = vst [vmem:[%s197 + $0x98] sm:$0xff] %v6636
      %v6657 = vadd.f32 %v2068, %v4692
      %v6658 = vadd.f32 %v2304, %v4928
      %v6659 = vadd.f32 %v2070, %v4694
      %v6660 = vadd.f32 %v2306, %v4930
      %v6661 = vadd.f32 %v2073, %v4697
      %v6662 = vadd.f32 %v2309, %v4933
      %v6663 = vadd.f32 %v2075, %v4699
      %v6664 = vadd.f32 %v2311, %v4935
      %v6665 = vadd.f32 %v2078, %v4702
      %v6666 = vadd.f32 %v2314, %v4938
      %v6667 = vadd.f32 %v2080, %v4704
      %v6668 = vadd.f32 %v2316, %v4940
      %v6669 = vadd.f32 %v2083, %v4707
      %v6670 = vadd.f32 %v2319, %v4943
      %v6671 = vadd.f32 %v2085, %v4709
      %v6672 = vadd.f32 %v2321, %v4945
      %v6673 = vadd.f32 %v2088, %v4712
      %v6674 = vadd.f32 %v2324, %v4948
      %v6675 = vadd.f32 %v2090, %v4714
      %v6676 = vadd.f32 %v2326, %v4950
      %v6677 = vadd.f32 %v2093, %v4717
      %v6678 = vadd.f32 %v2329, %v4953
      %v6679 = vadd.f32 %v2095, %v4719
      %v6680 = vadd.f32 %v2331, %v4955
      %v6681 = vadd.f32 %v2098, %v4722
      %v6682 = vadd.f32 %v2334, %v4958
      %v6683 = vadd.f32 %v2100, %v4724
      %v6684 = vadd.f32 %v2336, %v4960
      %v6685 = vadd.f32 %v2103, %v4727
      %v6686 = vadd.f32 %v2339, %v4963
      %v6687 = vadd.f32 %v2105, %v4729
      %v6688 = vadd.f32 %v2341, %v4965
      %v6689 = vadd.f32 %v2108, %v4732
      %v6690 = vadd.f32 %v2344, %v4968
      %v6691 = vadd.f32 %v2110, %v4734
      %v6692 = vadd.f32 %v2346, %v4970
      %v6693 = vadd.f32 %v2113, %v4737
      %v6694 = vadd.f32 %v2349, %v4973
      %v6695 = vadd.f32 %v2115, %v4739
      %v6696 = vadd.f32 %v2351, %v4975
      %v6697 = vmax.f32 %v6657, 0.0
      %v6698 = vmax.f32 %v6658, 0.0
      %v6699 = vmax.f32 %v6659, 0.0
      %v6700 = vmax.f32 %v6660, 0.0
      %v6701 = vmax.f32 %v6661, 0.0
      %v6702 = vmax.f32 %v6662, 0.0
      %v6703 = vmax.f32 %v6663, 0.0
      %v6704 = vmax.f32 %v6664, 0.0
      %v6705 = vmax.f32 %v6665, 0.0
      %v6706 = vmax.f32 %v6666, 0.0
      %v6707 = vmax.f32 %v6667, 0.0
      %v6708 = vmax.f32 %v6668, 0.0
      %v6709 = vmax.f32 %v6669, 0.0
      %v6710 = vmax.f32 %v6670, 0.0
      %v6711 = vmax.f32 %v6671, 0.0
      %v6712 = vmax.f32 %v6672, 0.0
      %v6713 = vmax.f32 %v6673, 0.0
      %v6714 = vmax.f32 %v6674, 0.0
      %v6715 = vmax.f32 %v6675, 0.0
      %v6716 = vmax.f32 %v6676, 0.0
      %v6717 = vmax.f32 %v6677, 0.0
      %v6718 = vmax.f32 %v6678, 0.0
      %v6719 = vmax.f32 %v6679, 0.0
      %v6720 = vmax.f32 %v6680, 0.0
      %v6721 = vmax.f32 %v6681, 0.0
      %v6722 = vmax.f32 %v6682, 0.0
      %v6723 = vmax.f32 %v6683, 0.0
      %v6724 = vmax.f32 %v6684, 0.0
      %v6725 = vmax.f32 %v6685, 0.0
      %v6726 = vmax.f32 %v6686, 0.0
      %v6727 = vmax.f32 %v6687, 0.0
      %v6728 = vmax.f32 %v6688, 0.0
      %v6729 = vmax.f32 %v6689, 0.0
      %v6730 = vmax.f32 %v6690, 0.0
      %v6731 = vmax.f32 %v6691, 0.0
      %v6732 = vmax.f32 %v6692, 0.0
      %v6733 = vmax.f32 %v6693, 0.0
      %v6734 = vmax.f32 %v6694, 0.0
      %v6735 = vmax.f32 %v6695, 0.0
      %v6736 = vmax.f32 %v6696, 0.0
      %v6737 = vpack.c.bf16 %v6698, %v6697
      %v6738 = vpack.c.bf16 %v6700, %v6699
      %v6739 = vpack.c.bf16 %v6702, %v6701
      %v6740 = vpack.c.bf16 %v6704, %v6703
      %v6741 = vpack.c.bf16 %v6706, %v6705
      %v6742 = vpack.c.bf16 %v6708, %v6707
      %v6743 = vpack.c.bf16 %v6710, %v6709
      %v6744 = vpack.c.bf16 %v6712, %v6711
      %v6745 = vpack.c.bf16 %v6714, %v6713
      %v6746 = vpack.c.bf16 %v6716, %v6715
      %v6747 = vpack.c.bf16 %v6718, %v6717
      %v6748 = vpack.c.bf16 %v6720, %v6719
      %v6749 = vpack.c.bf16 %v6722, %v6721
      %v6750 = vpack.c.bf16 %v6724, %v6723
      %v6751 = vpack.c.bf16 %v6726, %v6725
      %v6752 = vpack.c.bf16 %v6728, %v6727
      %v6753 = vpack.c.bf16 %v6730, %v6729
      %v6754 = vpack.c.bf16 %v6732, %v6731
      %v6755 = vpack.c.bf16 %v6734, %v6733
      %v6756 = vpack.c.bf16 %v6736, %v6735
      %s6757 = scalar_lea.vmem %s197, 160
      %6758 = vst [vmem:[%s6757] sm:$0xff] %v6737
      %6759 = vst [vmem:[%s6757 + $0x8] sm:$0xff] %v6738
      %6760 = vst [vmem:[%s6757 + $0x10] sm:$0xff] %v6739
      %6761 = vst [vmem:[%s6757 + $0x18] sm:$0xff] %v6740
      %6762 = vst [vmem:[%s6757 + $0x20] sm:$0xff] %v6741
      %6763 = vst [vmem:[%s6757 + $0x28] sm:$0xff] %v6742
      %6764 = vst [vmem:[%s6757 + $0x30] sm:$0xff] %v6743
      %6765 = vst [vmem:[%s6757 + $0x38] sm:$0xff] %v6744
      %6766 = vst [vmem:[%s6757 + $0x40] sm:$0xff] %v6745
      %6767 = vst [vmem:[%s6757 + $0x48] sm:$0xff] %v6746
      %6768 = vst [vmem:[%s6757 + $0x50] sm:$0xff] %v6747
      %6769 = vst [vmem:[%s6757 + $0x58] sm:$0xff] %v6748
      %6770 = vst [vmem:[%s6757 + $0x60] sm:$0xff] %v6749
      %6771 = vst [vmem:[%s6757 + $0x68] sm:$0xff] %v6750
      %6772 = vst [vmem:[%s6757 + $0x70] sm:$0xff] %v6751
      %6773 = vst [vmem:[%s6757 + $0x78] sm:$0xff] %v6752
      %6774 = vst [vmem:[%s6757 + $0x80] sm:$0xff] %v6753
      %6775 = vst [vmem:[%s6757 + $0x88] sm:$0xff] %v6754
      %6776 = vst [vmem:[%s6757 + $0x90] sm:$0xff] %v6755
      %6777 = vst [vmem:[%s6757 + $0x98] sm:$0xff] %v6756
      %v6778 = vadd.f32 %v2540, %v5164
      %v6779 = vadd.f32 %v2776, %v5400
      %v6780 = vadd.f32 %v2542, %v5166
      %v6781 = vadd.f32 %v2778, %v5402
      %v6782 = vadd.f32 %v2545, %v5169
      %v6783 = vadd.f32 %v2781, %v5405
      %v6784 = vadd.f32 %v2547, %v5171
      %v6785 = vadd.f32 %v2783, %v5407
      %v6786 = vadd.f32 %v2550, %v5174
      %v6787 = vadd.f32 %v2786, %v5410
      %v6788 = vadd.f32 %v2552, %v5176
      %v6789 = vadd.f32 %v2788, %v5412
      %v6790 = vadd.f32 %v2555, %v5179
      %v6791 = vadd.f32 %v2791, %v5415
      %v6792 = vadd.f32 %v2557, %v5181
      %v6793 = vadd.f32 %v2793, %v5417
      %v6794 = vadd.f32 %v2560, %v5184
      %v6795 = vadd.f32 %v2796, %v5420
      %v6796 = vadd.f32 %v2562, %v5186
      %v6797 = vadd.f32 %v2798, %v5422
      %v6798 = vadd.f32 %v2565, %v5189
      %v6799 = vadd.f32 %v2801, %v5425
      %v6800 = vadd.f32 %v2567, %v5191
      %v6801 = vadd.f32 %v2803, %v5427
      %v6802 = vadd.f32 %v2570, %v5194
      %v6803 = vadd.f32 %v2806, %v5430
      %v6804 = vadd.f32 %v2572, %v5196
      %v6805 = vadd.f32 %v2808, %v5432
      %v6806 = vadd.f32 %v2575, %v5199
      %v6807 = vadd.f32 %v2811, %v5435
      %v6808 = vadd.f32 %v2577, %v5201
      %v6809 = vadd.f32 %v2813, %v5437
      %v6810 = vadd.f32 %v2580, %v5204
      %v6811 = vadd.f32 %v2816, %v5440
      %v6812 = vadd.f32 %v2582, %v5206
      %v6813 = vadd.f32 %v2818, %v5442
      %v6814 = vadd.f32 %v2585, %v5209
      %v6815 = vadd.f32 %v2821, %v5445
      %v6816 = vadd.f32 %v2587, %v5211
      %v6817 = vadd.f32 %v2823, %v5447
      %v6818 = vmax.f32 %v6778, 0.0
      %v6819 = vmax.f32 %v6779, 0.0
      %v6820 = vmax.f32 %v6780, 0.0
      %v6821 = vmax.f32 %v6781, 0.0
      %v6822 = vmax.f32 %v6782, 0.0
      %v6823 = vmax.f32 %v6783, 0.0
      %v6824 = vmax.f32 %v6784, 0.0
      %v6825 = vmax.f32 %v6785, 0.0
      %v6826 = vmax.f32 %v6786, 0.0
      %v6827 = vmax.f32 %v6787, 0.0
      %v6828 = vmax.f32 %v6788, 0.0
      %v6829 = vmax.f32 %v6789, 0.0
      %v6830 = vmax.f32 %v6790, 0.0
      %v6831 = vmax.f32 %v6791, 0.0
      %v6832 = vmax.f32 %v6792, 0.0
      %v6833 = vmax.f32 %v6793, 0.0
      %v6834 = vmax.f32 %v6794, 0.0
      %v6835 = vmax.f32 %v6795, 0.0
      %v6836 = vmax.f32 %v6796, 0.0
      %v6837 = vmax.f32 %v6797, 0.0
      %v6838 = vmax.f32 %v6798, 0.0
      %v6839 = vmax.f32 %v6799, 0.0
      %v6840 = vmax.f32 %v6800, 0.0
      %v6841 = vmax.f32 %v6801, 0.0
      %v6842 = vmax.f32 %v6802, 0.0
      %v6843 = vmax.f32 %v6803, 0.0
      %v6844 = vmax.f32 %v6804, 0.0
      %v6845 = vmax.f32 %v6805, 0.0
      %v6846 = vmax.f32 %v6806, 0.0
      %v6847 = vmax.f32 %v6807, 0.0
      %v6848 = vmax.f32 %v6808, 0.0
      %v6849 = vmax.f32 %v6809, 0.0
      %v6850 = vmax.f32 %v6810, 0.0
      %v6851 = vmax.f32 %v6811, 0.0
      %v6852 = vmax.f32 %v6812, 0.0
      %v6853 = vmax.f32 %v6813, 0.0
      %v6854 = vmax.f32 %v6814, 0.0
      %v6855 = vmax.f32 %v6815, 0.0
      %v6856 = vmax.f32 %v6816, 0.0
      %v6857 = vmax.f32 %v6817, 0.0
      %v6858 = vpack.c.bf16 %v6819, %v6818
      %v6859 = vpack.c.bf16 %v6821, %v6820
      %v6860 = vpack.c.bf16 %v6823, %v6822
      %v6861 = vpack.c.bf16 %v6825, %v6824
      %v6862 = vpack.c.bf16 %v6827, %v6826
      %v6863 = vpack.c.bf16 %v6829, %v6828
      %v6864 = vpack.c.bf16 %v6831, %v6830
      %v6865 = vpack.c.bf16 %v6833, %v6832
      %v6866 = vpack.c.bf16 %v6835, %v6834
      %v6867 = vpack.c.bf16 %v6837, %v6836
      %v6868 = vpack.c.bf16 %v6839, %v6838
      %v6869 = vpack.c.bf16 %v6841, %v6840
      %v6870 = vpack.c.bf16 %v6843, %v6842
      %v6871 = vpack.c.bf16 %v6845, %v6844
      %v6872 = vpack.c.bf16 %v6847, %v6846
      %v6873 = vpack.c.bf16 %v6849, %v6848
      %v6874 = vpack.c.bf16 %v6851, %v6850
      %v6875 = vpack.c.bf16 %v6853, %v6852
      %v6876 = vpack.c.bf16 %v6855, %v6854
      %v6877 = vpack.c.bf16 %v6857, %v6856
      %s6878 = scalar_lea.vmem %s197, 320
      %6879 = vst [vmem:[%s6878] sm:$0xff] %v6858
      %6880 = vst [vmem:[%s6878 + $0x8] sm:$0xff] %v6859
      %6881 = vst [vmem:[%s6878 + $0x10] sm:$0xff] %v6860
      %6882 = vst [vmem:[%s6878 + $0x18] sm:$0xff] %v6861
      %6883 = vst [vmem:[%s6878 + $0x20] sm:$0xff] %v6862
      %6884 = vst [vmem:[%s6878 + $0x28] sm:$0xff] %v6863
      %6885 = vst [vmem:[%s6878 + $0x30] sm:$0xff] %v6864
      %6886 = vst [vmem:[%s6878 + $0x38] sm:$0xff] %v6865
      %6887 = vst [vmem:[%s6878 + $0x40] sm:$0xff] %v6866
      %6888 = vst [vmem:[%s6878 + $0x48] sm:$0xff] %v6867
      %6889 = vst [vmem:[%s6878 + $0x50] sm:$0xff] %v6868
      %6890 = vst [vmem:[%s6878 + $0x58] sm:$0xff] %v6869
      %6891 = vst [vmem:[%s6878 + $0x60] sm:$0xff] %v6870
      %6892 = vst [vmem:[%s6878 + $0x68] sm:$0xff] %v6871
      %6893 = vst [vmem:[%s6878 + $0x70] sm:$0xff] %v6872
      %6894 = vst [vmem:[%s6878 + $0x78] sm:$0xff] %v6873
      %6895 = vst [vmem:[%s6878 + $0x80] sm:$0xff] %v6874
      %6896 = vst [vmem:[%s6878 + $0x88] sm:$0xff] %v6875
      %6897 = vst [vmem:[%s6878 + $0x90] sm:$0xff] %v6876
      %6898 = vst [vmem:[%s6878 + $0x98] sm:$0xff] %v6877
      %p6899 = scmp.lt.s32.totalorder %s15, 1
      %s6900 = scalar_select %p6899, %s15, 1
      %s6901 = smul.addr %s6900, 120
      %s6902 = smul.addr %s6901, 4
      %s6903 = scalar_lea.vmem %s4, %s6902
      // Predicated region
      $region37: #{model_forward.1} parent=35 // pred_check
        %p6904 = pneg %p122
      $region38: #{model_forward.1} parent=35 // pred_check_branch
        %6906 = sbr.rel (%p6904) target = $region40
      $region39: #{model_forward.1} parent=35 // pred_region
        _
      $region40: #{model_forward.1} parent=35 // pred_fallthru
        _
    $region36: #{model_forward.1} parent=5 // pred_fallthru
      _
    %p6907 = scmp.le.s32.totalorder 2, %s10
    // Predicated region
    $region41: #{model_forward.1} parent=5 // pred_check
      %p6908 = pneg %p6907
    $region42: #{model_forward.1} parent=5 // pred_check_branch
      %6910 = sbr.rel (%p6908) target = $region44
    $region43: #{model_forward.1} parent=5 // pred_region
      %s6911 = ssub.s32 %s10, 2
      // Predicated region
      $region45: #{model_forward.1} parent=43 // pred_check
        %p6912 = pneg %p128
      $region46: #{model_forward.1} parent=43 // pred_check_branch
        %6914 = sbr.rel (%p6912) target = $region48
      $region47: #{model_forward.1} parent=43 // pred_region
        %p6915 = scmp.lt.s32.totalorder %s16, 1
        %s6916 = scalar_select %p6915, %s16, 1
        %s6917 = smul.addr %s6916, 120
        %s6918 = smul.addr %s6917, 4
        %s6919 = scalar_lea.vmem %s4, %s6918
      $region48: #{model_forward.1} parent=43 // pred_fallthru
        _
    $region44: #{model_forward.1} parent=5 // pred_fallthru
      _
  $region6: #{model_forward.1} parent=0 // loop_footer
    %s14 = sadd.s32 1, %s10
  $region7: #{model_forward.1} parent=0 // loop_footer_branch
    %9 = sbr.rel target = $region3
  $region8: #{model_forward.1} parent=0 // loop_exit
    _

</llo_original>
